<compile_context>
chip_gen: v7x
topology: tpu7x:2x2x1
jax: 0.10.0
libtpu: 0.0.40
codegen_flags: <defaults>
</compile_context>

<pallas_src>
import jax
import jax.numpy as jnp
from jax.experimental import pallas as pl
from jax.experimental.pallas import tpu as pltpu

# ---- small, module-consistent sizes ----
VOCAB = 50       # max_features
VOCAB_PAD = 64   # lookup-table rows padded to a sublane-tile multiple
E = 32           # embed_size
H = 32           # hidden_size
P = 16           # num_penultimate
B = 2            # batch
L = 8            # sequence length

# Fused gate-major column layout (width 6H): [r_f, r_b, z_f, z_b, n_f, n_b]
# Fused hidden carry layout        (width 2H): [h_f, h_b]
#   h_f at fused step i = forward hidden at time i
#   h_b at fused step i = backward hidden at time L-1-i


def _rnn_attn_kernel(ids_ref, ttop_ref, tbot_ref, wbig_ref, wlin_ref, vec_ref, o_ref):
    # ---- unpack packed parameter slabs (static slices, one-time cost) ----
    Whh1 = wbig_ref[0:2 * H, :]               # (2H, 6H) bf16  layer-1 recurrent (block-diag)
    W2   = wbig_ref[2 * H:6 * H, :]           # (4H, 6H) bf16  layer-2 input proj (rows permuted)
    Whh2 = wbig_ref[6 * H:8 * H, :]           # (2H, 6H) bf16  layer-2 recurrent

    b2   = vec_ref[0:1, :]                    # (1, 6H) fused layer-2 bias (r,z: ih+hh; n: ih)
    bhn1 = vec_ref[1:2, 0:2 * H]              # (1, 2H) b_hh(n) layer 1 [f|b]
    bhn2 = vec_ref[1:2, 2 * H:4 * H]          # (1, 2H) b_hh(n) layer 2 [f|b]
    wat1 = vec_ref[2:3, 0:2 * H]              # (1, 2H) attention-1 weight
    wat2 = vec_ref[2:3, 2 * H:4 * H]          # (1, 2H) attention-2 weight
    blin = vec_ref[3:4, 0:P]                  # (1, P)
    wout = vec_ref[3:4, P:2 * P]              # (1, P)  (= out.weight row)
    bout = vec_ref[3:4, 2 * P:2 * P + 1]      # (1, 1)

    # ---- layer-1 gate inputs via embedding->gate lookup tables ----
    # xg1[i][b] = Ttop[id(b, i)] + Tbot[id(b, L-1-i)]   (b1 already folded into Ttop).
    # Static SMEM scalar reads + dynamic-sublane VMEM row loads; independent of the
    # recurrence carry, so these overlap the serial MXU chain.
    xg1_steps = []
    for i in range(L):
        rows = []
        for b in range(B):
            idf = ids_ref[b, i]
            idb = ids_ref[b, L - 1 - i]
            rows.append(ttop_ref[pl.ds(idf, 1), :] + tbot_ref[pl.ds(idb, 1), :])  # (1, 6H)
        xg1_steps.append(jnp.concatenate(rows, axis=0))                           # (B, 6H) f32

    def gru_layer(xg_steps, Whh, bhn):
        """Fused bidirectional GRU layer, fully unrolled over L steps.

        xg_steps: list of (B, 6H) f32 precomputed input-gate projections (+ biases).
        Returns list s[i] of (B, 2H): [:, :H] = fwd hidden @ time i,
                                      [:, H:] = bwd hidden @ time L-1-i.
        """
        h = jnp.zeros((B, 2 * H), jnp.float32)
        steps = []
        for i in range(L):
            hg = jnp.dot(h.astype(jnp.bfloat16), Whh,
                         preferred_element_type=jnp.float32)        # (B, 6H) one bf16 MXU op
            xg = xg_steps[i]
            rz = jax.nn.sigmoid(xg[:, :4 * H] + hg[:, :4 * H])       # r|z, 128 lanes at once
            r = rz[:, :2 * H]
            z = rz[:, 2 * H:]
            n = jnp.tanh(xg[:, 4 * H:] + r * (hg[:, 4 * H:] + bhn))  # PyTorch GRU n-gate
            h = (1.0 - z) * n + z * h
            steps.append(h)
        return steps

    # ---- layer 1 ("lstm" bidirectional GRU) ----
    s1 = gru_layer(xg1_steps, Whh1, bhn1)

    # Layer-2 fused input: y2[i] = [s1[i] | s1[L-1-i]]; W2's rows were permuted in
    # pack_params to match this (cheap) ordering, avoiding extra shuffles.
    y2 = jnp.concatenate(
        [jnp.concatenate([s1[i], s1[L - 1 - i]], axis=-1) for i in range(L)],
        axis=0)                                                      # (L*B, 4H)

    # ---- layer 2 ("gru" bidirectional GRU): one fused input projection ----
    xg2_all = jnp.dot(y2.astype(jnp.bfloat16), W2,
                      preferred_element_type=jnp.float32) + b2       # (L*B, 6H)
    xg2_steps = [xg2_all[i * B:(i + 1) * B, :] for i in range(L)]    # static slices
    s2 = gru_layer(xg2_steps, Whh2, bhn2)

    # Time-aligned hidden sequences, lane/sublane-dense layout (B, L, 2H) = (2, 8, 64).
    def stack_seq(steps):
        rows = [jnp.concatenate([steps[t][:, :H], steps[L - 1 - t][:, H:]], axis=-1)
                for t in range(L)]                                   # each (B, 2H)
        return jnp.stack(rows, axis=1)                               # (B, L, 2H)

    h_lstm = stack_seq(s1)
    h_gru = stack_seq(s2)

    # ---- attention: tanh(h . w) -> softmax over L -> weighted sum (torch Attention fwd) ----
    def attention(hseq, w_row):
        e = jnp.tanh(jnp.sum(hseq * w_row[None, :, :], axis=-1, keepdims=True))  # (B, L, 1)
        p = jnp.exp(e)   # tanh scores are in [-1,1]; no max-subtraction needed
        p = p * pl.reciprocal(jnp.sum(p, axis=1, keepdims=True), approx=True)
        return jnp.sum(p * hseq, axis=1)                                          # (B, 2H)

    a_lstm = attention(h_lstm, wat1)                  # (B, 2H)
    a_gru = attention(h_gru, wat2)                    # (B, 2H)
    avg_pool = jnp.mean(h_gru, axis=1)                # (B, 2H)  sublane reduce
    max_pool = jnp.max(h_gru, axis=1)                 # (B, 2H)

    # ---- final MLP: 8H->P linear split into four (2H,P) blocks (no lane concat) ----
    def blk(x, lo):
        return jnp.dot(x.astype(jnp.bfloat16), wlin_ref[lo:lo + 2 * H, :],
                       preferred_element_type=jnp.float32)

    pen = (blk(a_lstm, 0) + blk(a_gru, 2 * H)
           + blk(avg_pool, 4 * H) + blk(max_pool, 6 * H) + blin)
    pen = jnp.maximum(pen, 0.0)                       # (B, P)
    # TODO(synk): training-mode stochastic Dropout2d/Dropout not implemented (identity).

    # out = pen @ W_out^T + b_out as VPU multiply + lane reduce (avoid 1-wide MXU output)
    o_ref[...] = jnp.sum(pen * wout, axis=-1, keepdims=True) + bout   # (B, 1)


# ---------------------------------------------------------------------------
# Parameter creation (PyTorch layout) and packing into the fused kernel layout
# ---------------------------------------------------------------------------

def init_params(key):
    def u(k, shape, scale=0.1):
        return jax.random.uniform(k, shape, jnp.float32, -scale, scale)

    ks = iter(jax.random.split(key, 32))
    p = {"embedding": jax.random.normal(next(ks), (VOCAB, E), jnp.float32) * 0.1}

    def gru_dir(prefix, in_dim):
        p[f"w_ih_{prefix}"] = u(next(ks), (3 * H, in_dim))   # rows [r; z; n], torch layout
        p[f"w_hh_{prefix}"] = u(next(ks), (3 * H, H))
        p[f"b_ih_{prefix}"] = u(next(ks), (3 * H,))
        p[f"b_hh_{prefix}"] = u(next(ks), (3 * H,))

    gru_dir("l1f", E)
    gru_dir("l1b", E)
    gru_dir("l2f", 2 * H)
    gru_dir("l2b", 2 * H)

    p["attn1_w"] = u(next(ks), (2 * H, 1))
    p["attn2_w"] = u(next(ks), (2 * H, 1))
    p["linear_w"] = u(next(ks), (P, 8 * H))
    p["linear_b"] = u(next(ks), (P,))
    p["out_w"] = u(next(ks), (1, P))
    p["out_b"] = u(next(ks), (1,))
    return p


def _fuse_gru_layer(w_ih_f, w_hh_f, b_ih_f, b_hh_f, w_ih_b, w_hh_b, b_ih_b, b_hh_b):
    """Fuse fwd/bwd GRU weights into gate-major [r_f,r_b,z_f,z_b,n_f,n_b] layout."""
    def split3(w):
        return w[0:H], w[H:2 * H], w[2 * H:3 * H]

    def fuse_in(wf, wb):
        rf, zf, nf = split3(wf)
        rb, zb, nb = split3(wb)
        in_dim = wf.shape[1]
        Z = jnp.zeros((in_dim, H), jnp.float32)
        top = jnp.concatenate([rf.T, Z, zf.T, Z, nf.T, Z], axis=1)   # fwd input rows
        bot = jnp.concatenate([Z, rb.T, Z, zb.T, Z, nb.T], axis=1)   # bwd input rows
        return jnp.concatenate([top, bot], axis=0)                   # (2*in_dim, 6H)

    w_in = fuse_in(w_ih_f, w_ih_b)
    w_hh = fuse_in(w_hh_f, w_hh_b)                                   # block-diagonal (2H, 6H)

    irf, izf, inf_ = jnp.split(b_ih_f, 3)
    irb, izb, inb_ = jnp.split(b_ih_b, 3)
    hrf, hzf, hnf = jnp.split(b_hh_f, 3)
    hrb, hzb, hnb = jnp.split(b_hh_b, 3)
    # r/z gates: fold b_ih + b_hh; n gate: only b_ih (b_hh(n) stays inside r*(...)).
    b_in = jnp.concatenate([irf + hrf, irb + hrb, izf + hzf, izb + hzb, inf_, inb_])[None, :]
    b_hn = jnp.concatenate([hnf, hnb])[None, :]
    return w_in, w_hh, b_in, b_hn


def pack_params(p):
    w1, whh1, b1, bhn1 = _fuse_gru_layer(
        p["w_ih_l1f"], p["w_hh_l1f"], p["b_ih_l1f"], p["b_hh_l1f"],
        p["w_ih_l1b"], p["w_hh_l1b"], p["b_ih_l1b"], p["b_hh_l1b"])
    w2, whh2, b2, bhn2 = _fuse_gru_layer(
        p["w_ih_l2f"], p["w_hh_l2f"], p["b_ih_l2f"], p["b_hh_l2f"],
        p["w_ih_l2b"], p["w_hh_l2b"], p["b_ih_l2b"], p["b_hh_l2b"])

    # Permute layer-2 input-projection rows to match the in-kernel fused input
    # y2[i] = [hf1[i], hb1[L-1-i], hf1[L-1-i], hb1[i]]  (built without sub-slicing).
    w2 = jnp.concatenate([w2[0:H], w2[3 * H:4 * H], w2[2 * H:3 * H], w2[H:2 * H]], axis=0)

    # Fold embedding lookup + layer-1 input projection into two lookup tables:
    #   Ttop[v] = emb[v] @ W1_fwd + b1   (fused bias folded here)
    #   Tbot[v] = emb[v] @ W1_bwd
    emb = p["embedding"]
    ttop = jnp.dot(emb, w1[:E]) + b1                                  # (VOCAB, 6H)
    tbot = jnp.dot(emb, w1[E:2 * E])                                  # (VOCAB, 6H)
    pad = ((0, VOCAB_PAD - VOCAB), (0, 0))
    ttop = jnp.pad(ttop, pad).astype(jnp.float32)
    tbot = jnp.pad(tbot, pad).astype(jnp.float32)

    wbig = jnp.concatenate([whh1, w2, whh2], axis=0).astype(jnp.bfloat16)   # (8H, 6H)
    wlin = p["linear_w"].T.astype(jnp.bfloat16)                              # (8H, P)

    vec = jnp.zeros((8, 6 * H), jnp.float32)
    vec = vec.at[0, :].set(b2[0])
    vec = vec.at[1, 0:2 * H].set(bhn1[0])
    vec = vec.at[1, 2 * H:4 * H].set(bhn2[0])
    vec = vec.at[2, 0:2 * H].set(p["attn1_w"][:, 0])    # Attention.b is unused in torch forward
    vec = vec.at[2, 2 * H:4 * H].set(p["attn2_w"][:, 0])
    vec = vec.at[3, 0:P].set(p["linear_b"])
    vec = vec.at[3, P:2 * P].set(p["out_w"][0])
    vec = vec.at[3, 2 * P].set(p["out_b"][0])
    return ttop, tbot, wbig, wlin, vec


@jax.jit
def rnn_attn_forward(x_ids, ttop, tbot, wbig, wlin, vec):
    vmem = pl.BlockSpec(memory_space=pltpu.MemorySpace.VMEM)
    smem = pl.BlockSpec(memory_space=pltpu.MemorySpace.SMEM)
    out = pl.pallas_call(
        _rnn_attn_kernel,
        out_shape=jax.ShapeDtypeStruct((B, 1), jnp.float32),
        in_specs=[smem, vmem, vmem, vmem, vmem, vmem],
        out_specs=vmem,
        compiler_params=pltpu.CompilerParams(vmem_limit_bytes=16 << 20),
    )(x_ids.astype(jnp.int32), ttop, tbot, wbig, wlin, vec)

    return out[:, 0]   # matches torch `out.squeeze()` -> (B,)


if __name__ == "__main__":
    key = jax.random.PRNGKey(0)
    k_param, k_data = jax.random.split(key)

    params = init_params(k_param)
    ttop, tbot, wbig, wlin, vec = pack_params(params)
    x = jax.random.randint(k_data, (B, L), 0, VOCAB, dtype=jnp.int32)

    y = rnn_attn_forward(x, ttop, tbot, wbig, wlin, vec)
    y = jax.block_until_ready(y)

    assert y.shape == (B,), y.shape
    assert bool(jnp.all(jnp.isfinite(y)))
    print("KERNEL_OK")
</pallas_src>

<mosaic_0001>
module attributes {stable_mosaic.version = 11 : i64} {
  func.func @_rnn_attn_kernel(%arg0: memref<2x8xi32, #tpu.memory_space<smem>>, %arg1: memref<64x192xf32, #tpu.memory_space<vmem>>, %arg2: memref<64x192xf32, #tpu.memory_space<vmem>>, %arg3: memref<256x192xbf16, #tpu.memory_space<vmem>>, %arg4: memref<256x16xbf16, #tpu.memory_space<vmem>>, %arg5: memref<8x192xf32, #tpu.memory_space<vmem>>, %arg6: memref<2x1xf32, #tpu.memory_space<vmem>>) attributes {dimension_semantics = [], scalar_prefetch = 0 : i64, scratch_operands = 0 : i64, tpu.core_type = #tpu.core_type<tc>} {
    %c0 = arith.constant 0 : index
    %c0_0 = arith.constant 0 : index
    %0 = vector.load %arg3[%c0, %c0_0] : memref<256x192xbf16, #tpu.memory_space<vmem>>, vector<64x192xbf16>
    %c64 = arith.constant 64 : index
    %c0_1 = arith.constant 0 : index
    %1 = vector.load %arg3[%c64, %c0_1] : memref<256x192xbf16, #tpu.memory_space<vmem>>, vector<128x192xbf16>
    %c192 = arith.constant 192 : index
    %c0_2 = arith.constant 0 : index
    %2 = vector.load %arg3[%c192, %c0_2] : memref<256x192xbf16, #tpu.memory_space<vmem>>, vector<64x192xbf16>
    %c0_3 = arith.constant 0 : index
    %c0_4 = arith.constant 0 : index
    %3 = vector.load %arg5[%c0_3, %c0_4] : memref<8x192xf32, #tpu.memory_space<vmem>>, vector<1x192xf32>
    %c1 = arith.constant 1 : index
    %c0_5 = arith.constant 0 : index
    %4 = vector.load %arg5[%c1, %c0_5] : memref<8x192xf32, #tpu.memory_space<vmem>>, vector<1x64xf32>
    %c1_6 = arith.constant 1 : index
    %c64_7 = arith.constant 64 : index
    %5 = vector.load %arg5[%c1_6, %c64_7] : memref<8x192xf32, #tpu.memory_space<vmem>>, vector<1x64xf32>
    %c2 = arith.constant 2 : index
    %c0_8 = arith.constant 0 : index
    %6 = vector.load %arg5[%c2, %c0_8] : memref<8x192xf32, #tpu.memory_space<vmem>>, vector<1x64xf32>
    %c2_9 = arith.constant 2 : index
    %c64_10 = arith.constant 64 : index
    %7 = vector.load %arg5[%c2_9, %c64_10] : memref<8x192xf32, #tpu.memory_space<vmem>>, vector<1x64xf32>
    %c3 = arith.constant 3 : index
    %c0_11 = arith.constant 0 : index
    %8 = vector.load %arg5[%c3, %c0_11] : memref<8x192xf32, #tpu.memory_space<vmem>>, vector<1x16xf32>
    %c3_12 = arith.constant 3 : index
    %c16 = arith.constant 16 : index
    %9 = vector.load %arg5[%c3_12, %c16] : memref<8x192xf32, #tpu.memory_space<vmem>>, vector<1x16xf32>
    %c3_13 = arith.constant 3 : index
    %c32 = arith.constant 32 : index
    %10 = vector.load %arg5[%c3_13, %c32] : memref<8x192xf32, #tpu.memory_space<vmem>>, vector<1x1xf32>
    %c0_14 = arith.constant 0 : index
    %c0_15 = arith.constant 0 : index
    %11 = memref.load %arg0[%c0_14, %c0_15] : memref<2x8xi32, #tpu.memory_space<smem>>
    %c0_16 = arith.constant 0 : index
    %c7 = arith.constant 7 : index
    %12 = memref.load %arg0[%c0_16, %c7] : memref<2x8xi32, #tpu.memory_space<smem>>
    %13 = arith.index_cast %11 : i32 to index
    %c0_17 = arith.constant 0 : index
    %14 = vector.load %arg1[%13, %c0_17] : memref<64x192xf32, #tpu.memory_space<vmem>>, vector<1x192xf32>
    %15 = arith.index_cast %12 : i32 to index
    %c0_18 = arith.constant 0 : index
    %16 = vector.load %arg2[%15, %c0_18] : memref<64x192xf32, #tpu.memory_space<vmem>>, vector<1x192xf32>
    %17 = arith.addf %14, %16 : vector<1x192xf32>
    %c1_19 = arith.constant 1 : index
    %c0_20 = arith.constant 0 : index
    %18 = memref.load %arg0[%c1_19, %c0_20] : memref<2x8xi32, #tpu.memory_space<smem>>
    %c1_21 = arith.constant 1 : index
    %c7_22 = arith.constant 7 : index
    %19 = memref.load %arg0[%c1_21, %c7_22] : memref<2x8xi32, #tpu.memory_space<smem>>
    %20 = arith.index_cast %18 : i32 to index
    %c0_23 = arith.constant 0 : index
    %21 = vector.load %arg1[%20, %c0_23] : memref<64x192xf32, #tpu.memory_space<vmem>>, vector<1x192xf32>
    %22 = arith.index_cast %19 : i32 to index
    %c0_24 = arith.constant 0 : index
    %23 = vector.load %arg2[%22, %c0_24] : memref<64x192xf32, #tpu.memory_space<vmem>>, vector<1x192xf32>
    %24 = arith.addf %21, %23 : vector<1x192xf32>
    %25 = tpu.concatenate %17, %24 in 0 : vector<1x192xf32>, vector<1x192xf32> -> vector<2x192xf32>
    %c0_25 = arith.constant 0 : index
    %c1_26 = arith.constant 1 : index
    %26 = memref.load %arg0[%c0_25, %c1_26] : memref<2x8xi32, #tpu.memory_space<smem>>
    %c0_27 = arith.constant 0 : index
    %c6 = arith.constant 6 : index
    %27 = memref.load %arg0[%c0_27, %c6] : memref<2x8xi32, #tpu.memory_space<smem>>
    %28 = arith.index_cast %26 : i32 to index
    %c0_28 = arith.constant 0 : index
    %29 = vector.load %arg1[%28, %c0_28] : memref<64x192xf32, #tpu.memory_space<vmem>>, vector<1x192xf32>
    %30 = arith.index_cast %27 : i32 to index
    %c0_29 = arith.constant 0 : index
    %31 = vector.load %arg2[%30, %c0_29] : memref<64x192xf32, #tpu.memory_space<vmem>>, vector<1x192xf32>
    %32 = arith.addf %29, %31 : vector<1x192xf32>
    %c1_30 = arith.constant 1 : index
    %c1_31 = arith.constant 1 : index
    %33 = memref.load %arg0[%c1_30, %c1_31] : memref<2x8xi32, #tpu.memory_space<smem>>
    %c1_32 = arith.constant 1 : index
    %c6_33 = arith.constant 6 : index
    %34 = memref.load %arg0[%c1_32, %c6_33] : memref<2x8xi32, #tpu.memory_space<smem>>
    %35 = arith.index_cast %33 : i32 to index
    %c0_34 = arith.constant 0 : index
    %36 = vector.load %arg1[%35, %c0_34] : memref<64x192xf32, #tpu.memory_space<vmem>>, vector<1x192xf32>
    %37 = arith.index_cast %34 : i32 to index
    %c0_35 = arith.constant 0 : index
    %38 = vector.load %arg2[%37, %c0_35] : memref<64x192xf32, #tpu.memory_space<vmem>>, vector<1x192xf32>
    %39 = arith.addf %36, %38 : vector<1x192xf32>
    %40 = tpu.concatenate %32, %39 in 0 : vector<1x192xf32>, vector<1x192xf32> -> vector<2x192xf32>
    %c0_36 = arith.constant 0 : index
    %c2_37 = arith.constant 2 : index
    %41 = memref.load %arg0[%c0_36, %c2_37] : memref<2x8xi32, #tpu.memory_space<smem>>
    %c0_38 = arith.constant 0 : index
    %c5 = arith.constant 5 : index
    %42 = memref.load %arg0[%c0_38, %c5] : memref<2x8xi32, #tpu.memory_space<smem>>
    %43 = arith.index_cast %41 : i32 to index
    %c0_39 = arith.constant 0 : index
    %44 = vector.load %arg1[%43, %c0_39] : memref<64x192xf32, #tpu.memory_space<vmem>>, vector<1x192xf32>
    %45 = arith.index_cast %42 : i32 to index
    %c0_40 = arith.constant 0 : index
    %46 = vector.load %arg2[%45, %c0_40] : memref<64x192xf32, #tpu.memory_space<vmem>>, vector<1x192xf32>
    %47 = arith.addf %44, %46 : vector<1x192xf32>
    %c1_41 = arith.constant 1 : index
    %c2_42 = arith.constant 2 : index
    %48 = memref.load %arg0[%c1_41, %c2_42] : memref<2x8xi32, #tpu.memory_space<smem>>
    %c1_43 = arith.constant 1 : index
    %c5_44 = arith.constant 5 : index
    %49 = memref.load %arg0[%c1_43, %c5_44] : memref<2x8xi32, #tpu.memory_space<smem>>
    %50 = arith.index_cast %48 : i32 to index
    %c0_45 = arith.constant 0 : index
    %51 = vector.load %arg1[%50, %c0_45] : memref<64x192xf32, #tpu.memory_space<vmem>>, vector<1x192xf32>
    %52 = arith.index_cast %49 : i32 to index
    %c0_46 = arith.constant 0 : index
    %53 = vector.load %arg2[%52, %c0_46] : memref<64x192xf32, #tpu.memory_space<vmem>>, vector<1x192xf32>
    %54 = arith.addf %51, %53 : vector<1x192xf32>
    %55 = tpu.concatenate %47, %54 in 0 : vector<1x192xf32>, vector<1x192xf32> -> vector<2x192xf32>
    %c0_47 = arith.constant 0 : index
    %c3_48 = arith.constant 3 : index
    %56 = memref.load %arg0[%c0_47, %c3_48] : memref<2x8xi32, #tpu.memory_space<smem>>
    %c0_49 = arith.constant 0 : index
    %c4 = arith.constant 4 : index
    %57 = memref.load %arg0[%c0_49, %c4] : memref<2x8xi32, #tpu.memory_space<smem>>
    %58 = arith.index_cast %56 : i32 to index
    %c0_50 = arith.constant 0 : index
    %59 = vector.load %arg1[%58, %c0_50] : memref<64x192xf32, #tpu.memory_space<vmem>>, vector<1x192xf32>
    %60 = arith.index_cast %57 : i32 to index
    %c0_51 = arith.constant 0 : index
    %61 = vector.load %arg2[%60, %c0_51] : memref<64x192xf32, #tpu.memory_space<vmem>>, vector<1x192xf32>
    %62 = arith.addf %59, %61 : vector<1x192xf32>
    %c1_52 = arith.constant 1 : index
    %c3_53 = arith.constant 3 : index
    %63 = memref.load %arg0[%c1_52, %c3_53] : memref<2x8xi32, #tpu.memory_space<smem>>
    %c1_54 = arith.constant 1 : index
    %c4_55 = arith.constant 4 : index
    %64 = memref.load %arg0[%c1_54, %c4_55] : memref<2x8xi32, #tpu.memory_space<smem>>
    %65 = arith.index_cast %63 : i32 to index
    %c0_56 = arith.constant 0 : index
    %66 = vector.load %arg1[%65, %c0_56] : memref<64x192xf32, #tpu.memory_space<vmem>>, vector<1x192xf32>
    %67 = arith.index_cast %64 : i32 to index
    %c0_57 = arith.constant 0 : index
    %68 = vector.load %arg2[%67, %c0_57] : memref<64x192xf32, #tpu.memory_space<vmem>>, vector<1x192xf32>
    %69 = arith.addf %66, %68 : vector<1x192xf32>
    %70 = tpu.concatenate %62, %69 in 0 : vector<1x192xf32>, vector<1x192xf32> -> vector<2x192xf32>
    %c0_58 = arith.constant 0 : index
    %c4_59 = arith.constant 4 : index
    %71 = memref.load %arg0[%c0_58, %c4_59] : memref<2x8xi32, #tpu.memory_space<smem>>
    %c0_60 = arith.constant 0 : index
    %c3_61 = arith.constant 3 : index
    %72 = memref.load %arg0[%c0_60, %c3_61] : memref<2x8xi32, #tpu.memory_space<smem>>
    %73 = arith.index_cast %71 : i32 to index
    %c0_62 = arith.constant 0 : index
    %74 = vector.load %arg1[%73, %c0_62] : memref<64x192xf32, #tpu.memory_space<vmem>>, vector<1x192xf32>
    %75 = arith.index_cast %72 : i32 to index
    %c0_63 = arith.constant 0 : index
    %76 = vector.load %arg2[%75, %c0_63] : memref<64x192xf32, #tpu.memory_space<vmem>>, vector<1x192xf32>
    %77 = arith.addf %74, %76 : vector<1x192xf32>
    %c1_64 = arith.constant 1 : index
    %c4_65 = arith.constant 4 : index
    %78 = memref.load %arg0[%c1_64, %c4_65] : memref<2x8xi32, #tpu.memory_space<smem>>
    %c1_66 = arith.constant 1 : index
    %c3_67 = arith.constant 3 : index
    %79 = memref.load %arg0[%c1_66, %c3_67] : memref<2x8xi32, #tpu.memory_space<smem>>
    %80 = arith.index_cast %78 : i32 to index
    %c0_68 = arith.constant 0 : index
    %81 = vector.load %arg1[%80, %c0_68] : memref<64x192xf32, #tpu.memory_space<vmem>>, vector<1x192xf32>
    %82 = arith.index_cast %79 : i32 to index
    %c0_69 = arith.constant 0 : index
    %83 = vector.load %arg2[%82, %c0_69] : memref<64x192xf32, #tpu.memory_space<vmem>>, vector<1x192xf32>
    %84 = arith.addf %81, %83 : vector<1x192xf32>
    %85 = tpu.concatenate %77, %84 in 0 : vector<1x192xf32>, vector<1x192xf32> -> vector<2x192xf32>
    %c0_70 = arith.constant 0 : index
    %c5_71 = arith.constant 5 : index
    %86 = memref.load %arg0[%c0_70, %c5_71] : memref<2x8xi32, #tpu.memory_space<smem>>
    %c0_72 = arith.constant 0 : index
    %c2_73 = arith.constant 2 : index
    %87 = memref.load %arg0[%c0_72, %c2_73] : memref<2x8xi32, #tpu.memory_space<smem>>
    %88 = arith.index_cast %86 : i32 to index
    %c0_74 = arith.constant 0 : index
    %89 = vector.load %arg1[%88, %c0_74] : memref<64x192xf32, #tpu.memory_space<vmem>>, vector<1x192xf32>
    %90 = arith.index_cast %87 : i32 to index
    %c0_75 = arith.constant 0 : index
    %91 = vector.load %arg2[%90, %c0_75] : memref<64x192xf32, #tpu.memory_space<vmem>>, vector<1x192xf32>
    %92 = arith.addf %89, %91 : vector<1x192xf32>
    %c1_76 = arith.constant 1 : index
    %c5_77 = arith.constant 5 : index
    %93 = memref.load %arg0[%c1_76, %c5_77] : memref<2x8xi32, #tpu.memory_space<smem>>
    %c1_78 = arith.constant 1 : index
    %c2_79 = arith.constant 2 : index
    %94 = memref.load %arg0[%c1_78, %c2_79] : memref<2x8xi32, #tpu.memory_space<smem>>
    %95 = arith.index_cast %93 : i32 to index
    %c0_80 = arith.constant 0 : index
    %96 = vector.load %arg1[%95, %c0_80] : memref<64x192xf32, #tpu.memory_space<vmem>>, vector<1x192xf32>
    %97 = arith.index_cast %94 : i32 to index
    %c0_81 = arith.constant 0 : index
    %98 = vector.load %arg2[%97, %c0_81] : memref<64x192xf32, #tpu.memory_space<vmem>>, vector<1x192xf32>
    %99 = arith.addf %96, %98 : vector<1x192xf32>
    %100 = tpu.concatenate %92, %99 in 0 : vector<1x192xf32>, vector<1x192xf32> -> vector<2x192xf32>
    %c0_82 = arith.constant 0 : index
    %c6_83 = arith.constant 6 : index
    %101 = memref.load %arg0[%c0_82, %c6_83] : memref<2x8xi32, #tpu.memory_space<smem>>
    %c0_84 = arith.constant 0 : index
    %c1_85 = arith.constant 1 : index
    %102 = memref.load %arg0[%c0_84, %c1_85] : memref<2x8xi32, #tpu.memory_space<smem>>
    %103 = arith.index_cast %101 : i32 to index
    %c0_86 = arith.constant 0 : index
    %104 = vector.load %arg1[%103, %c0_86] : memref<64x192xf32, #tpu.memory_space<vmem>>, vector<1x192xf32>
    %105 = arith.index_cast %102 : i32 to index
    %c0_87 = arith.constant 0 : index
    %106 = vector.load %arg2[%105, %c0_87] : memref<64x192xf32, #tpu.memory_space<vmem>>, vector<1x192xf32>
    %107 = arith.addf %104, %106 : vector<1x192xf32>
    %c1_88 = arith.constant 1 : index
    %c6_89 = arith.constant 6 : index
    %108 = memref.load %arg0[%c1_88, %c6_89] : memref<2x8xi32, #tpu.memory_space<smem>>
    %c1_90 = arith.constant 1 : index
    %c1_91 = arith.constant 1 : index
    %109 = memref.load %arg0[%c1_90, %c1_91] : memref<2x8xi32, #tpu.memory_space<smem>>
    %110 = arith.index_cast %108 : i32 to index
    %c0_92 = arith.constant 0 : index
    %111 = vector.load %arg1[%110, %c0_92] : memref<64x192xf32, #tpu.memory_space<vmem>>, vector<1x192xf32>
    %112 = arith.index_cast %109 : i32 to index
    %c0_93 = arith.constant 0 : index
    %113 = vector.load %arg2[%112, %c0_93] : memref<64x192xf32, #tpu.memory_space<vmem>>, vector<1x192xf32>
    %114 = arith.addf %111, %113 : vector<1x192xf32>
    %115 = tpu.concatenate %107, %114 in 0 : vector<1x192xf32>, vector<1x192xf32> -> vector<2x192xf32>
    %c0_94 = arith.constant 0 : index
    %c7_95 = arith.constant 7 : index
    %116 = memref.load %arg0[%c0_94, %c7_95] : memref<2x8xi32, #tpu.memory_space<smem>>
    %c0_96 = arith.constant 0 : index
    %c0_97 = arith.constant 0 : index
    %117 = memref.load %arg0[%c0_96, %c0_97] : memref<2x8xi32, #tpu.memory_space<smem>>
    %118 = arith.index_cast %116 : i32 to index
    %c0_98 = arith.constant 0 : index
    %119 = vector.load %arg1[%118, %c0_98] : memref<64x192xf32, #tpu.memory_space<vmem>>, vector<1x192xf32>
    %120 = arith.index_cast %117 : i32 to index
    %c0_99 = arith.constant 0 : index
    %121 = vector.load %arg2[%120, %c0_99] : memref<64x192xf32, #tpu.memory_space<vmem>>, vector<1x192xf32>
    %122 = arith.addf %119, %121 : vector<1x192xf32>
    %c1_100 = arith.constant 1 : index
    %c7_101 = arith.constant 7 : index
    %123 = memref.load %arg0[%c1_100, %c7_101] : memref<2x8xi32, #tpu.memory_space<smem>>
    %c1_102 = arith.constant 1 : index
    %c0_103 = arith.constant 0 : index
    %124 = memref.load %arg0[%c1_102, %c0_103] : memref<2x8xi32, #tpu.memory_space<smem>>
    %125 = arith.index_cast %123 : i32 to index
    %c0_104 = arith.constant 0 : index
    %126 = vector.load %arg1[%125, %c0_104] : memref<64x192xf32, #tpu.memory_space<vmem>>, vector<1x192xf32>
    %127 = arith.index_cast %124 : i32 to index
    %c0_105 = arith.constant 0 : index
    %128 = vector.load %arg2[%127, %c0_105] : memref<64x192xf32, #tpu.memory_space<vmem>>, vector<1x192xf32>
    %129 = arith.addf %126, %128 : vector<1x192xf32>
    %130 = tpu.concatenate %122, %129 in 0 : vector<1x192xf32>, vector<1x192xf32> -> vector<2x192xf32>
    %cst = arith.constant 0.000000e+00 : f32
    %131 = vector.broadcast %cst : f32 to vector<2x64xf32>
    %132 = arith.truncf %131 : vector<2x64xf32> to vector<2x64xbf16>
    %cst_106 = arith.constant dense<0.000000e+00> : vector<2x192xf32>
    %133 = tpu.matmul %132, %0, %cst_106 {dimension_numbers = #tpu.dot_dimension_numbers<[1], [0], [0], [1], [0, 0, 1, 1], [], []>} : vector<2x64xbf16>, vector<64x192xbf16>, vector<2x192xf32> -> vector<2x192xf32>
    %134 = vector.extract_strided_slice %25 {offsets = [0, 0], sizes = [2, 128], strides = [1, 1]} : vector<2x192xf32> to vector<2x128xf32>
    %135 = vector.extract_strided_slice %133 {offsets = [0, 0], sizes = [2, 128], strides = [1, 1]} : vector<2x192xf32> to vector<2x128xf32>
    %136 = arith.addf %134, %135 : vector<2x128xf32>
    %137 = arith.negf %136 : vector<2x128xf32>
    %138 = math.exp %137 : vector<2x128xf32>
    %cst_107 = arith.constant 1.000000e+00 : f32
    %139 = vector.broadcast %cst_107 : f32 to vector<2x128xf32>
    %140 = arith.addf %139, %138 : vector<2x128xf32>
    %141 = arith.divf %139, %140 : vector<2x128xf32>
    %142 = vector.extract_strided_slice %141 {offsets = [0, 0], sizes = [2, 64], strides = [1, 1]} : vector<2x128xf32> to vector<2x64xf32>
    %143 = vector.extract_strided_slice %141 {offsets = [0, 64], sizes = [2, 64], strides = [1, 1]} : vector<2x128xf32> to vector<2x64xf32>
    %144 = vector.extract_strided_slice %25 {offsets = [0, 128], sizes = [2, 64], strides = [1, 1]} : vector<2x192xf32> to vector<2x64xf32>
    %145 = vector.extract_strided_slice %133 {offsets = [0, 128], sizes = [2, 64], strides = [1, 1]} : vector<2x192xf32> to vector<2x64xf32>
    %146 = vector.broadcast %4 : vector<1x64xf32> to vector<2x64xf32>
    %147 = arith.addf %145, %146 : vector<2x64xf32>
    %148 = arith.mulf %142, %147 : vector<2x64xf32>
    %149 = arith.addf %144, %148 : vector<2x64xf32>
    %150 = math.tanh %149 : vector<2x64xf32>
    %cst_108 = arith.constant 1.000000e+00 : f32
    %151 = vector.broadcast %cst_108 : f32 to vector<2x64xf32>
    %152 = arith.subf %151, %143 : vector<2x64xf32>
    %153 = arith.mulf %152, %150 : vector<2x64xf32>
    %154 = arith.mulf %143, %131 : vector<2x64xf32>
    %155 = arith.addf %153, %154 : vector<2x64xf32>
    %156 = arith.truncf %155 : vector<2x64xf32> to vector<2x64xbf16>
    %cst_109 = arith.constant dense<0.000000e+00> : vector<2x192xf32>
    %157 = tpu.matmul %156, %0, %cst_109 {dimension_numbers = #tpu.dot_dimension_numbers<[1], [0], [0], [1], [0, 0, 1, 1], [], []>} : vector<2x64xbf16>, vector<64x192xbf16>, vector<2x192xf32> -> vector<2x192xf32>
    %158 = vector.extract_strided_slice %40 {offsets = [0, 0], sizes = [2, 128], strides = [1, 1]} : vector<2x192xf32> to vector<2x128xf32>
    %159 = vector.extract_strided_slice %157 {offsets = [0, 0], sizes = [2, 128], strides = [1, 1]} : vector<2x192xf32> to vector<2x128xf32>
    %160 = arith.addf %158, %159 : vector<2x128xf32>
    %161 = arith.negf %160 : vector<2x128xf32>
    %162 = math.exp %161 : vector<2x128xf32>
    %cst_110 = arith.constant 1.000000e+00 : f32
    %163 = vector.broadcast %cst_110 : f32 to vector<2x128xf32>
    %164 = arith.addf %163, %162 : vector<2x128xf32>
    %165 = arith.divf %163, %164 : vector<2x128xf32>
    %166 = vector.extract_strided_slice %165 {offsets = [0, 0], sizes = [2, 64], strides = [1, 1]} : vector<2x128xf32> to vector<2x64xf32>
    %167 = vector.extract_strided_slice %165 {offsets = [0, 64], sizes = [2, 64], strides = [1, 1]} : vector<2x128xf32> to vector<2x64xf32>
    %168 = vector.extract_strided_slice %40 {offsets = [0, 128], sizes = [2, 64], strides = [1, 1]} : vector<2x192xf32> to vector<2x64xf32>
    %169 = vector.extract_strided_slice %157 {offsets = [0, 128], sizes = [2, 64], strides = [1, 1]} : vector<2x192xf32> to vector<2x64xf32>
    %170 = vector.broadcast %4 : vector<1x64xf32> to vector<2x64xf32>
    %171 = arith.addf %169, %170 : vector<2x64xf32>
    %172 = arith.mulf %166, %171 : vector<2x64xf32>
    %173 = arith.addf %168, %172 : vector<2x64xf32>
    %174 = math.tanh %173 : vector<2x64xf32>
    %cst_111 = arith.constant 1.000000e+00 : f32
    %175 = vector.broadcast %cst_111 : f32 to vector<2x64xf32>
    %176 = arith.subf %175, %167 : vector<2x64xf32>
    %177 = arith.mulf %176, %174 : vector<2x64xf32>
    %178 = arith.mulf %167, %155 : vector<2x64xf32>
    %179 = arith.addf %177, %178 : vector<2x64xf32>
    %180 = arith.truncf %179 : vector<2x64xf32> to vector<2x64xbf16>
    %cst_112 = arith.constant dense<0.000000e+00> : vector<2x192xf32>
    %181 = tpu.matmul %180, %0, %cst_112 {dimension_numbers = #tpu.dot_dimension_numbers<[1], [0], [0], [1], [0, 0, 1, 1], [], []>} : vector<2x64xbf16>, vector<64x192xbf16>, vector<2x192xf32> -> vector<2x192xf32>
    %182 = vector.extract_strided_slice %55 {offsets = [0, 0], sizes = [2, 128], strides = [1, 1]} : vector<2x192xf32> to vector<2x128xf32>
    %183 = vector.extract_strided_slice %181 {offsets = [0, 0], sizes = [2, 128], strides = [1, 1]} : vector<2x192xf32> to vector<2x128xf32>
    %184 = arith.addf %182, %183 : vector<2x128xf32>
    %185 = arith.negf %184 : vector<2x128xf32>
    %186 = math.exp %185 : vector<2x128xf32>
    %cst_113 = arith.constant 1.000000e+00 : f32
    %187 = vector.broadcast %cst_113 : f32 to vector<2x128xf32>
    %188 = arith.addf %187, %186 : vector<2x128xf32>
    %189 = arith.divf %187, %188 : vector<2x128xf32>
    %190 = vector.extract_strided_slice %189 {offsets = [0, 0], sizes = [2, 64], strides = [1, 1]} : vector<2x128xf32> to vector<2x64xf32>
    %191 = vector.extract_strided_slice %189 {offsets = [0, 64], sizes = [2, 64], strides = [1, 1]} : vector<2x128xf32> to vector<2x64xf32>
    %192 = vector.extract_strided_slice %55 {offsets = [0, 128], sizes = [2, 64], strides = [1, 1]} : vector<2x192xf32> to vector<2x64xf32>
    %193 = vector.extract_strided_slice %181 {offsets = [0, 128], sizes = [2, 64], strides = [1, 1]} : vector<2x192xf32> to vector<2x64xf32>
    %194 = vector.broadcast %4 : vector<1x64xf32> to vector<2x64xf32>
    %195 = arith.addf %193, %194 : vector<2x64xf32>
    %196 = arith.mulf %190, %195 : vector<2x64xf32>
    %197 = arith.addf %192, %196 : vector<2x64xf32>
    %198 = math.tanh %197 : vector<2x64xf32>
    %cst_114 = arith.constant 1.000000e+00 : f32
    %199 = vector.broadcast %cst_114 : f32 to vector<2x64xf32>
    %200 = arith.subf %199, %191 : vector<2x64xf32>
    %201 = arith.mulf %200, %198 : vector<2x64xf32>
    %202 = arith.mulf %191, %179 : vector<2x64xf32>
    %203 = arith.addf %201, %202 : vector<2x64xf32>
    %204 = arith.truncf %203 : vector<2x64xf32> to vector<2x64xbf16>
    %cst_115 = arith.constant dense<0.000000e+00> : vector<2x192xf32>
    %205 = tpu.matmul %204, %0, %cst_115 {dimension_numbers = #tpu.dot_dimension_numbers<[1], [0], [0], [1], [0, 0, 1, 1], [], []>} : vector<2x64xbf16>, vector<64x192xbf16>, vector<2x192xf32> -> vector<2x192xf32>
    %206 = vector.extract_strided_slice %70 {offsets = [0, 0], sizes = [2, 128], strides = [1, 1]} : vector<2x192xf32> to vector<2x128xf32>
    %207 = vector.extract_strided_slice %205 {offsets = [0, 0], sizes = [2, 128], strides = [1, 1]} : vector<2x192xf32> to vector<2x128xf32>
    %208 = arith.addf %206, %207 : vector<2x128xf32>
    %209 = arith.negf %208 : vector<2x128xf32>
    %210 = math.exp %209 : vector<2x128xf32>
    %cst_116 = arith.constant 1.000000e+00 : f32
    %211 = vector.broadcast %cst_116 : f32 to vector<2x128xf32>
    %212 = arith.addf %211, %210 : vector<2x128xf32>
    %213 = arith.divf %211, %212 : vector<2x128xf32>
    %214 = vector.extract_strided_slice %213 {offsets = [0, 0], sizes = [2, 64], strides = [1, 1]} : vector<2x128xf32> to vector<2x64xf32>
    %215 = vector.extract_strided_slice %213 {offsets = [0, 64], sizes = [2, 64], strides = [1, 1]} : vector<2x128xf32> to vector<2x64xf32>
    %216 = vector.extract_strided_slice %70 {offsets = [0, 128], sizes = [2, 64], strides = [1, 1]} : vector<2x192xf32> to vector<2x64xf32>
    %217 = vector.extract_strided_slice %205 {offsets = [0, 128], sizes = [2, 64], strides = [1, 1]} : vector<2x192xf32> to vector<2x64xf32>
    %218 = vector.broadcast %4 : vector<1x64xf32> to vector<2x64xf32>
    %219 = arith.addf %217, %218 : vector<2x64xf32>
    %220 = arith.mulf %214, %219 : vector<2x64xf32>
    %221 = arith.addf %216, %220 : vector<2x64xf32>
    %222 = math.tanh %221 : vector<2x64xf32>
    %cst_117 = arith.constant 1.000000e+00 : f32
    %223 = vector.broadcast %cst_117 : f32 to vector<2x64xf32>
    %224 = arith.subf %223, %215 : vector<2x64xf32>
    %225 = arith.mulf %224, %222 : vector<2x64xf32>
    %226 = arith.mulf %215, %203 : vector<2x64xf32>
    %227 = arith.addf %225, %226 : vector<2x64xf32>
    %228 = arith.truncf %227 : vector<2x64xf32> to vector<2x64xbf16>
    %cst_118 = arith.constant dense<0.000000e+00> : vector<2x192xf32>
    %229 = tpu.matmul %228, %0, %cst_118 {dimension_numbers = #tpu.dot_dimension_numbers<[1], [0], [0], [1], [0, 0, 1, 1], [], []>} : vector<2x64xbf16>, vector<64x192xbf16>, vector<2x192xf32> -> vector<2x192xf32>
    %230 = vector.extract_strided_slice %85 {offsets = [0, 0], sizes = [2, 128], strides = [1, 1]} : vector<2x192xf32> to vector<2x128xf32>
    %231 = vector.extract_strided_slice %229 {offsets = [0, 0], sizes = [2, 128], strides = [1, 1]} : vector<2x192xf32> to vector<2x128xf32>
    %232 = arith.addf %230, %231 : vector<2x128xf32>
    %233 = arith.negf %232 : vector<2x128xf32>
    %234 = math.exp %233 : vector<2x128xf32>
    %cst_119 = arith.constant 1.000000e+00 : f32
    %235 = vector.broadcast %cst_119 : f32 to vector<2x128xf32>
    %236 = arith.addf %235, %234 : vector<2x128xf32>
    %237 = arith.divf %235, %236 : vector<2x128xf32>
    %238 = vector.extract_strided_slice %237 {offsets = [0, 0], sizes = [2, 64], strides = [1, 1]} : vector<2x128xf32> to vector<2x64xf32>
    %239 = vector.extract_strided_slice %237 {offsets = [0, 64], sizes = [2, 64], strides = [1, 1]} : vector<2x128xf32> to vector<2x64xf32>
    %240 = vector.extract_strided_slice %85 {offsets = [0, 128], sizes = [2, 64], strides = [1, 1]} : vector<2x192xf32> to vector<2x64xf32>
    %241 = vector.extract_strided_slice %229 {offsets = [0, 128], sizes = [2, 64], strides = [1, 1]} : vector<2x192xf32> to vector<2x64xf32>
    %242 = vector.broadcast %4 : vector<1x64xf32> to vector<2x64xf32>
    %243 = arith.addf %241, %242 : vector<2x64xf32>
    %244 = arith.mulf %238, %243 : vector<2x64xf32>
    %245 = arith.addf %240, %244 : vector<2x64xf32>
    %246 = math.tanh %245 : vector<2x64xf32>
    %cst_120 = arith.constant 1.000000e+00 : f32
    %247 = vector.broadcast %cst_120 : f32 to vector<2x64xf32>
    %248 = arith.subf %247, %239 : vector<2x64xf32>
    %249 = arith.mulf %248, %246 : vector<2x64xf32>
    %250 = arith.mulf %239, %227 : vector<2x64xf32>
    %251 = arith.addf %249, %250 : vector<2x64xf32>
    %252 = arith.truncf %251 : vector<2x64xf32> to vector<2x64xbf16>
    %cst_121 = arith.constant dense<0.000000e+00> : vector<2x192xf32>
    %253 = tpu.matmul %252, %0, %cst_121 {dimension_numbers = #tpu.dot_dimension_numbers<[1], [0], [0], [1], [0, 0, 1, 1], [], []>} : vector<2x64xbf16>, vector<64x192xbf16>, vector<2x192xf32> -> vector<2x192xf32>
    %254 = vector.extract_strided_slice %100 {offsets = [0, 0], sizes = [2, 128], strides = [1, 1]} : vector<2x192xf32> to vector<2x128xf32>
    %255 = vector.extract_strided_slice %253 {offsets = [0, 0], sizes = [2, 128], strides = [1, 1]} : vector<2x192xf32> to vector<2x128xf32>
    %256 = arith.addf %254, %255 : vector<2x128xf32>
    %257 = arith.negf %256 : vector<2x128xf32>
    %258 = math.exp %257 : vector<2x128xf32>
    %cst_122 = arith.constant 1.000000e+00 : f32
    %259 = vector.broadcast %cst_122 : f32 to vector<2x128xf32>
    %260 = arith.addf %259, %258 : vector<2x128xf32>
    %261 = arith.divf %259, %260 : vector<2x128xf32>
    %262 = vector.extract_strided_slice %261 {offsets = [0, 0], sizes = [2, 64], strides = [1, 1]} : vector<2x128xf32> to vector<2x64xf32>
    %263 = vector.extract_strided_slice %261 {offsets = [0, 64], sizes = [2, 64], strides = [1, 1]} : vector<2x128xf32> to vector<2x64xf32>
    %264 = vector.extract_strided_slice %100 {offsets = [0, 128], sizes = [2, 64], strides = [1, 1]} : vector<2x192xf32> to vector<2x64xf32>
    %265 = vector.extract_strided_slice %253 {offsets = [0, 128], sizes = [2, 64], strides = [1, 1]} : vector<2x192xf32> to vector<2x64xf32>
    %266 = vector.broadcast %4 : vector<1x64xf32> to vector<2x64xf32>
    %267 = arith.addf %265, %266 : vector<2x64xf32>
    %268 = arith.mulf %262, %267 : vector<2x64xf32>
    %269 = arith.addf %264, %268 : vector<2x64xf32>
    %270 = math.tanh %269 : vector<2x64xf32>
    %cst_123 = arith.constant 1.000000e+00 : f32
    %271 = vector.broadcast %cst_123 : f32 to vector<2x64xf32>
    %272 = arith.subf %271, %263 : vector<2x64xf32>
    %273 = arith.mulf %272, %270 : vector<2x64xf32>
    %274 = arith.mulf %263, %251 : vector<2x64xf32>
    %275 = arith.addf %273, %274 : vector<2x64xf32>
    %276 = arith.truncf %275 : vector<2x64xf32> to vector<2x64xbf16>
    %cst_124 = arith.constant dense<0.000000e+00> : vector<2x192xf32>
    %277 = tpu.matmul %276, %0, %cst_124 {dimension_numbers = #tpu.dot_dimension_numbers<[1], [0], [0], [1], [0, 0, 1, 1], [], []>} : vector<2x64xbf16>, vector<64x192xbf16>, vector<2x192xf32> -> vector<2x192xf32>
    %278 = vector.extract_strided_slice %115 {offsets = [0, 0], sizes = [2, 128], strides = [1, 1]} : vector<2x192xf32> to vector<2x128xf32>
    %279 = vector.extract_strided_slice %277 {offsets = [0, 0], sizes = [2, 128], strides = [1, 1]} : vector<2x192xf32> to vector<2x128xf32>
    %280 = arith.addf %278, %279 : vector<2x128xf32>
    %281 = arith.negf %280 : vector<2x128xf32>
    %282 = math.exp %281 : vector<2x128xf32>
    %cst_125 = arith.constant 1.000000e+00 : f32
    %283 = vector.broadcast %cst_125 : f32 to vector<2x128xf32>
    %284 = arith.addf %283, %282 : vector<2x128xf32>
    %285 = arith.divf %283, %284 : vector<2x128xf32>
    %286 = vector.extract_strided_slice %285 {offsets = [0, 0], sizes = [2, 64], strides = [1, 1]} : vector<2x128xf32> to vector<2x64xf32>
    %287 = vector.extract_strided_slice %285 {offsets = [0, 64], sizes = [2, 64], strides = [1, 1]} : vector<2x128xf32> to vector<2x64xf32>
    %288 = vector.extract_strided_slice %115 {offsets = [0, 128], sizes = [2, 64], strides = [1, 1]} : vector<2x192xf32> to vector<2x64xf32>
    %289 = vector.extract_strided_slice %277 {offsets = [0, 128], sizes = [2, 64], strides = [1, 1]} : vector<2x192xf32> to vector<2x64xf32>
    %290 = vector.broadcast %4 : vector<1x64xf32> to vector<2x64xf32>
    %291 = arith.addf %289, %290 : vector<2x64xf32>
    %292 = arith.mulf %286, %291 : vector<2x64xf32>
    %293 = arith.addf %288, %292 : vector<2x64xf32>
    %294 = math.tanh %293 : vector<2x64xf32>
    %cst_126 = arith.constant 1.000000e+00 : f32
    %295 = vector.broadcast %cst_126 : f32 to vector<2x64xf32>
    %296 = arith.subf %295, %287 : vector<2x64xf32>
    %297 = arith.mulf %296, %294 : vector<2x64xf32>
    %298 = arith.mulf %287, %275 : vector<2x64xf32>
    %299 = arith.addf %297, %298 : vector<2x64xf32>
    %300 = arith.truncf %299 : vector<2x64xf32> to vector<2x64xbf16>
    %cst_127 = arith.constant dense<0.000000e+00> : vector<2x192xf32>
    %301 = tpu.matmul %300, %0, %cst_127 {dimension_numbers = #tpu.dot_dimension_numbers<[1], [0], [0], [1], [0, 0, 1, 1], [], []>} : vector<2x64xbf16>, vector<64x192xbf16>, vector<2x192xf32> -> vector<2x192xf32>
    %302 = vector.extract_strided_slice %130 {offsets = [0, 0], sizes = [2, 128], strides = [1, 1]} : vector<2x192xf32> to vector<2x128xf32>
    %303 = vector.extract_strided_slice %301 {offsets = [0, 0], sizes = [2, 128], strides = [1, 1]} : vector<2x192xf32> to vector<2x128xf32>
    %304 = arith.addf %302, %303 : vector<2x128xf32>
    %305 = arith.negf %304 : vector<2x128xf32>
    %306 = math.exp %305 : vector<2x128xf32>
    %cst_128 = arith.constant 1.000000e+00 : f32
    %307 = vector.broadcast %cst_128 : f32 to vector<2x128xf32>
    %308 = arith.addf %307, %306 : vector<2x128xf32>
    %309 = arith.divf %307, %308 : vector<2x128xf32>
    %310 = vector.extract_strided_slice %309 {offsets = [0, 0], sizes = [2, 64], strides = [1, 1]} : vector<2x128xf32> to vector<2x64xf32>
    %311 = vector.extract_strided_slice %309 {offsets = [0, 64], sizes = [2, 64], strides = [1, 1]} : vector<2x128xf32> to vector<2x64xf32>
    %312 = vector.extract_strided_slice %130 {offsets = [0, 128], sizes = [2, 64], strides = [1, 1]} : vector<2x192xf32> to vector<2x64xf32>
    %313 = vector.extract_strided_slice %301 {offsets = [0, 128], sizes = [2, 64], strides = [1, 1]} : vector<2x192xf32> to vector<2x64xf32>
    %314 = vector.broadcast %4 : vector<1x64xf32> to vector<2x64xf32>
    %315 = arith.addf %313, %314 : vector<2x64xf32>
    %316 = arith.mulf %310, %315 : vector<2x64xf32>
    %317 = arith.addf %312, %316 : vector<2x64xf32>
    %318 = math.tanh %317 : vector<2x64xf32>
    %cst_129 = arith.constant 1.000000e+00 : f32
    %319 = vector.broadcast %cst_129 : f32 to vector<2x64xf32>
    %320 = arith.subf %319, %311 : vector<2x64xf32>
    %321 = arith.mulf %320, %318 : vector<2x64xf32>
    %322 = arith.mulf %311, %299 : vector<2x64xf32>
    %323 = arith.addf %321, %322 : vector<2x64xf32>
    %324 = tpu.concatenate %155, %323 in 1 : vector<2x64xf32>, vector<2x64xf32> -> vector<2x128xf32>
    %325 = tpu.concatenate %179, %299 in 1 : vector<2x64xf32>, vector<2x64xf32> -> vector<2x128xf32>
    %326 = tpu.concatenate %203, %275 in 1 : vector<2x64xf32>, vector<2x64xf32> -> vector<2x128xf32>
    %327 = tpu.concatenate %227, %251 in 1 : vector<2x64xf32>, vector<2x64xf32> -> vector<2x128xf32>
    %328 = tpu.concatenate %251, %227 in 1 : vector<2x64xf32>, vector<2x64xf32> -> vector<2x128xf32>
    %329 = tpu.concatenate %275, %203 in 1 : vector<2x64xf32>, vector<2x64xf32> -> vector<2x128xf32>
    %330 = tpu.concatenate %299, %179 in 1 : vector<2x64xf32>, vector<2x64xf32> -> vector<2x128xf32>
    %331 = tpu.concatenate %323, %155 in 1 : vector<2x64xf32>, vector<2x64xf32> -> vector<2x128xf32>
    %332 = tpu.concatenate %324, %325, %326, %327, %328, %329, %330, %331 in 0 : vector<2x128xf32>, vector<2x128xf32>, vector<2x128xf32>, vector<2x128xf32>, vector<2x128xf32>, vector<2x128xf32>, vector<2x128xf32>, vector<2x128xf32> -> vector<16x128xf32>
    %333 = arith.truncf %332 : vector<16x128xf32> to vector<16x128xbf16>
    %cst_130 = arith.constant dense<0.000000e+00> : vector<16x192xf32>
    %334 = tpu.matmul %333, %1, %cst_130 {dimension_numbers = #tpu.dot_dimension_numbers<[1], [0], [0], [1], [0, 0, 1, 1], [], []>} : vector<16x128xbf16>, vector<128x192xbf16>, vector<16x192xf32> -> vector<16x192xf32>
    %335 = vector.broadcast %3 : vector<1x192xf32> to vector<16x192xf32>
    %336 = arith.addf %334, %335 : vector<16x192xf32>
    %337 = vector.extract_strided_slice %336 {offsets = [0, 0], sizes = [2, 192], strides = [1, 1]} : vector<16x192xf32> to vector<2x192xf32>
    %338 = vector.extract_strided_slice %336 {offsets = [2, 0], sizes = [2, 192], strides = [1, 1]} : vector<16x192xf32> to vector<2x192xf32>
    %339 = vector.extract_strided_slice %336 {offsets = [4, 0], sizes = [2, 192], strides = [1, 1]} : vector<16x192xf32> to vector<2x192xf32>
    %340 = vector.extract_strided_slice %336 {offsets = [6, 0], sizes = [2, 192], strides = [1, 1]} : vector<16x192xf32> to vector<2x192xf32>
    %341 = vector.extract_strided_slice %336 {offsets = [8, 0], sizes = [2, 192], strides = [1, 1]} : vector<16x192xf32> to vector<2x192xf32>
    %342 = vector.extract_strided_slice %336 {offsets = [10, 0], sizes = [2, 192], strides = [1, 1]} : vector<16x192xf32> to vector<2x192xf32>
    %343 = vector.extract_strided_slice %336 {offsets = [12, 0], sizes = [2, 192], strides = [1, 1]} : vector<16x192xf32> to vector<2x192xf32>
    %344 = vector.extract_strided_slice %336 {offsets = [14, 0], sizes = [2, 192], strides = [1, 1]} : vector<16x192xf32> to vector<2x192xf32>
    %cst_131 = arith.constant 0.000000e+00 : f32
    %345 = vector.broadcast %cst_131 : f32 to vector<2x64xf32>
    %346 = arith.truncf %345 : vector<2x64xf32> to vector<2x64xbf16>
    %cst_132 = arith.constant dense<0.000000e+00> : vector<2x192xf32>
    %347 = tpu.matmul %346, %2, %cst_132 {dimension_numbers = #tpu.dot_dimension_numbers<[1], [0], [0], [1], [0, 0, 1, 1], [], []>} : vector<2x64xbf16>, vector<64x192xbf16>, vector<2x192xf32> -> vector<2x192xf32>
    %348 = vector.extract_strided_slice %337 {offsets = [0, 0], sizes = [2, 128], strides = [1, 1]} : vector<2x192xf32> to vector<2x128xf32>
    %349 = vector.extract_strided_slice %347 {offsets = [0, 0], sizes = [2, 128], strides = [1, 1]} : vector<2x192xf32> to vector<2x128xf32>
    %350 = arith.addf %348, %349 : vector<2x128xf32>
    %351 = arith.negf %350 : vector<2x128xf32>
    %352 = math.exp %351 : vector<2x128xf32>
    %cst_133 = arith.constant 1.000000e+00 : f32
    %353 = vector.broadcast %cst_133 : f32 to vector<2x128xf32>
    %354 = arith.addf %353, %352 : vector<2x128xf32>
    %355 = arith.divf %353, %354 : vector<2x128xf32>
    %356 = vector.extract_strided_slice %355 {offsets = [0, 0], sizes = [2, 64], strides = [1, 1]} : vector<2x128xf32> to vector<2x64xf32>
    %357 = vector.extract_strided_slice %355 {offsets = [0, 64], sizes = [2, 64], strides = [1, 1]} : vector<2x128xf32> to vector<2x64xf32>
    %358 = vector.extract_strided_slice %337 {offsets = [0, 128], sizes = [2, 64], strides = [1, 1]} : vector<2x192xf32> to vector<2x64xf32>
    %359 = vector.extract_strided_slice %347 {offsets = [0, 128], sizes = [2, 64], strides = [1, 1]} : vector<2x192xf32> to vector<2x64xf32>
    %360 = vector.broadcast %5 : vector<1x64xf32> to vector<2x64xf32>
    %361 = arith.addf %359, %360 : vector<2x64xf32>
    %362 = arith.mulf %356, %361 : vector<2x64xf32>
    %363 = arith.addf %358, %362 : vector<2x64xf32>
    %364 = math.tanh %363 : vector<2x64xf32>
    %cst_134 = arith.constant 1.000000e+00 : f32
    %365 = vector.broadcast %cst_134 : f32 to vector<2x64xf32>
    %366 = arith.subf %365, %357 : vector<2x64xf32>
    %367 = arith.mulf %366, %364 : vector<2x64xf32>
    %368 = arith.mulf %357, %345 : vector<2x64xf32>
    %369 = arith.addf %367, %368 : vector<2x64xf32>
    %370 = arith.truncf %369 : vector<2x64xf32> to vector<2x64xbf16>
    %cst_135 = arith.constant dense<0.000000e+00> : vector<2x192xf32>
    %371 = tpu.matmul %370, %2, %cst_135 {dimension_numbers = #tpu.dot_dimension_numbers<[1], [0], [0], [1], [0, 0, 1, 1], [], []>} : vector<2x64xbf16>, vector<64x192xbf16>, vector<2x192xf32> -> vector<2x192xf32>
    %372 = vector.extract_strided_slice %338 {offsets = [0, 0], sizes = [2, 128], strides = [1, 1]} : vector<2x192xf32> to vector<2x128xf32>
    %373 = vector.extract_strided_slice %371 {offsets = [0, 0], sizes = [2, 128], strides = [1, 1]} : vector<2x192xf32> to vector<2x128xf32>
    %374 = arith.addf %372, %373 : vector<2x128xf32>
    %375 = arith.negf %374 : vector<2x128xf32>
    %376 = math.exp %375 : vector<2x128xf32>
    %cst_136 = arith.constant 1.000000e+00 : f32
    %377 = vector.broadcast %cst_136 : f32 to vector<2x128xf32>
    %378 = arith.addf %377, %376 : vector<2x128xf32>
    %379 = arith.divf %377, %378 : vector<2x128xf32>
    %380 = vector.extract_strided_slice %379 {offsets = [0, 0], sizes = [2, 64], strides = [1, 1]} : vector<2x128xf32> to vector<2x64xf32>
    %381 = vector.extract_strided_slice %379 {offsets = [0, 64], sizes = [2, 64], strides = [1, 1]} : vector<2x128xf32> to vector<2x64xf32>
    %382 = vector.extract_strided_slice %338 {offsets = [0, 128], sizes = [2, 64], strides = [1, 1]} : vector<2x192xf32> to vector<2x64xf32>
    %383 = vector.extract_strided_slice %371 {offsets = [0, 128], sizes = [2, 64], strides = [1, 1]} : vector<2x192xf32> to vector<2x64xf32>
    %384 = vector.broadcast %5 : vector<1x64xf32> to vector<2x64xf32>
    %385 = arith.addf %383, %384 : vector<2x64xf32>
    %386 = arith.mulf %380, %385 : vector<2x64xf32>
    %387 = arith.addf %382, %386 : vector<2x64xf32>
    %388 = math.tanh %387 : vector<2x64xf32>
    %cst_137 = arith.constant 1.000000e+00 : f32
    %389 = vector.broadcast %cst_137 : f32 to vector<2x64xf32>
    %390 = arith.subf %389, %381 : vector<2x64xf32>
    %391 = arith.mulf %390, %388 : vector<2x64xf32>
    %392 = arith.mulf %381, %369 : vector<2x64xf32>
    %393 = arith.addf %391, %392 : vector<2x64xf32>
    %394 = arith.truncf %393 : vector<2x64xf32> to vector<2x64xbf16>
    %cst_138 = arith.constant dense<0.000000e+00> : vector<2x192xf32>
    %395 = tpu.matmul %394, %2, %cst_138 {dimension_numbers = #tpu.dot_dimension_numbers<[1], [0], [0], [1], [0, 0, 1, 1], [], []>} : vector<2x64xbf16>, vector<64x192xbf16>, vector<2x192xf32> -> vector<2x192xf32>
    %396 = vector.extract_strided_slice %339 {offsets = [0, 0], sizes = [2, 128], strides = [1, 1]} : vector<2x192xf32> to vector<2x128xf32>
    %397 = vector.extract_strided_slice %395 {offsets = [0, 0], sizes = [2, 128], strides = [1, 1]} : vector<2x192xf32> to vector<2x128xf32>
    %398 = arith.addf %396, %397 : vector<2x128xf32>
    %399 = arith.negf %398 : vector<2x128xf32>
    %400 = math.exp %399 : vector<2x128xf32>
    %cst_139 = arith.constant 1.000000e+00 : f32
    %401 = vector.broadcast %cst_139 : f32 to vector<2x128xf32>
    %402 = arith.addf %401, %400 : vector<2x128xf32>
    %403 = arith.divf %401, %402 : vector<2x128xf32>
    %404 = vector.extract_strided_slice %403 {offsets = [0, 0], sizes = [2, 64], strides = [1, 1]} : vector<2x128xf32> to vector<2x64xf32>
    %405 = vector.extract_strided_slice %403 {offsets = [0, 64], sizes = [2, 64], strides = [1, 1]} : vector<2x128xf32> to vector<2x64xf32>
    %406 = vector.extract_strided_slice %339 {offsets = [0, 128], sizes = [2, 64], strides = [1, 1]} : vector<2x192xf32> to vector<2x64xf32>
    %407 = vector.extract_strided_slice %395 {offsets = [0, 128], sizes = [2, 64], strides = [1, 1]} : vector<2x192xf32> to vector<2x64xf32>
    %408 = vector.broadcast %5 : vector<1x64xf32> to vector<2x64xf32>
    %409 = arith.addf %407, %408 : vector<2x64xf32>
    %410 = arith.mulf %404, %409 : vector<2x64xf32>
    %411 = arith.addf %406, %410 : vector<2x64xf32>
    %412 = math.tanh %411 : vector<2x64xf32>
    %cst_140 = arith.constant 1.000000e+00 : f32
    %413 = vector.broadcast %cst_140 : f32 to vector<2x64xf32>
    %414 = arith.subf %413, %405 : vector<2x64xf32>
    %415 = arith.mulf %414, %412 : vector<2x64xf32>
    %416 = arith.mulf %405, %393 : vector<2x64xf32>
    %417 = arith.addf %415, %416 : vector<2x64xf32>
    %418 = arith.truncf %417 : vector<2x64xf32> to vector<2x64xbf16>
    %cst_141 = arith.constant dense<0.000000e+00> : vector<2x192xf32>
    %419 = tpu.matmul %418, %2, %cst_141 {dimension_numbers = #tpu.dot_dimension_numbers<[1], [0], [0], [1], [0, 0, 1, 1], [], []>} : vector<2x64xbf16>, vector<64x192xbf16>, vector<2x192xf32> -> vector<2x192xf32>
    %420 = vector.extract_strided_slice %340 {offsets = [0, 0], sizes = [2, 128], strides = [1, 1]} : vector<2x192xf32> to vector<2x128xf32>
    %421 = vector.extract_strided_slice %419 {offsets = [0, 0], sizes = [2, 128], strides = [1, 1]} : vector<2x192xf32> to vector<2x128xf32>
    %422 = arith.addf %420, %421 : vector<2x128xf32>
    %423 = arith.negf %422 : vector<2x128xf32>
    %424 = math.exp %423 : vector<2x128xf32>
    %cst_142 = arith.constant 1.000000e+00 : f32
    %425 = vector.broadcast %cst_142 : f32 to vector<2x128xf32>
    %426 = arith.addf %425, %424 : vector<2x128xf32>
    %427 = arith.divf %425, %426 : vector<2x128xf32>
    %428 = vector.extract_strided_slice %427 {offsets = [0, 0], sizes = [2, 64], strides = [1, 1]} : vector<2x128xf32> to vector<2x64xf32>
    %429 = vector.extract_strided_slice %427 {offsets = [0, 64], sizes = [2, 64], strides = [1, 1]} : vector<2x128xf32> to vector<2x64xf32>
    %430 = vector.extract_strided_slice %340 {offsets = [0, 128], sizes = [2, 64], strides = [1, 1]} : vector<2x192xf32> to vector<2x64xf32>
    %431 = vector.extract_strided_slice %419 {offsets = [0, 128], sizes = [2, 64], strides = [1, 1]} : vector<2x192xf32> to vector<2x64xf32>
    %432 = vector.broadcast %5 : vector<1x64xf32> to vector<2x64xf32>
    %433 = arith.addf %431, %432 : vector<2x64xf32>
    %434 = arith.mulf %428, %433 : vector<2x64xf32>
    %435 = arith.addf %430, %434 : vector<2x64xf32>
    %436 = math.tanh %435 : vector<2x64xf32>
    %cst_143 = arith.constant 1.000000e+00 : f32
    %437 = vector.broadcast %cst_143 : f32 to vector<2x64xf32>
    %438 = arith.subf %437, %429 : vector<2x64xf32>
    %439 = arith.mulf %438, %436 : vector<2x64xf32>
    %440 = arith.mulf %429, %417 : vector<2x64xf32>
    %441 = arith.addf %439, %440 : vector<2x64xf32>
    %442 = arith.truncf %441 : vector<2x64xf32> to vector<2x64xbf16>
    %cst_144 = arith.constant dense<0.000000e+00> : vector<2x192xf32>
    %443 = tpu.matmul %442, %2, %cst_144 {dimension_numbers = #tpu.dot_dimension_numbers<[1], [0], [0], [1], [0, 0, 1, 1], [], []>} : vector<2x64xbf16>, vector<64x192xbf16>, vector<2x192xf32> -> vector<2x192xf32>
    %444 = vector.extract_strided_slice %341 {offsets = [0, 0], sizes = [2, 128], strides = [1, 1]} : vector<2x192xf32> to vector<2x128xf32>
    %445 = vector.extract_strided_slice %443 {offsets = [0, 0], sizes = [2, 128], strides = [1, 1]} : vector<2x192xf32> to vector<2x128xf32>
    %446 = arith.addf %444, %445 : vector<2x128xf32>
    %447 = arith.negf %446 : vector<2x128xf32>
    %448 = math.exp %447 : vector<2x128xf32>
    %cst_145 = arith.constant 1.000000e+00 : f32
    %449 = vector.broadcast %cst_145 : f32 to vector<2x128xf32>
    %450 = arith.addf %449, %448 : vector<2x128xf32>
    %451 = arith.divf %449, %450 : vector<2x128xf32>
    %452 = vector.extract_strided_slice %451 {offsets = [0, 0], sizes = [2, 64], strides = [1, 1]} : vector<2x128xf32> to vector<2x64xf32>
    %453 = vector.extract_strided_slice %451 {offsets = [0, 64], sizes = [2, 64], strides = [1, 1]} : vector<2x128xf32> to vector<2x64xf32>
    %454 = vector.extract_strided_slice %341 {offsets = [0, 128], sizes = [2, 64], strides = [1, 1]} : vector<2x192xf32> to vector<2x64xf32>
    %455 = vector.extract_strided_slice %443 {offsets = [0, 128], sizes = [2, 64], strides = [1, 1]} : vector<2x192xf32> to vector<2x64xf32>
    %456 = vector.broadcast %5 : vector<1x64xf32> to vector<2x64xf32>
    %457 = arith.addf %455, %456 : vector<2x64xf32>
    %458 = arith.mulf %452, %457 : vector<2x64xf32>
    %459 = arith.addf %454, %458 : vector<2x64xf32>
    %460 = math.tanh %459 : vector<2x64xf32>
    %cst_146 = arith.constant 1.000000e+00 : f32
    %461 = vector.broadcast %cst_146 : f32 to vector<2x64xf32>
    %462 = arith.subf %461, %453 : vector<2x64xf32>
    %463 = arith.mulf %462, %460 : vector<2x64xf32>
    %464 = arith.mulf %453, %441 : vector<2x64xf32>
    %465 = arith.addf %463, %464 : vector<2x64xf32>
    %466 = arith.truncf %465 : vector<2x64xf32> to vector<2x64xbf16>
    %cst_147 = arith.constant dense<0.000000e+00> : vector<2x192xf32>
    %467 = tpu.matmul %466, %2, %cst_147 {dimension_numbers = #tpu.dot_dimension_numbers<[1], [0], [0], [1], [0, 0, 1, 1], [], []>} : vector<2x64xbf16>, vector<64x192xbf16>, vector<2x192xf32> -> vector<2x192xf32>
    %468 = vector.extract_strided_slice %342 {offsets = [0, 0], sizes = [2, 128], strides = [1, 1]} : vector<2x192xf32> to vector<2x128xf32>
    %469 = vector.extract_strided_slice %467 {offsets = [0, 0], sizes = [2, 128], strides = [1, 1]} : vector<2x192xf32> to vector<2x128xf32>
    %470 = arith.addf %468, %469 : vector<2x128xf32>
    %471 = arith.negf %470 : vector<2x128xf32>
    %472 = math.exp %471 : vector<2x128xf32>
    %cst_148 = arith.constant 1.000000e+00 : f32
    %473 = vector.broadcast %cst_148 : f32 to vector<2x128xf32>
    %474 = arith.addf %473, %472 : vector<2x128xf32>
    %475 = arith.divf %473, %474 : vector<2x128xf32>
    %476 = vector.extract_strided_slice %475 {offsets = [0, 0], sizes = [2, 64], strides = [1, 1]} : vector<2x128xf32> to vector<2x64xf32>
    %477 = vector.extract_strided_slice %475 {offsets = [0, 64], sizes = [2, 64], strides = [1, 1]} : vector<2x128xf32> to vector<2x64xf32>
    %478 = vector.extract_strided_slice %342 {offsets = [0, 128], sizes = [2, 64], strides = [1, 1]} : vector<2x192xf32> to vector<2x64xf32>
    %479 = vector.extract_strided_slice %467 {offsets = [0, 128], sizes = [2, 64], strides = [1, 1]} : vector<2x192xf32> to vector<2x64xf32>
    %480 = vector.broadcast %5 : vector<1x64xf32> to vector<2x64xf32>
    %481 = arith.addf %479, %480 : vector<2x64xf32>
    %482 = arith.mulf %476, %481 : vector<2x64xf32>
    %483 = arith.addf %478, %482 : vector<2x64xf32>
    %484 = math.tanh %483 : vector<2x64xf32>
    %cst_149 = arith.constant 1.000000e+00 : f32
    %485 = vector.broadcast %cst_149 : f32 to vector<2x64xf32>
    %486 = arith.subf %485, %477 : vector<2x64xf32>
    %487 = arith.mulf %486, %484 : vector<2x64xf32>
    %488 = arith.mulf %477, %465 : vector<2x64xf32>
    %489 = arith.addf %487, %488 : vector<2x64xf32>
    %490 = arith.truncf %489 : vector<2x64xf32> to vector<2x64xbf16>
    %cst_150 = arith.constant dense<0.000000e+00> : vector<2x192xf32>
    %491 = tpu.matmul %490, %2, %cst_150 {dimension_numbers = #tpu.dot_dimension_numbers<[1], [0], [0], [1], [0, 0, 1, 1], [], []>} : vector<2x64xbf16>, vector<64x192xbf16>, vector<2x192xf32> -> vector<2x192xf32>
    %492 = vector.extract_strided_slice %343 {offsets = [0, 0], sizes = [2, 128], strides = [1, 1]} : vector<2x192xf32> to vector<2x128xf32>
    %493 = vector.extract_strided_slice %491 {offsets = [0, 0], sizes = [2, 128], strides = [1, 1]} : vector<2x192xf32> to vector<2x128xf32>
    %494 = arith.addf %492, %493 : vector<2x128xf32>
    %495 = arith.negf %494 : vector<2x128xf32>
    %496 = math.exp %495 : vector<2x128xf32>
    %cst_151 = arith.constant 1.000000e+00 : f32
    %497 = vector.broadcast %cst_151 : f32 to vector<2x128xf32>
    %498 = arith.addf %497, %496 : vector<2x128xf32>
    %499 = arith.divf %497, %498 : vector<2x128xf32>
    %500 = vector.extract_strided_slice %499 {offsets = [0, 0], sizes = [2, 64], strides = [1, 1]} : vector<2x128xf32> to vector<2x64xf32>
    %501 = vector.extract_strided_slice %499 {offsets = [0, 64], sizes = [2, 64], strides = [1, 1]} : vector<2x128xf32> to vector<2x64xf32>
    %502 = vector.extract_strided_slice %343 {offsets = [0, 128], sizes = [2, 64], strides = [1, 1]} : vector<2x192xf32> to vector<2x64xf32>
    %503 = vector.extract_strided_slice %491 {offsets = [0, 128], sizes = [2, 64], strides = [1, 1]} : vector<2x192xf32> to vector<2x64xf32>
    %504 = vector.broadcast %5 : vector<1x64xf32> to vector<2x64xf32>
    %505 = arith.addf %503, %504 : vector<2x64xf32>
    %506 = arith.mulf %500, %505 : vector<2x64xf32>
    %507 = arith.addf %502, %506 : vector<2x64xf32>
    %508 = math.tanh %507 : vector<2x64xf32>
    %cst_152 = arith.constant 1.000000e+00 : f32
    %509 = vector.broadcast %cst_152 : f32 to vector<2x64xf32>
    %510 = arith.subf %509, %501 : vector<2x64xf32>
    %511 = arith.mulf %510, %508 : vector<2x64xf32>
    %512 = arith.mulf %501, %489 : vector<2x64xf32>
    %513 = arith.addf %511, %512 : vector<2x64xf32>
    %514 = arith.truncf %513 : vector<2x64xf32> to vector<2x64xbf16>
    %cst_153 = arith.constant dense<0.000000e+00> : vector<2x192xf32>
    %515 = tpu.matmul %514, %2, %cst_153 {dimension_numbers = #tpu.dot_dimension_numbers<[1], [0], [0], [1], [0, 0, 1, 1], [], []>} : vector<2x64xbf16>, vector<64x192xbf16>, vector<2x192xf32> -> vector<2x192xf32>
    %516 = vector.extract_strided_slice %344 {offsets = [0, 0], sizes = [2, 128], strides = [1, 1]} : vector<2x192xf32> to vector<2x128xf32>
    %517 = vector.extract_strided_slice %515 {offsets = [0, 0], sizes = [2, 128], strides = [1, 1]} : vector<2x192xf32> to vector<2x128xf32>
    %518 = arith.addf %516, %517 : vector<2x128xf32>
    %519 = arith.negf %518 : vector<2x128xf32>
    %520 = math.exp %519 : vector<2x128xf32>
    %cst_154 = arith.constant 1.000000e+00 : f32
    %521 = vector.broadcast %cst_154 : f32 to vector<2x128xf32>
    %522 = arith.addf %521, %520 : vector<2x128xf32>
    %523 = arith.divf %521, %522 : vector<2x128xf32>
    %524 = vector.extract_strided_slice %523 {offsets = [0, 0], sizes = [2, 64], strides = [1, 1]} : vector<2x128xf32> to vector<2x64xf32>
    %525 = vector.extract_strided_slice %523 {offsets = [0, 64], sizes = [2, 64], strides = [1, 1]} : vector<2x128xf32> to vector<2x64xf32>
    %526 = vector.extract_strided_slice %344 {offsets = [0, 128], sizes = [2, 64], strides = [1, 1]} : vector<2x192xf32> to vector<2x64xf32>
    %527 = vector.extract_strided_slice %515 {offsets = [0, 128], sizes = [2, 64], strides = [1, 1]} : vector<2x192xf32> to vector<2x64xf32>
    %528 = vector.broadcast %5 : vector<1x64xf32> to vector<2x64xf32>
    %529 = arith.addf %527, %528 : vector<2x64xf32>
    %530 = arith.mulf %524, %529 : vector<2x64xf32>
    %531 = arith.addf %526, %530 : vector<2x64xf32>
    %532 = math.tanh %531 : vector<2x64xf32>
    %cst_155 = arith.constant 1.000000e+00 : f32
    %533 = vector.broadcast %cst_155 : f32 to vector<2x64xf32>
    %534 = arith.subf %533, %525 : vector<2x64xf32>
    %535 = arith.mulf %534, %532 : vector<2x64xf32>
    %536 = arith.mulf %525, %513 : vector<2x64xf32>
    %537 = arith.addf %535, %536 : vector<2x64xf32>
    %538 = vector.extract_strided_slice %155 {offsets = [0, 0], sizes = [2, 32], strides = [1, 1]} : vector<2x64xf32> to vector<2x32xf32>
    %539 = vector.extract_strided_slice %323 {offsets = [0, 32], sizes = [2, 32], strides = [1, 1]} : vector<2x64xf32> to vector<2x32xf32>
    %540 = tpu.concatenate %538, %539 in 1 : vector<2x32xf32>, vector<2x32xf32> -> vector<2x64xf32>
    %541 = vector.extract_strided_slice %179 {offsets = [0, 0], sizes = [2, 32], strides = [1, 1]} : vector<2x64xf32> to vector<2x32xf32>
    %542 = vector.extract_strided_slice %299 {offsets = [0, 32], sizes = [2, 32], strides = [1, 1]} : vector<2x64xf32> to vector<2x32xf32>
    %543 = tpu.concatenate %541, %542 in 1 : vector<2x32xf32>, vector<2x32xf32> -> vector<2x64xf32>
    %544 = vector.extract_strided_slice %203 {offsets = [0, 0], sizes = [2, 32], strides = [1, 1]} : vector<2x64xf32> to vector<2x32xf32>
    %545 = vector.extract_strided_slice %275 {offsets = [0, 32], sizes = [2, 32], strides = [1, 1]} : vector<2x64xf32> to vector<2x32xf32>
    %546 = tpu.concatenate %544, %545 in 1 : vector<2x32xf32>, vector<2x32xf32> -> vector<2x64xf32>
    %547 = vector.extract_strided_slice %227 {offsets = [0, 0], sizes = [2, 32], strides = [1, 1]} : vector<2x64xf32> to vector<2x32xf32>
    %548 = vector.extract_strided_slice %251 {offsets = [0, 32], sizes = [2, 32], strides = [1, 1]} : vector<2x64xf32> to vector<2x32xf32>
    %549 = tpu.concatenate %547, %548 in 1 : vector<2x32xf32>, vector<2x32xf32> -> vector<2x64xf32>
    %550 = vector.extract_strided_slice %251 {offsets = [0, 0], sizes = [2, 32], strides = [1, 1]} : vector<2x64xf32> to vector<2x32xf32>
    %551 = vector.extract_strided_slice %227 {offsets = [0, 32], sizes = [2, 32], strides = [1, 1]} : vector<2x64xf32> to vector<2x32xf32>
    %552 = tpu.concatenate %550, %551 in 1 : vector<2x32xf32>, vector<2x32xf32> -> vector<2x64xf32>
    %553 = vector.extract_strided_slice %275 {offsets = [0, 0], sizes = [2, 32], strides = [1, 1]} : vector<2x64xf32> to vector<2x32xf32>
    %554 = vector.extract_strided_slice %203 {offsets = [0, 32], sizes = [2, 32], strides = [1, 1]} : vector<2x64xf32> to vector<2x32xf32>
    %555 = tpu.concatenate %553, %554 in 1 : vector<2x32xf32>, vector<2x32xf32> -> vector<2x64xf32>
    %556 = vector.extract_strided_slice %299 {offsets = [0, 0], sizes = [2, 32], strides = [1, 1]} : vector<2x64xf32> to vector<2x32xf32>
    %557 = vector.extract_strided_slice %179 {offsets = [0, 32], sizes = [2, 32], strides = [1, 1]} : vector<2x64xf32> to vector<2x32xf32>
    %558 = tpu.concatenate %556, %557 in 1 : vector<2x32xf32>, vector<2x32xf32> -> vector<2x64xf32>
    %559 = vector.extract_strided_slice %323 {offsets = [0, 0], sizes = [2, 32], strides = [1, 1]} : vector<2x64xf32> to vector<2x32xf32>
    %560 = vector.extract_strided_slice %155 {offsets = [0, 32], sizes = [2, 32], strides = [1, 1]} : vector<2x64xf32> to vector<2x32xf32>
    %561 = tpu.concatenate %559, %560 in 1 : vector<2x32xf32>, vector<2x32xf32> -> vector<2x64xf32>
    %562 = vector.shape_cast %540 : vector<2x64xf32> to vector<2x1x64xf32>
    %563 = vector.shape_cast %543 : vector<2x64xf32> to vector<2x1x64xf32>
    %564 = vector.shape_cast %546 : vector<2x64xf32> to vector<2x1x64xf32>
    %565 = vector.shape_cast %549 : vector<2x64xf32> to vector<2x1x64xf32>
    %566 = vector.shape_cast %552 : vector<2x64xf32> to vector<2x1x64xf32>
    %567 = vector.shape_cast %555 : vector<2x64xf32> to vector<2x1x64xf32>
    %568 = vector.shape_cast %558 : vector<2x64xf32> to vector<2x1x64xf32>
    %569 = vector.shape_cast %561 : vector<2x64xf32> to vector<2x1x64xf32>
    %570 = tpu.concatenate %562, %563, %564, %565, %566, %567, %568, %569 in 1 : vector<2x1x64xf32>, vector<2x1x64xf32>, vector<2x1x64xf32>, vector<2x1x64xf32>, vector<2x1x64xf32>, vector<2x1x64xf32>, vector<2x1x64xf32>, vector<2x1x64xf32> -> vector<2x8x64xf32>
    %571 = vector.extract_strided_slice %369 {offsets = [0, 0], sizes = [2, 32], strides = [1, 1]} : vector<2x64xf32> to vector<2x32xf32>
    %572 = vector.extract_strided_slice %537 {offsets = [0, 32], sizes = [2, 32], strides = [1, 1]} : vector<2x64xf32> to vector<2x32xf32>
    %573 = tpu.concatenate %571, %572 in 1 : vector<2x32xf32>, vector<2x32xf32> -> vector<2x64xf32>
    %574 = vector.extract_strided_slice %393 {offsets = [0, 0], sizes = [2, 32], strides = [1, 1]} : vector<2x64xf32> to vector<2x32xf32>
    %575 = vector.extract_strided_slice %513 {offsets = [0, 32], sizes = [2, 32], strides = [1, 1]} : vector<2x64xf32> to vector<2x32xf32>
    %576 = tpu.concatenate %574, %575 in 1 : vector<2x32xf32>, vector<2x32xf32> -> vector<2x64xf32>
    %577 = vector.extract_strided_slice %417 {offsets = [0, 0], sizes = [2, 32], strides = [1, 1]} : vector<2x64xf32> to vector<2x32xf32>
    %578 = vector.extract_strided_slice %489 {offsets = [0, 32], sizes = [2, 32], strides = [1, 1]} : vector<2x64xf32> to vector<2x32xf32>
    %579 = tpu.concatenate %577, %578 in 1 : vector<2x32xf32>, vector<2x32xf32> -> vector<2x64xf32>
    %580 = vector.extract_strided_slice %441 {offsets = [0, 0], sizes = [2, 32], strides = [1, 1]} : vector<2x64xf32> to vector<2x32xf32>
    %581 = vector.extract_strided_slice %465 {offsets = [0, 32], sizes = [2, 32], strides = [1, 1]} : vector<2x64xf32> to vector<2x32xf32>
    %582 = tpu.concatenate %580, %581 in 1 : vector<2x32xf32>, vector<2x32xf32> -> vector<2x64xf32>
    %583 = vector.extract_strided_slice %465 {offsets = [0, 0], sizes = [2, 32], strides = [1, 1]} : vector<2x64xf32> to vector<2x32xf32>
    %584 = vector.extract_strided_slice %441 {offsets = [0, 32], sizes = [2, 32], strides = [1, 1]} : vector<2x64xf32> to vector<2x32xf32>
    %585 = tpu.concatenate %583, %584 in 1 : vector<2x32xf32>, vector<2x32xf32> -> vector<2x64xf32>
    %586 = vector.extract_strided_slice %489 {offsets = [0, 0], sizes = [2, 32], strides = [1, 1]} : vector<2x64xf32> to vector<2x32xf32>
    %587 = vector.extract_strided_slice %417 {offsets = [0, 32], sizes = [2, 32], strides = [1, 1]} : vector<2x64xf32> to vector<2x32xf32>
    %588 = tpu.concatenate %586, %587 in 1 : vector<2x32xf32>, vector<2x32xf32> -> vector<2x64xf32>
    %589 = vector.extract_strided_slice %513 {offsets = [0, 0], sizes = [2, 32], strides = [1, 1]} : vector<2x64xf32> to vector<2x32xf32>
    %590 = vector.extract_strided_slice %393 {offsets = [0, 32], sizes = [2, 32], strides = [1, 1]} : vector<2x64xf32> to vector<2x32xf32>
    %591 = tpu.concatenate %589, %590 in 1 : vector<2x32xf32>, vector<2x32xf32> -> vector<2x64xf32>
    %592 = vector.extract_strided_slice %537 {offsets = [0, 0], sizes = [2, 32], strides = [1, 1]} : vector<2x64xf32> to vector<2x32xf32>
    %593 = vector.extract_strided_slice %369 {offsets = [0, 32], sizes = [2, 32], strides = [1, 1]} : vector<2x64xf32> to vector<2x32xf32>
    %594 = tpu.concatenate %592, %593 in 1 : vector<2x32xf32>, vector<2x32xf32> -> vector<2x64xf32>
    %595 = vector.shape_cast %573 : vector<2x64xf32> to vector<2x1x64xf32>
    %596 = vector.shape_cast %576 : vector<2x64xf32> to vector<2x1x64xf32>
    %597 = vector.shape_cast %579 : vector<2x64xf32> to vector<2x1x64xf32>
    %598 = vector.shape_cast %582 : vector<2x64xf32> to vector<2x1x64xf32>
    %599 = vector.shape_cast %585 : vector<2x64xf32> to vector<2x1x64xf32>
    %600 = vector.shape_cast %588 : vector<2x64xf32> to vector<2x1x64xf32>
    %601 = vector.shape_cast %591 : vector<2x64xf32> to vector<2x1x64xf32>
    %602 = vector.shape_cast %594 : vector<2x64xf32> to vector<2x1x64xf32>
    %603 = tpu.concatenate %595, %596, %597, %598, %599, %600, %601, %602 in 1 : vector<2x1x64xf32>, vector<2x1x64xf32>, vector<2x1x64xf32>, vector<2x1x64xf32>, vector<2x1x64xf32>, vector<2x1x64xf32>, vector<2x1x64xf32>, vector<2x1x64xf32> -> vector<2x8x64xf32>
    %604 = vector.shape_cast %6 : vector<1x64xf32> to vector<1x1x64xf32>
    %605 = vector.broadcast %604 : vector<1x1x64xf32> to vector<2x8x64xf32>
    %606 = arith.mulf %570, %605 : vector<2x8x64xf32>
    %cst_156 = arith.constant dense<0.000000e+00> : vector<2x8xf32>
    %607 = vector.multi_reduction <add>, %606, %cst_156 [2] : vector<2x8x64xf32> to vector<2x8xf32>
    %608 = vector.shape_cast %607 : vector<2x8xf32> to vector<2x8x1xf32>
    %609 = math.tanh %608 : vector<2x8x1xf32>
    %610 = math.exp %609 : vector<2x8x1xf32>
    %cst_157 = arith.constant dense<0.000000e+00> : vector<2x1xf32>
    %611 = vector.multi_reduction <add>, %610, %cst_157 [1] : vector<2x8x1xf32> to vector<2x1xf32>
    %612 = vector.shape_cast %611 : vector<2x1xf32> to vector<2x1x1xf32>
    %613 = tpu.reciprocal %612 {approx = true} : vector<2x1x1xf32> -> vector<2x1x1xf32>
    %614 = vector.broadcast %613 : vector<2x1x1xf32> to vector<2x8x1xf32>
    %615 = arith.mulf %610, %614 : vector<2x8x1xf32>
    %616 = vector.broadcast %615 : vector<2x8x1xf32> to vector<2x8x64xf32>
    %617 = arith.mulf %616, %570 : vector<2x8x64xf32>
    %cst_158 = arith.constant dense<0.000000e+00> : vector<2x64xf32>
    %618 = vector.multi_reduction <add>, %617, %cst_158 [1] : vector<2x8x64xf32> to vector<2x64xf32>
    %619 = vector.shape_cast %7 : vector<1x64xf32> to vector<1x1x64xf32>
    %620 = vector.broadcast %619 : vector<1x1x64xf32> to vector<2x8x64xf32>
    %621 = arith.mulf %603, %620 : vector<2x8x64xf32>
    %cst_159 = arith.constant dense<0.000000e+00> : vector<2x8xf32>
    %622 = vector.multi_reduction <add>, %621, %cst_159 [2] : vector<2x8x64xf32> to vector<2x8xf32>
    %623 = vector.shape_cast %622 : vector<2x8xf32> to vector<2x8x1xf32>
    %624 = math.tanh %623 : vector<2x8x1xf32>
    %625 = math.exp %624 : vector<2x8x1xf32>
    %cst_160 = arith.constant dense<0.000000e+00> : vector<2x1xf32>
    %626 = vector.multi_reduction <add>, %625, %cst_160 [1] : vector<2x8x1xf32> to vector<2x1xf32>
    %627 = vector.shape_cast %626 : vector<2x1xf32> to vector<2x1x1xf32>
    %628 = tpu.reciprocal %627 {approx = true} : vector<2x1x1xf32> -> vector<2x1x1xf32>
    %629 = vector.broadcast %628 : vector<2x1x1xf32> to vector<2x8x1xf32>
    %630 = arith.mulf %625, %629 : vector<2x8x1xf32>
    %631 = vector.broadcast %630 : vector<2x8x1xf32> to vector<2x8x64xf32>
    %632 = arith.mulf %631, %603 : vector<2x8x64xf32>
    %cst_161 = arith.constant dense<0.000000e+00> : vector<2x64xf32>
    %633 = vector.multi_reduction <add>, %632, %cst_161 [1] : vector<2x8x64xf32> to vector<2x64xf32>
    %cst_162 = arith.constant dense<0.000000e+00> : vector<2x64xf32>
    %634 = vector.multi_reduction <add>, %603, %cst_162 [1] : vector<2x8x64xf32> to vector<2x64xf32>
    %cst_163 = arith.constant 8.000000e+00 : f32
    %635 = vector.broadcast %cst_163 : f32 to vector<2x64xf32>
    %636 = arith.divf %634, %635 : vector<2x64xf32>
    %cst_164 = arith.constant dense<0xFF800000> : vector<2x64xf32>
    %637 = vector.multi_reduction <maximumf>, %603, %cst_164 [1] : vector<2x8x64xf32> to vector<2x64xf32>
    %638 = arith.truncf %618 : vector<2x64xf32> to vector<2x64xbf16>
    %c0_165 = arith.constant 0 : index
    %c0_166 = arith.constant 0 : index
    %639 = vector.load %arg4[%c0_165, %c0_166] : memref<256x16xbf16, #tpu.memory_space<vmem>>, vector<64x16xbf16>
    %cst_167 = arith.constant dense<0.000000e+00> : vector<2x16xf32>
    %640 = tpu.matmul %638, %639, %cst_167 {dimension_numbers = #tpu.dot_dimension_numbers<[1], [0], [0], [1], [0, 0, 1, 1], [], []>} : vector<2x64xbf16>, vector<64x16xbf16>, vector<2x16xf32> -> vector<2x16xf32>
    %641 = arith.truncf %633 : vector<2x64xf32> to vector<2x64xbf16>
    %c64_168 = arith.constant 64 : index
    %c0_169 = arith.constant 0 : index
    %642 = vector.load %arg4[%c64_168, %c0_169] : memref<256x16xbf16, #tpu.memory_space<vmem>>, vector<64x16xbf16>
    %cst_170 = arith.constant dense<0.000000e+00> : vector<2x16xf32>
    %643 = tpu.matmul %641, %642, %cst_170 {dimension_numbers = #tpu.dot_dimension_numbers<[1], [0], [0], [1], [0, 0, 1, 1], [], []>} : vector<2x64xbf16>, vector<64x16xbf16>, vector<2x16xf32> -> vector<2x16xf32>
    %644 = arith.addf %640, %643 : vector<2x16xf32>
    %645 = arith.truncf %636 : vector<2x64xf32> to vector<2x64xbf16>
    %c128 = arith.constant 128 : index
    %c0_171 = arith.constant 0 : index
    %646 = vector.load %arg4[%c128, %c0_171] : memref<256x16xbf16, #tpu.memory_space<vmem>>, vector<64x16xbf16>
    %cst_172 = arith.constant dense<0.000000e+00> : vector<2x16xf32>
    %647 = tpu.matmul %645, %646, %cst_172 {dimension_numbers = #tpu.dot_dimension_numbers<[1], [0], [0], [1], [0, 0, 1, 1], [], []>} : vector<2x64xbf16>, vector<64x16xbf16>, vector<2x16xf32> -> vector<2x16xf32>
    %648 = arith.addf %644, %647 : vector<2x16xf32>
    %649 = arith.truncf %637 : vector<2x64xf32> to vector<2x64xbf16>
    %c192_173 = arith.constant 192 : index
    %c0_174 = arith.constant 0 : index
    %650 = vector.load %arg4[%c192_173, %c0_174] : memref<256x16xbf16, #tpu.memory_space<vmem>>, vector<64x16xbf16>
    %cst_175 = arith.constant dense<0.000000e+00> : vector<2x16xf32>
    %651 = tpu.matmul %649, %650, %cst_175 {dimension_numbers = #tpu.dot_dimension_numbers<[1], [0], [0], [1], [0, 0, 1, 1], [], []>} : vector<2x64xbf16>, vector<64x16xbf16>, vector<2x16xf32> -> vector<2x16xf32>
    %652 = arith.addf %648, %651 : vector<2x16xf32>
    %653 = vector.broadcast %8 : vector<1x16xf32> to vector<2x16xf32>
    %654 = arith.addf %652, %653 : vector<2x16xf32>
    %cst_176 = arith.constant 0.000000e+00 : f32
    %655 = vector.broadcast %cst_176 : f32 to vector<2x16xf32>
    %656 = arith.maximumf %654, %655 : vector<2x16xf32>
    %657 = vector.broadcast %9 : vector<1x16xf32> to vector<2x16xf32>
    %658 = arith.mulf %656, %657 : vector<2x16xf32>
    %cst_177 = arith.constant dense<0.000000e+00> : vector<2xf32>
    %659 = vector.multi_reduction <add>, %658, %cst_177 [1] : vector<2x16xf32> to vector<2xf32>
    %660 = vector.shape_cast %659 : vector<2xf32> to vector<2x1xf32>
    %661 = vector.broadcast %10 : vector<1x1xf32> to vector<2x1xf32>
    %662 = arith.addf %660, %661 : vector<2x1xf32>
    %c0_178 = arith.constant 0 : index
    %c0_179 = arith.constant 0 : index
    %663 = vector.load %arg6[%c0_178, %c0_179] : memref<2x1xf32, #tpu.memory_space<vmem>>, vector<2x1xf32>
    tpu.vector_store %arg6[%c0_178, %c0_179], %662 {strides = array<i32>} : memref<2x1xf32, #tpu.memory_space<vmem>>, vector<2x1xf32>,
    return
  }
}

</mosaic_0001>

<llo_original>
// kernel: rnn_attn_forward.1
$region0: #{rnn_attn_forward.1}
  #allocation0 [shape = 'u32[]', space=smem, size = 0x4, offset = 0x4, fixed_abs, tag = 'smem constant byte address 0x4 - core index']
  #allocation1 [shape = 'u32[144,128]{1,0:T(1,128)}', space=vmem, size = 0x12000, scoped, tag = 'internal scratch']
  %s0 = inlined_call_operand.vmem [shape: s32[2,8], index: 0, kind: input, shape index: {}]
  %s1 = inlined_call_operand.vmem [shape: f32[64,192], index: 1, kind: input, shape index: {}]
  %s2 = inlined_call_operand.vmem [shape: f32[64,192], index: 2, kind: input, shape index: {}]
  %s3 = inlined_call_operand.vmem [shape: bf16[256,192], index: 3, kind: input, shape index: {}]
  %s4 = inlined_call_operand.vmem [shape: bf16[256,16], index: 4, kind: input, shape index: {}]
  %s5 = inlined_call_operand.vmem [shape: f32[8,192], index: 5, kind: input, shape index: {}]
  %s6 = inlined_call_operand.vmem [shape: f32[2,1], index: 6, kind: output, shape index: {}]
  %s7 = sld [smem:[#allocation0]]
  $region38: #{rnn_attn_forward.1} parent=0
    _
  %s9 = ssub.s32 1, %s7
  %s10 = scalar_select 0, %s9, %s7
  $region1: #{rnn_attn_forward.1} parent=0
    #allocation2 [shape = 'u8[1024]{0}', space=smem, size = 0x400, scoped, tag = 'input window, operand 0, single buffered']
    #allocation3 [shape = 's32[1]{0}', space=sflag, size = 0x4, scoped, tag = 'scoped memory for rnn_attn_forward.1']
    %11 = vsyncpa [#allocation3], 0
    // Predicated region
    $region2: #{rnn_attn_forward.1} parent=1 // pred_check
      _
    $region3: #{rnn_attn_forward.1} parent=1 // pred_check_branch
      %13 = sbr.rel (0) target = $region5
    $region4: #{rnn_attn_forward.1} parent=1 // pred_region
      %s15 = ssub.s32 32, 32
      %16 = vsyncadd [#allocation3], %s15
      %s18 = sshll.u32 %s0, 4
      %s19 = int_to_ptr.vmem [resolvable:$true] %s18
      %21 = dma.vmem_to_smem %s19, 32, [#allocation2], [#allocation3]
    $region5: #{rnn_attn_forward.1} parent=1 // pred_fallthru
      _
    // Predicated region
    $region6: #{rnn_attn_forward.1} parent=1 // pred_check
      _
    $region7: #{rnn_attn_forward.1} parent=1 // pred_check_branch
      %23 = sbr.rel (0) target = $region9
    $region8: #{rnn_attn_forward.1} parent=1 // pred_region
      _
    $region9: #{rnn_attn_forward.1} parent=1 // pred_fallthru
      _
    // Predicated region
    $region10: #{rnn_attn_forward.1} parent=1 // pred_check
      _
    $region11: #{rnn_attn_forward.1} parent=1 // pred_check_branch
      %25 = sbr.rel (0) target = $region13
    $region12: #{rnn_attn_forward.1} parent=1 // pred_region
      _
    $region13: #{rnn_attn_forward.1} parent=1 // pred_fallthru
      _
    // Predicated region
    $region14: #{rnn_attn_forward.1} parent=1 // pred_check
      _
    $region15: #{rnn_attn_forward.1} parent=1 // pred_check_branch
      %27 = sbr.rel (0) target = $region17
    $region16: #{rnn_attn_forward.1} parent=1 // pred_region
      _
    $region17: #{rnn_attn_forward.1} parent=1 // pred_fallthru
      _
    // Predicated region
    $region18: #{rnn_attn_forward.1} parent=1 // pred_check
      _
    $region19: #{rnn_attn_forward.1} parent=1 // pred_check_branch
      %29 = sbr.rel (0) target = $region21
    $region20: #{rnn_attn_forward.1} parent=1 // pred_region
      _
    $region21: #{rnn_attn_forward.1} parent=1 // pred_fallthru
      _
    // Predicated region
    $region22: #{rnn_attn_forward.1} parent=1 // pred_check
      _
    $region23: #{rnn_attn_forward.1} parent=1 // pred_check_branch
      %31 = sbr.rel (0) target = $region25
    $region24: #{rnn_attn_forward.1} parent=1 // pred_region
      _
    $region25: #{rnn_attn_forward.1} parent=1 // pred_fallthru
      _
    // Predicated region
    $region26: #{rnn_attn_forward.1} parent=1 // pred_check
      _
    $region27: #{rnn_attn_forward.1} parent=1 // pred_check_branch
      %33 = sbr.rel (0) target = $region29
    $region28: #{rnn_attn_forward.1} parent=1 // pred_region
      %34 = dma.done [#allocation3], 32
    $region29: #{rnn_attn_forward.1} parent=1 // pred_fallthru
      _
    %35 = sfence
    %v37 = vld [vmem:[%s3] sm:$0xff]
    %v38 = vld [vmem:[%s3 + $0x8] sm:$0xff]
    %v39 = vld [vmem:[%s3 + $0x10] sm:$0xff]
    %v40 = vld [vmem:[%s3 + $0x18] sm:$0xff]
    %v41 = vld [vmem:[%s3 + $0x20] sm:$0xff]
    %v42 = vld [vmem:[%s3 + $0x28] sm:$0xff]
    %v43 = vld [vmem:[%s3 + $0x30] sm:$0xff]
    %v44 = vld [vmem:[%s3 + $0x38] sm:$0xff]
    %v45 = vld [vmem:[%s3 + $0x40] sm:$0xff]
    %v46 = vld [vmem:[%s3 + $0x48] sm:$0xff]
    %v47 = vld [vmem:[%s3 + $0x50] sm:$0xff]
    %v48 = vld [vmem:[%s3 + $0x58] sm:$0xff]
    %v49 = vld [vmem:[%s3 + $0x60] sm:$0xff]
    %v50 = vld [vmem:[%s3 + $0x68] sm:$0xff]
    %v51 = vld [vmem:[%s3 + $0x70] sm:$0xff]
    %v52 = vld [vmem:[%s3 + $0x78] sm:$0xff]
    %v53 = vld [vmem:[%s3 + $0x80] sm:$0xff]
    %v54 = vld [vmem:[%s3 + $0x88] sm:$0xff]
    %v55 = vld [vmem:[%s3 + $0x90] sm:$0xff]
    %v56 = vld [vmem:[%s3 + $0x98] sm:$0xff]
    %v57 = vld [vmem:[%s3 + $0xa0] sm:$0xff]
    %v58 = vld [vmem:[%s3 + $0xa8] sm:$0xff]
    %v59 = vld [vmem:[%s3 + $0xb0] sm:$0xff]
    %v60 = vld [vmem:[%s3 + $0xb8] sm:$0xff]
    %v61 = vld [vmem:[%s3 + $0xc0] sm:$0xff]
    %v62 = vld [vmem:[%s3 + $0xc8] sm:$0xff]
    %v63 = vld [vmem:[%s3 + $0xd0] sm:$0xff]
    %v64 = vld [vmem:[%s3 + $0xd8] sm:$0xff]
    %v65 = vld [vmem:[%s3 + $0xe0] sm:$0xff]
    %v66 = vld [vmem:[%s3 + $0xe8] sm:$0xff]
    %v67 = vld [vmem:[%s3 + $0xf0] sm:$0xff]
    %v68 = vld [vmem:[%s3 + $0xf8] sm:$0xff]
    %v69 = vld [vmem:[%s5] ss:$8 sm:$0x3]
    %v70 = vld [vmem:[%s5 + $0x1] ss:$0 sm:$0xff]
    %v71 = vld [vmem:[%s5 + $0x2] ss:$0 sm:$0xff]
    %v72 = vld [vmem:[%s5 + $0x3] ss:$0 sm:$0xff]
    %s73 = sld [smem:[#allocation2]]
    %s74 = sld [smem:[#allocation2 + $0x7]]
    %s75 = sshra.s32 %s73, 3
    %s76 = sand.u32 %s73, 7
    %s77 = sshra.s32 %s73, 3
    %s78 = sand.u32 %s73, 7
    %s79 = smul.u32 %s75, 2
    %s80 = smul.u32 %s79, 8
    %s81 = sadd.s32 %s80, %s78
    %s82 = scalar_lea.vmem %s1, %s81
    %v83 = vld [vmem:[%s82] ss:$8 sm:$0x3]
    %s84 = sshra.s32 %s74, 3
    %s85 = sand.u32 %s74, 7
    %s86 = sshra.s32 %s74, 3
    %s87 = sand.u32 %s74, 7
    %s88 = smul.u32 %s84, 2
    %s89 = smul.u32 %s88, 8
    %s90 = sadd.s32 %s89, %s87
    %s91 = scalar_lea.vmem %s2, %s90
    %v92 = vld [vmem:[%s91] ss:$8 sm:$0x3]
    %v93 = vadd.f32 %v83, %v92
    %s94 = sld [smem:[#allocation2 + $0x80]]
    %s95 = sld [smem:[#allocation2 + $0x87]]
    %s96 = sshra.s32 %s94, 3
    %s97 = sand.u32 %s94, 7
    %s98 = sshra.s32 %s94, 3
    %s99 = sand.u32 %s94, 7
    %s100 = smul.u32 %s96, 2
    %s101 = smul.u32 %s100, 8
    %s102 = sadd.s32 %s101, %s99
    %s103 = scalar_lea.vmem %s1, %s102
    %v104 = vld [vmem:[%s103] ss:$8 sm:$0x3]
    %s105 = sshra.s32 %s95, 3
    %s106 = sand.u32 %s95, 7
    %s107 = sshra.s32 %s95, 3
    %s108 = sand.u32 %s95, 7
    %s109 = smul.u32 %s105, 2
    %s110 = smul.u32 %s109, 8
    %s111 = sadd.s32 %s110, %s108
    %s112 = scalar_lea.vmem %s2, %s111
    %v113 = vld [vmem:[%s112] ss:$8 sm:$0x3]
    %v114 = vadd.f32 %v104, %v113
    %v116 = vlaneseq
    %v117 = vshrl.u32 %v116, 7
    %v118 = vsub.s32 0, %v117
    %v119 = vrot.slane %v93, %v118
    %v120 = vlaneseq
    %v121 = vshrl.u32 %v120, 7
    %v122 = vsub.s32 1, %v121
    %v123 = vrot.slane %v93, %v122
    %v127 = vlaneseq
    %v128 = vshrl.u32 %v127, 7
    %v129 = vsub.s32 0, %v128
    %v130 = vrot.slane %v114, %v129
    %v131 = vlaneseq
    %v132 = vshrl.u32 %v131, 7
    %v133 = vsub.s32 1, %v132
    %v134 = vrot.slane %v114, %v133
    %vm137 = vcmask 1040384
    %v138 = vsel %vm137, %v119, %v130
    %v139 = vsel %vm137, %v123, %v134
    %s140 = sld [smem:[#allocation2 + $0x1]]
    %s141 = sld [smem:[#allocation2 + $0x6]]
    %s142 = sshra.s32 %s140, 3
    %s143 = sand.u32 %s140, 7
    %s144 = sshra.s32 %s140, 3
    %s145 = sand.u32 %s140, 7
    %s146 = smul.u32 %s142, 2
    %s147 = smul.u32 %s146, 8
    %s148 = sadd.s32 %s147, %s145
    %s149 = scalar_lea.vmem %s1, %s148
    %v150 = vld [vmem:[%s149] ss:$8 sm:$0x3]
    %s151 = sshra.s32 %s141, 3
    %s152 = sand.u32 %s141, 7
    %s153 = sshra.s32 %s141, 3
    %s154 = sand.u32 %s141, 7
    %s155 = smul.u32 %s151, 2
    %s156 = smul.u32 %s155, 8
    %s157 = sadd.s32 %s156, %s154
    %s158 = scalar_lea.vmem %s2, %s157
    %v159 = vld [vmem:[%s158] ss:$8 sm:$0x3]
    %v160 = vadd.f32 %v150, %v159
    %s161 = sld [smem:[#allocation2 + $0x81]]
    %s162 = sld [smem:[#allocation2 + $0x86]]
    %s163 = sshra.s32 %s161, 3
    %s164 = sand.u32 %s161, 7
    %s165 = sshra.s32 %s161, 3
    %s166 = sand.u32 %s161, 7
    %s167 = smul.u32 %s163, 2
    %s168 = smul.u32 %s167, 8
    %s169 = sadd.s32 %s168, %s166
    %s170 = scalar_lea.vmem %s1, %s169
    %v171 = vld [vmem:[%s170] ss:$8 sm:$0x3]
    %s172 = sshra.s32 %s162, 3
    %s173 = sand.u32 %s162, 7
    %s174 = sshra.s32 %s162, 3
    %s175 = sand.u32 %s162, 7
    %s176 = smul.u32 %s172, 2
    %s177 = smul.u32 %s176, 8
    %s178 = sadd.s32 %s177, %s175
    %s179 = scalar_lea.vmem %s2, %s178
    %v180 = vld [vmem:[%s179] ss:$8 sm:$0x3]
    %v181 = vadd.f32 %v171, %v180
    %v183 = vlaneseq
    %v184 = vshrl.u32 %v183, 7
    %v185 = vsub.s32 0, %v184
    %v186 = vrot.slane %v160, %v185
    %v187 = vlaneseq
    %v188 = vshrl.u32 %v187, 7
    %v189 = vsub.s32 1, %v188
    %v190 = vrot.slane %v160, %v189
    %v194 = vlaneseq
    %v195 = vshrl.u32 %v194, 7
    %v196 = vsub.s32 0, %v195
    %v197 = vrot.slane %v181, %v196
    %v198 = vlaneseq
    %v199 = vshrl.u32 %v198, 7
    %v200 = vsub.s32 1, %v199
    %v201 = vrot.slane %v181, %v200
    %v204 = vsel %vm137, %v186, %v197
    %v205 = vsel %vm137, %v190, %v201
    %s206 = sld [smem:[#allocation2 + $0x2]]
    %s207 = sld [smem:[#allocation2 + $0x5]]
    %s208 = sshra.s32 %s206, 3
    %s209 = sand.u32 %s206, 7
    %s210 = sshra.s32 %s206, 3
    %s211 = sand.u32 %s206, 7
    %s212 = smul.u32 %s208, 2
    %s213 = smul.u32 %s212, 8
    %s214 = sadd.s32 %s213, %s211
    %s215 = scalar_lea.vmem %s1, %s214
    %v216 = vld [vmem:[%s215] ss:$8 sm:$0x3]
    %s217 = sshra.s32 %s207, 3
    %s218 = sand.u32 %s207, 7
    %s219 = sshra.s32 %s207, 3
    %s220 = sand.u32 %s207, 7
    %s221 = smul.u32 %s217, 2
    %s222 = smul.u32 %s221, 8
    %s223 = sadd.s32 %s222, %s220
    %s224 = scalar_lea.vmem %s2, %s223
    %v225 = vld [vmem:[%s224] ss:$8 sm:$0x3]
    %v226 = vadd.f32 %v216, %v225
    %s227 = sld [smem:[#allocation2 + $0x82]]
    %s228 = sld [smem:[#allocation2 + $0x85]]
    %s229 = sshra.s32 %s227, 3
    %s230 = sand.u32 %s227, 7
    %s231 = sshra.s32 %s227, 3
    %s232 = sand.u32 %s227, 7
    %s233 = smul.u32 %s229, 2
    %s234 = smul.u32 %s233, 8
    %s235 = sadd.s32 %s234, %s232
    %s236 = scalar_lea.vmem %s1, %s235
    %v237 = vld [vmem:[%s236] ss:$8 sm:$0x3]
    %s238 = sshra.s32 %s228, 3
    %s239 = sand.u32 %s228, 7
    %s240 = sshra.s32 %s228, 3
    %s241 = sand.u32 %s228, 7
    %s242 = smul.u32 %s238, 2
    %s243 = smul.u32 %s242, 8
    %s244 = sadd.s32 %s243, %s241
    %s245 = scalar_lea.vmem %s2, %s244
    %v246 = vld [vmem:[%s245] ss:$8 sm:$0x3]
    %v247 = vadd.f32 %v237, %v246
    %v249 = vlaneseq
    %v250 = vshrl.u32 %v249, 7
    %v251 = vsub.s32 0, %v250
    %v252 = vrot.slane %v226, %v251
    %v253 = vlaneseq
    %v254 = vshrl.u32 %v253, 7
    %v255 = vsub.s32 1, %v254
    %v256 = vrot.slane %v226, %v255
    %v260 = vlaneseq
    %v261 = vshrl.u32 %v260, 7
    %v262 = vsub.s32 0, %v261
    %v263 = vrot.slane %v247, %v262
    %v264 = vlaneseq
    %v265 = vshrl.u32 %v264, 7
    %v266 = vsub.s32 1, %v265
    %v267 = vrot.slane %v247, %v266
    %v270 = vsel %vm137, %v252, %v263
    %v271 = vsel %vm137, %v256, %v267
    %s272 = sld [smem:[#allocation2 + $0x3]]
    %s273 = sld [smem:[#allocation2 + $0x4]]
    %s274 = sshra.s32 %s272, 3
    %s275 = sand.u32 %s272, 7
    %s276 = sshra.s32 %s272, 3
    %s277 = sand.u32 %s272, 7
    %s278 = smul.u32 %s274, 2
    %s279 = smul.u32 %s278, 8
    %s280 = sadd.s32 %s279, %s277
    %s281 = scalar_lea.vmem %s1, %s280
    %v282 = vld [vmem:[%s281] ss:$8 sm:$0x3]
    %s283 = sshra.s32 %s273, 3
    %s284 = sand.u32 %s273, 7
    %s285 = sshra.s32 %s273, 3
    %s286 = sand.u32 %s273, 7
    %s287 = smul.u32 %s283, 2
    %s288 = smul.u32 %s287, 8
    %s289 = sadd.s32 %s288, %s286
    %s290 = scalar_lea.vmem %s2, %s289
    %v291 = vld [vmem:[%s290] ss:$8 sm:$0x3]
    %v292 = vadd.f32 %v282, %v291
    %s293 = sld [smem:[#allocation2 + $0x83]]
    %s294 = sld [smem:[#allocation2 + $0x84]]
    %s295 = sshra.s32 %s293, 3
    %s296 = sand.u32 %s293, 7
    %s297 = sshra.s32 %s293, 3
    %s298 = sand.u32 %s293, 7
    %s299 = smul.u32 %s295, 2
    %s300 = smul.u32 %s299, 8
    %s301 = sadd.s32 %s300, %s298
    %s302 = scalar_lea.vmem %s1, %s301
    %v303 = vld [vmem:[%s302] ss:$8 sm:$0x3]
    %s304 = sshra.s32 %s294, 3
    %s305 = sand.u32 %s294, 7
    %s306 = sshra.s32 %s294, 3
    %s307 = sand.u32 %s294, 7
    %s308 = smul.u32 %s304, 2
    %s309 = smul.u32 %s308, 8
    %s310 = sadd.s32 %s309, %s307
    %s311 = scalar_lea.vmem %s2, %s310
    %v312 = vld [vmem:[%s311] ss:$8 sm:$0x3]
    %v313 = vadd.f32 %v303, %v312
    %v315 = vlaneseq
    %v316 = vshrl.u32 %v315, 7
    %v317 = vsub.s32 0, %v316
    %v318 = vrot.slane %v292, %v317
    %v319 = vlaneseq
    %v320 = vshrl.u32 %v319, 7
    %v321 = vsub.s32 1, %v320
    %v322 = vrot.slane %v292, %v321
    %v326 = vlaneseq
    %v327 = vshrl.u32 %v326, 7
    %v328 = vsub.s32 0, %v327
    %v329 = vrot.slane %v313, %v328
    %v330 = vlaneseq
    %v331 = vshrl.u32 %v330, 7
    %v332 = vsub.s32 1, %v331
    %v333 = vrot.slane %v313, %v332
    %v336 = vsel %vm137, %v318, %v329
    %v337 = vsel %vm137, %v322, %v333
    %s338 = scalar_lea.vmem %s1, %s289
    %v339 = vld [vmem:[%s338] ss:$8 sm:$0x3]
    %s340 = scalar_lea.vmem %s2, %s280
    %v341 = vld [vmem:[%s340] ss:$8 sm:$0x3]
    %v342 = vadd.f32 %v339, %v341
    %s343 = scalar_lea.vmem %s1, %s310
    %v344 = vld [vmem:[%s343] ss:$8 sm:$0x3]
    %s345 = scalar_lea.vmem %s2, %s301
    %v346 = vld [vmem:[%s345] ss:$8 sm:$0x3]
    %v347 = vadd.f32 %v344, %v346
    %v349 = vlaneseq
    %v350 = vshrl.u32 %v349, 7
    %v351 = vsub.s32 0, %v350
    %v352 = vrot.slane %v342, %v351
    %v353 = vlaneseq
    %v354 = vshrl.u32 %v353, 7
    %v355 = vsub.s32 1, %v354
    %v356 = vrot.slane %v342, %v355
    %v360 = vlaneseq
    %v361 = vshrl.u32 %v360, 7
    %v362 = vsub.s32 0, %v361
    %v363 = vrot.slane %v347, %v362
    %v364 = vlaneseq
    %v365 = vshrl.u32 %v364, 7
    %v366 = vsub.s32 1, %v365
    %v367 = vrot.slane %v347, %v366
    %v370 = vsel %vm137, %v352, %v363
    %v371 = vsel %vm137, %v356, %v367
    %s372 = scalar_lea.vmem %s1, %s223
    %v373 = vld [vmem:[%s372] ss:$8 sm:$0x3]
    %s374 = scalar_lea.vmem %s2, %s214
    %v375 = vld [vmem:[%s374] ss:$8 sm:$0x3]
    %v376 = vadd.f32 %v373, %v375
    %s377 = scalar_lea.vmem %s1, %s244
    %v378 = vld [vmem:[%s377] ss:$8 sm:$0x3]
    %s379 = scalar_lea.vmem %s2, %s235
    %v380 = vld [vmem:[%s379] ss:$8 sm:$0x3]
    %v381 = vadd.f32 %v378, %v380
    %v383 = vlaneseq
    %v384 = vshrl.u32 %v383, 7
    %v385 = vsub.s32 0, %v384
    %v386 = vrot.slane %v376, %v385
    %v387 = vlaneseq
    %v388 = vshrl.u32 %v387, 7
    %v389 = vsub.s32 1, %v388
    %v390 = vrot.slane %v376, %v389
    %v394 = vlaneseq
    %v395 = vshrl.u32 %v394, 7
    %v396 = vsub.s32 0, %v395
    %v397 = vrot.slane %v381, %v396
    %v398 = vlaneseq
    %v399 = vshrl.u32 %v398, 7
    %v400 = vsub.s32 1, %v399
    %v401 = vrot.slane %v381, %v400
    %v404 = vsel %vm137, %v386, %v397
    %v405 = vsel %vm137, %v390, %v401
    %s406 = scalar_lea.vmem %s1, %s157
    %v407 = vld [vmem:[%s406] ss:$8 sm:$0x3]
    %s408 = scalar_lea.vmem %s2, %s148
    %v409 = vld [vmem:[%s408] ss:$8 sm:$0x3]
    %v410 = vadd.f32 %v407, %v409
    %s411 = scalar_lea.vmem %s1, %s178
    %v412 = vld [vmem:[%s411] ss:$8 sm:$0x3]
    %s413 = scalar_lea.vmem %s2, %s169
    %v414 = vld [vmem:[%s413] ss:$8 sm:$0x3]
    %v415 = vadd.f32 %v412, %v414
    %v417 = vlaneseq
    %v418 = vshrl.u32 %v417, 7
    %v419 = vsub.s32 0, %v418
    %v420 = vrot.slane %v410, %v419
    %v421 = vlaneseq
    %v422 = vshrl.u32 %v421, 7
    %v423 = vsub.s32 1, %v422
    %v424 = vrot.slane %v410, %v423
    %v428 = vlaneseq
    %v429 = vshrl.u32 %v428, 7
    %v430 = vsub.s32 0, %v429
    %v431 = vrot.slane %v415, %v430
    %v432 = vlaneseq
    %v433 = vshrl.u32 %v432, 7
    %v434 = vsub.s32 1, %v433
    %v435 = vrot.slane %v415, %v434
    %v438 = vsel %vm137, %v420, %v431
    %v439 = vsel %vm137, %v424, %v435
    %s440 = scalar_lea.vmem %s1, %s90
    %v441 = vld [vmem:[%s440] ss:$8 sm:$0x3]
    %s442 = scalar_lea.vmem %s2, %s81
    %v443 = vld [vmem:[%s442] ss:$8 sm:$0x3]
    %v444 = vadd.f32 %v441, %v443
    %s445 = scalar_lea.vmem %s1, %s111
    %v446 = vld [vmem:[%s445] ss:$8 sm:$0x3]
    %s447 = scalar_lea.vmem %s2, %s102
    %v448 = vld [vmem:[%s447] ss:$8 sm:$0x3]
    %v449 = vadd.f32 %v446, %v448
    %v451 = vlaneseq
    %v452 = vshrl.u32 %v451, 7
    %v453 = vsub.s32 0, %v452
    %v454 = vrot.slane %v444, %v453
    %v455 = vlaneseq
    %v456 = vshrl.u32 %v455, 7
    %v457 = vsub.s32 1, %v456
    %v458 = vrot.slane %v444, %v457
    %v462 = vlaneseq
    %v463 = vshrl.u32 %v462, 7
    %v464 = vsub.s32 0, %v463
    %v465 = vrot.slane %v449, %v464
    %v466 = vlaneseq
    %v467 = vshrl.u32 %v466, 7
    %v468 = vsub.s32 1, %v467
    %v469 = vrot.slane %v449, %v468
    %v472 = vsel %vm137, %v454, %v465
    %v473 = vsel %vm137, %v458, %v469
    %v482 = vunpack.c.l.b16 %v37
    %v483 = vunpack.c.h.b16 %v37
    %v484 = vunpack.c.l.b16 %v38
    %v485 = vunpack.c.h.b16 %v38
    %v486 = vunpack.c.l.b16 %v39
    %v487 = vunpack.c.h.b16 %v39
    %v488 = vunpack.c.l.b16 %v40
    %v489 = vunpack.c.h.b16 %v40
    %v490 = vunpack.c.l.b16 %v41
    %v491 = vunpack.c.h.b16 %v41
    %v492 = vunpack.c.l.b16 %v42
    %v493 = vunpack.c.h.b16 %v42
    %v494 = vunpack.c.l.b16 %v43
    %v495 = vunpack.c.h.b16 %v43
    %v496 = vunpack.c.l.b16 %v44
    %v497 = vunpack.c.h.b16 %v44
    %v498 = vpack.c.b16 %v484, %v482
    %v499 = vpack.c.b16 %v485, %v483
    %v500 = vpack.c.b16 %v488, %v486
    %v501 = vpack.c.b16 %v489, %v487
    %v502 = vpack.c.b16 %v492, %v490
    %v503 = vpack.c.b16 %v493, %v491
    %v504 = vpack.c.b16 %v496, %v494
    %v505 = vpack.c.b16 %v497, %v495
    %vm514 = vcmask 523264
    %v516 = vsel %vm514, 0, 0
    %518 = vmatprep.subr.bf16.mxu0 %v499
    %519 = vmatpush1.bf16.msra.mxu0 %v498
    %520 = vmatprep.subr.bf16.mxu0 %v501
    %521 = vmatpush1.bf16.msra.mxu0 %v500
    %522 = vmatprep.subr.bf16.mxu0 %v503
    %523 = vmatpush1.bf16.msra.mxu0 %v502
    %524 = vmatprep.subr.bf16.mxu0 %v505
    %525 = vmatpush1.bf16.msra.mxu0 %v504
    %526 = vmatprep.subr.bf16.mxu0 0
    %527 = vmatpush1.bf16.msra.mxu0 0
    %528 = vmatprep.subr.bf16.mxu0 0
    %529 = vmatpush1.bf16.msra.mxu0 0
    %530 = vmatprep.subr.bf16.mxu0 0
    %531 = vmatpush1.bf16.msra.mxu0 0
    %532 = vmatprep.subr.bf16.mxu0 0
    %533 = vmatpush1.bf16.msra.mxu0 0
    %534 = vmatprep.subr.bf16.mxu0 0
    %535 = vmatpush1.bf16.msra.mxu0 0
    %536 = vmatprep.subr.bf16.mxu0 0
    %537 = vmatpush1.bf16.msra.mxu0 0
    %538 = vmatprep.subr.bf16.mxu0 0
    %539 = vmatpush1.bf16.msra.mxu0 0
    %540 = vmatprep.subr.bf16.mxu0 0
    %541 = vmatpush1.bf16.msra.mxu0 0
    %542 = vmatprep.subr.bf16.mxu0 0
    %543 = vmatpush1.bf16.msra.mxu0 0
    %544 = vmatprep.subr.bf16.mxu0 0
    %545 = vmatpush1.bf16.msra.mxu0 0
    %546 = vmatprep.subr.bf16.mxu0 0
    %547 = vmatpush1.bf16.msra.mxu0 0
    %548 = vmatprep.subr.bf16.mxu0 0
    %549 = vmatpush1.bf16.msra.mxu0 0
    %550 = vmatprep.mubr.bf16.mxu0 0
    %551 = vmatmul.mubr.bf16.gmra.mrb[0].mxu0 %v516
    %v552 = vpop.f32.mrb[0].mxu0
    %v553 = vadd.f32 0.0, %v552
    %v554 = vpop.f32.mrb[0].mxu0
    %v555 = vadd.f32 0.0, %v554
    %v556 = vpop.f32.mrb[0].mxu0
    %v557 = vpop.f32.mrb[0].mxu0
    %558 = vdwg.mxu0
    %v559 = vadd.f32 %v138, %v553
    %v560 = vxor.u32 %v559, 2147483648
    %v561 = vmul.f32 %v560, 1.442695
    %v562 = vpow.pop %v561
    %v563 = vadd.f32 %v562, 1.0
    %v564 = vrcp.pop %v563
    %v565 = vmul.f32 1.0, %v564
    %v566 = vadd.f32 %v555, %v70
    %v567 = vmul.f32 %v565, %v566
    %v568 = vadd.f32 %v139, %v567
    %v569 = vtanh.pop %v568
    %v570 = vsub.f32 1.0, %v565
    %572 = vrot.lane.b32.xlu0 %v569, 64
    %v573 = vpop.permute.xlu0 %572
    %v575 = vmul.f32 %v570, %v573
    %v576 = vmul.f32 %v565, 0.0
    %v577 = vadd.f32 %v575, %v576
    %v578 = vpack.c.bf16 %v577, %v577
    %580 = vrot.lane.b32.xlu0 %v578, 64
    %v581 = vpop.permute.xlu0 %580
    %v583 = vsel %vm514, %v581, 0
    %585 = vmatprep.subr.bf16.mxu0 %v499
    %586 = vmatpush1.bf16.msra.mxu0 %v498
    %587 = vmatprep.subr.bf16.mxu0 %v501
    %588 = vmatpush1.bf16.msra.mxu0 %v500
    %589 = vmatprep.subr.bf16.mxu0 %v503
    %590 = vmatpush1.bf16.msra.mxu0 %v502
    %591 = vmatprep.subr.bf16.mxu0 %v505
    %592 = vmatpush1.bf16.msra.mxu0 %v504
    %593 = vmatprep.subr.bf16.mxu0 0
    %594 = vmatpush1.bf16.msra.mxu0 0
    %595 = vmatprep.subr.bf16.mxu0 0
    %596 = vmatpush1.bf16.msra.mxu0 0
    %597 = vmatprep.subr.bf16.mxu0 0
    %598 = vmatpush1.bf16.msra.mxu0 0
    %599 = vmatprep.subr.bf16.mxu0 0
    %600 = vmatpush1.bf16.msra.mxu0 0
    %601 = vmatprep.subr.bf16.mxu0 0
    %602 = vmatpush1.bf16.msra.mxu0 0
    %603 = vmatprep.subr.bf16.mxu0 0
    %604 = vmatpush1.bf16.msra.mxu0 0
    %605 = vmatprep.subr.bf16.mxu0 0
    %606 = vmatpush1.bf16.msra.mxu0 0
    %607 = vmatprep.subr.bf16.mxu0 0
    %608 = vmatpush1.bf16.msra.mxu0 0
    %609 = vmatprep.subr.bf16.mxu0 0
    %610 = vmatpush1.bf16.msra.mxu0 0
    %611 = vmatprep.subr.bf16.mxu0 0
    %612 = vmatpush1.bf16.msra.mxu0 0
    %613 = vmatprep.subr.bf16.mxu0 0
    %614 = vmatpush1.bf16.msra.mxu0 0
    %615 = vmatprep.subr.bf16.mxu0 0
    %616 = vmatpush1.bf16.msra.mxu0 0
    %617 = vmatprep.mubr.bf16.mxu0 0
    %618 = vmatmul.mubr.bf16.gmra.mrb[0].mxu0 %v583
    %v619 = vpop.f32.mrb[0].mxu0
    %v620 = vadd.f32 0.0, %v619
    %v621 = vpop.f32.mrb[0].mxu0
    %v622 = vadd.f32 0.0, %v621
    %v623 = vpop.f32.mrb[0].mxu0
    %v624 = vpop.f32.mrb[0].mxu0
    %625 = vdwg.mxu0
    %v626 = vadd.f32 %v204, %v620
    %v627 = vxor.u32 %v626, 2147483648
    %v628 = vmul.f32 %v627, 1.442695
    %v629 = vpow.pop %v628
    %v630 = vadd.f32 %v629, 1.0
    %v631 = vrcp.pop %v630
    %v632 = vmul.f32 1.0, %v631
    %v633 = vadd.f32 %v622, %v70
    %v634 = vmul.f32 %v632, %v633
    %v635 = vadd.f32 %v205, %v634
    %v636 = vtanh.pop %v635
    %v637 = vsub.f32 1.0, %v632
    %639 = vrot.lane.b32.xlu0 %v636, 64
    %v640 = vpop.permute.xlu0 %639
    %v642 = vmul.f32 %v637, %v640
    %v643 = vmul.f32 %v632, %v577
    %v644 = vadd.f32 %v642, %v643
    %v645 = vpack.c.bf16 %v644, %v644
    %647 = vrot.lane.b32.xlu0 %v645, 64
    %v648 = vpop.permute.xlu0 %647
    %v650 = vsel %vm514, %v648, 0
    %652 = vmatprep.subr.bf16.mxu0 %v499
    %653 = vmatpush1.bf16.msra.mxu0 %v498
    %654 = vmatprep.subr.bf16.mxu0 %v501
    %655 = vmatpush1.bf16.msra.mxu0 %v500
    %656 = vmatprep.subr.bf16.mxu0 %v503
    %657 = vmatpush1.bf16.msra.mxu0 %v502
    %658 = vmatprep.subr.bf16.mxu0 %v505
    %659 = vmatpush1.bf16.msra.mxu0 %v504
    %660 = vmatprep.subr.bf16.mxu0 0
    %661 = vmatpush1.bf16.msra.mxu0 0
    %662 = vmatprep.subr.bf16.mxu0 0
    %663 = vmatpush1.bf16.msra.mxu0 0
    %664 = vmatprep.subr.bf16.mxu0 0
    %665 = vmatpush1.bf16.msra.mxu0 0
    %666 = vmatprep.subr.bf16.mxu0 0
    %667 = vmatpush1.bf16.msra.mxu0 0
    %668 = vmatprep.subr.bf16.mxu0 0
    %669 = vmatpush1.bf16.msra.mxu0 0
    %670 = vmatprep.subr.bf16.mxu0 0
    %671 = vmatpush1.bf16.msra.mxu0 0
    %672 = vmatprep.subr.bf16.mxu0 0
    %673 = vmatpush1.bf16.msra.mxu0 0
    %674 = vmatprep.subr.bf16.mxu0 0
    %675 = vmatpush1.bf16.msra.mxu0 0
    %676 = vmatprep.subr.bf16.mxu0 0
    %677 = vmatpush1.bf16.msra.mxu0 0
    %678 = vmatprep.subr.bf16.mxu0 0
    %679 = vmatpush1.bf16.msra.mxu0 0
    %680 = vmatprep.subr.bf16.mxu0 0
    %681 = vmatpush1.bf16.msra.mxu0 0
    %682 = vmatprep.subr.bf16.mxu0 0
    %683 = vmatpush1.bf16.msra.mxu0 0
    %684 = vmatprep.mubr.bf16.mxu0 0
    %685 = vmatmul.mubr.bf16.gmra.mrb[0].mxu0 %v650
    %v686 = vpop.f32.mrb[0].mxu0
    %v687 = vadd.f32 0.0, %v686
    %v688 = vpop.f32.mrb[0].mxu0
    %v689 = vadd.f32 0.0, %v688
    %v690 = vpop.f32.mrb[0].mxu0
    %v691 = vpop.f32.mrb[0].mxu0
    %692 = vdwg.mxu0
    %v693 = vadd.f32 %v270, %v687
    %v694 = vxor.u32 %v693, 2147483648
    %v695 = vmul.f32 %v694, 1.442695
    %v696 = vpow.pop %v695
    %v697 = vadd.f32 %v696, 1.0
    %v698 = vrcp.pop %v697
    %v699 = vmul.f32 1.0, %v698
    %v700 = vadd.f32 %v689, %v70
    %v701 = vmul.f32 %v699, %v700
    %v702 = vadd.f32 %v271, %v701
    %v703 = vtanh.pop %v702
    %v704 = vsub.f32 1.0, %v699
    %706 = vrot.lane.b32.xlu0 %v703, 64
    %v707 = vpop.permute.xlu0 %706
    %v709 = vmul.f32 %v704, %v707
    %v710 = vmul.f32 %v699, %v644
    %v711 = vadd.f32 %v709, %v710
    %v712 = vpack.c.bf16 %v711, %v711
    %714 = vrot.lane.b32.xlu0 %v712, 64
    %v715 = vpop.permute.xlu0 %714
    %v717 = vsel %vm514, %v715, 0
    %719 = vmatprep.subr.bf16.mxu0 %v499
    %720 = vmatpush1.bf16.msra.mxu0 %v498
    %721 = vmatprep.subr.bf16.mxu0 %v501
    %722 = vmatpush1.bf16.msra.mxu0 %v500
    %723 = vmatprep.subr.bf16.mxu0 %v503
    %724 = vmatpush1.bf16.msra.mxu0 %v502
    %725 = vmatprep.subr.bf16.mxu0 %v505
    %726 = vmatpush1.bf16.msra.mxu0 %v504
    %727 = vmatprep.subr.bf16.mxu0 0
    %728 = vmatpush1.bf16.msra.mxu0 0
    %729 = vmatprep.subr.bf16.mxu0 0
    %730 = vmatpush1.bf16.msra.mxu0 0
    %731 = vmatprep.subr.bf16.mxu0 0
    %732 = vmatpush1.bf16.msra.mxu0 0
    %733 = vmatprep.subr.bf16.mxu0 0
    %734 = vmatpush1.bf16.msra.mxu0 0
    %735 = vmatprep.subr.bf16.mxu0 0
    %736 = vmatpush1.bf16.msra.mxu0 0
    %737 = vmatprep.subr.bf16.mxu0 0
    %738 = vmatpush1.bf16.msra.mxu0 0
    %739 = vmatprep.subr.bf16.mxu0 0
    %740 = vmatpush1.bf16.msra.mxu0 0
    %741 = vmatprep.subr.bf16.mxu0 0
    %742 = vmatpush1.bf16.msra.mxu0 0
    %743 = vmatprep.subr.bf16.mxu0 0
    %744 = vmatpush1.bf16.msra.mxu0 0
    %745 = vmatprep.subr.bf16.mxu0 0
    %746 = vmatpush1.bf16.msra.mxu0 0
    %747 = vmatprep.subr.bf16.mxu0 0
    %748 = vmatpush1.bf16.msra.mxu0 0
    %749 = vmatprep.subr.bf16.mxu0 0
    %750 = vmatpush1.bf16.msra.mxu0 0
    %751 = vmatprep.mubr.bf16.mxu0 0
    %752 = vmatmul.mubr.bf16.gmra.mrb[0].mxu0 %v717
    %v753 = vpop.f32.mrb[0].mxu0
    %v754 = vadd.f32 0.0, %v753
    %v755 = vpop.f32.mrb[0].mxu0
    %v756 = vadd.f32 0.0, %v755
    %v757 = vpop.f32.mrb[0].mxu0
    %v758 = vpop.f32.mrb[0].mxu0
    %759 = vdwg.mxu0
    %v760 = vadd.f32 %v336, %v754
    %v761 = vxor.u32 %v760, 2147483648
    %v762 = vmul.f32 %v761, 1.442695
    %v763 = vpow.pop %v762
    %v764 = vadd.f32 %v763, 1.0
    %v765 = vrcp.pop %v764
    %v766 = vmul.f32 1.0, %v765
    %v767 = vadd.f32 %v756, %v70
    %v768 = vmul.f32 %v766, %v767
    %v769 = vadd.f32 %v337, %v768
    %v770 = vtanh.pop %v769
    %v771 = vsub.f32 1.0, %v766
    %773 = vrot.lane.b32.xlu0 %v770, 64
    %v774 = vpop.permute.xlu0 %773
    %v776 = vmul.f32 %v771, %v774
    %v777 = vmul.f32 %v766, %v711
    %v778 = vadd.f32 %v776, %v777
    %v779 = vpack.c.bf16 %v778, %v778
    %781 = vrot.lane.b32.xlu0 %v779, 64
    %v782 = vpop.permute.xlu0 %781
    %v784 = vsel %vm514, %v782, 0
    %786 = vmatprep.subr.bf16.mxu0 %v499
    %787 = vmatpush1.bf16.msra.mxu0 %v498
    %788 = vmatprep.subr.bf16.mxu0 %v501
    %789 = vmatpush1.bf16.msra.mxu0 %v500
    %790 = vmatprep.subr.bf16.mxu0 %v503
    %791 = vmatpush1.bf16.msra.mxu0 %v502
    %792 = vmatprep.subr.bf16.mxu0 %v505
    %793 = vmatpush1.bf16.msra.mxu0 %v504
    %794 = vmatprep.subr.bf16.mxu0 0
    %795 = vmatpush1.bf16.msra.mxu0 0
    %796 = vmatprep.subr.bf16.mxu0 0
    %797 = vmatpush1.bf16.msra.mxu0 0
    %798 = vmatprep.subr.bf16.mxu0 0
    %799 = vmatpush1.bf16.msra.mxu0 0
    %800 = vmatprep.subr.bf16.mxu0 0
    %801 = vmatpush1.bf16.msra.mxu0 0
    %802 = vmatprep.subr.bf16.mxu0 0
    %803 = vmatpush1.bf16.msra.mxu0 0
    %804 = vmatprep.subr.bf16.mxu0 0
    %805 = vmatpush1.bf16.msra.mxu0 0
    %806 = vmatprep.subr.bf16.mxu0 0
    %807 = vmatpush1.bf16.msra.mxu0 0
    %808 = vmatprep.subr.bf16.mxu0 0
    %809 = vmatpush1.bf16.msra.mxu0 0
    %810 = vmatprep.subr.bf16.mxu0 0
    %811 = vmatpush1.bf16.msra.mxu0 0
    %812 = vmatprep.subr.bf16.mxu0 0
    %813 = vmatpush1.bf16.msra.mxu0 0
    %814 = vmatprep.subr.bf16.mxu0 0
    %815 = vmatpush1.bf16.msra.mxu0 0
    %816 = vmatprep.subr.bf16.mxu0 0
    %817 = vmatpush1.bf16.msra.mxu0 0
    %818 = vmatprep.mubr.bf16.mxu0 0
    %819 = vmatmul.mubr.bf16.gmra.mrb[0].mxu0 %v784
    %v820 = vpop.f32.mrb[0].mxu0
    %v821 = vadd.f32 0.0, %v820
    %v822 = vpop.f32.mrb[0].mxu0
    %v823 = vadd.f32 0.0, %v822
    %v824 = vpop.f32.mrb[0].mxu0
    %v825 = vpop.f32.mrb[0].mxu0
    %826 = vdwg.mxu0
    %v827 = vadd.f32 %v370, %v821
    %v828 = vxor.u32 %v827, 2147483648
    %v829 = vmul.f32 %v828, 1.442695
    %v830 = vpow.pop %v829
    %v831 = vadd.f32 %v830, 1.0
    %v832 = vrcp.pop %v831
    %v833 = vmul.f32 1.0, %v832
    %v834 = vadd.f32 %v823, %v70
    %v835 = vmul.f32 %v833, %v834
    %v836 = vadd.f32 %v371, %v835
    %v837 = vtanh.pop %v836
    %v838 = vsub.f32 1.0, %v833
    %840 = vrot.lane.b32.xlu0 %v837, 64
    %v841 = vpop.permute.xlu0 %840
    %v843 = vmul.f32 %v838, %v841
    %v844 = vmul.f32 %v833, %v778
    %v845 = vadd.f32 %v843, %v844
    %v846 = vpack.c.bf16 %v845, %v845
    %848 = vrot.lane.b32.xlu0 %v846, 64
    %v849 = vpop.permute.xlu0 %848
    %v851 = vsel %vm514, %v849, 0
    %853 = vmatprep.subr.bf16.mxu0 %v499
    %854 = vmatpush1.bf16.msra.mxu0 %v498
    %855 = vmatprep.subr.bf16.mxu0 %v501
    %856 = vmatpush1.bf16.msra.mxu0 %v500
    %857 = vmatprep.subr.bf16.mxu0 %v503
    %858 = vmatpush1.bf16.msra.mxu0 %v502
    %859 = vmatprep.subr.bf16.mxu0 %v505
    %860 = vmatpush1.bf16.msra.mxu0 %v504
    %861 = vmatprep.subr.bf16.mxu0 0
    %862 = vmatpush1.bf16.msra.mxu0 0
    %863 = vmatprep.subr.bf16.mxu0 0
    %864 = vmatpush1.bf16.msra.mxu0 0
    %865 = vmatprep.subr.bf16.mxu0 0
    %866 = vmatpush1.bf16.msra.mxu0 0
    %867 = vmatprep.subr.bf16.mxu0 0
    %868 = vmatpush1.bf16.msra.mxu0 0
    %869 = vmatprep.subr.bf16.mxu0 0
    %870 = vmatpush1.bf16.msra.mxu0 0
    %871 = vmatprep.subr.bf16.mxu0 0
    %872 = vmatpush1.bf16.msra.mxu0 0
    %873 = vmatprep.subr.bf16.mxu0 0
    %874 = vmatpush1.bf16.msra.mxu0 0
    %875 = vmatprep.subr.bf16.mxu0 0
    %876 = vmatpush1.bf16.msra.mxu0 0
    %877 = vmatprep.subr.bf16.mxu0 0
    %878 = vmatpush1.bf16.msra.mxu0 0
    %879 = vmatprep.subr.bf16.mxu0 0
    %880 = vmatpush1.bf16.msra.mxu0 0
    %881 = vmatprep.subr.bf16.mxu0 0
    %882 = vmatpush1.bf16.msra.mxu0 0
    %883 = vmatprep.subr.bf16.mxu0 0
    %884 = vmatpush1.bf16.msra.mxu0 0
    %885 = vmatprep.mubr.bf16.mxu0 0
    %886 = vmatmul.mubr.bf16.gmra.mrb[0].mxu0 %v851
    %v887 = vpop.f32.mrb[0].mxu0
    %v888 = vadd.f32 0.0, %v887
    %v889 = vpop.f32.mrb[0].mxu0
    %v890 = vadd.f32 0.0, %v889
    %v891 = vpop.f32.mrb[0].mxu0
    %v892 = vpop.f32.mrb[0].mxu0
    %893 = vdwg.mxu0
    %v894 = vadd.f32 %v404, %v888
    %v895 = vxor.u32 %v894, 2147483648
    %v896 = vmul.f32 %v895, 1.442695
    %v897 = vpow.pop %v896
    %v898 = vadd.f32 %v897, 1.0
    %v899 = vrcp.pop %v898
    %v900 = vmul.f32 1.0, %v899
    %v901 = vadd.f32 %v890, %v70
    %v902 = vmul.f32 %v900, %v901
    %v903 = vadd.f32 %v405, %v902
    %v904 = vtanh.pop %v903
    %v905 = vsub.f32 1.0, %v900
    %907 = vrot.lane.b32.xlu0 %v904, 64
    %v908 = vpop.permute.xlu0 %907
    %v910 = vmul.f32 %v905, %v908
    %v911 = vmul.f32 %v900, %v845
    %v912 = vadd.f32 %v910, %v911
    %v913 = vpack.c.bf16 %v912, %v912
    %915 = vrot.lane.b32.xlu0 %v913, 64
    %v916 = vpop.permute.xlu0 %915
    %v918 = vsel %vm514, %v916, 0
    %920 = vmatprep.subr.bf16.mxu0 %v499
    %921 = vmatpush1.bf16.msra.mxu0 %v498
    %922 = vmatprep.subr.bf16.mxu0 %v501
    %923 = vmatpush1.bf16.msra.mxu0 %v500
    %924 = vmatprep.subr.bf16.mxu0 %v503
    %925 = vmatpush1.bf16.msra.mxu0 %v502
    %926 = vmatprep.subr.bf16.mxu0 %v505
    %927 = vmatpush1.bf16.msra.mxu0 %v504
    %928 = vmatprep.subr.bf16.mxu0 0
    %929 = vmatpush1.bf16.msra.mxu0 0
    %930 = vmatprep.subr.bf16.mxu0 0
    %931 = vmatpush1.bf16.msra.mxu0 0
    %932 = vmatprep.subr.bf16.mxu0 0
    %933 = vmatpush1.bf16.msra.mxu0 0
    %934 = vmatprep.subr.bf16.mxu0 0
    %935 = vmatpush1.bf16.msra.mxu0 0
    %936 = vmatprep.subr.bf16.mxu0 0
    %937 = vmatpush1.bf16.msra.mxu0 0
    %938 = vmatprep.subr.bf16.mxu0 0
    %939 = vmatpush1.bf16.msra.mxu0 0
    %940 = vmatprep.subr.bf16.mxu0 0
    %941 = vmatpush1.bf16.msra.mxu0 0
    %942 = vmatprep.subr.bf16.mxu0 0
    %943 = vmatpush1.bf16.msra.mxu0 0
    %944 = vmatprep.subr.bf16.mxu0 0
    %945 = vmatpush1.bf16.msra.mxu0 0
    %946 = vmatprep.subr.bf16.mxu0 0
    %947 = vmatpush1.bf16.msra.mxu0 0
    %948 = vmatprep.subr.bf16.mxu0 0
    %949 = vmatpush1.bf16.msra.mxu0 0
    %950 = vmatprep.subr.bf16.mxu0 0
    %951 = vmatpush1.bf16.msra.mxu0 0
    %952 = vmatprep.mubr.bf16.mxu0 0
    %953 = vmatmul.mubr.bf16.gmra.mrb[0].mxu0 %v918
    %v954 = vpop.f32.mrb[0].mxu0
    %v955 = vadd.f32 0.0, %v954
    %v956 = vpop.f32.mrb[0].mxu0
    %v957 = vadd.f32 0.0, %v956
    %v958 = vpop.f32.mrb[0].mxu0
    %v959 = vpop.f32.mrb[0].mxu0
    %960 = vdwg.mxu0
    %v961 = vadd.f32 %v438, %v955
    %v962 = vxor.u32 %v961, 2147483648
    %v963 = vmul.f32 %v962, 1.442695
    %v964 = vpow.pop %v963
    %v965 = vadd.f32 %v964, 1.0
    %v966 = vrcp.pop %v965
    %v967 = vmul.f32 1.0, %v966
    %v968 = vadd.f32 %v957, %v70
    %v969 = vmul.f32 %v967, %v968
    %v970 = vadd.f32 %v439, %v969
    %v971 = vtanh.pop %v970
    %v972 = vsub.f32 1.0, %v967
    %974 = vrot.lane.b32.xlu0 %v971, 64
    %v975 = vpop.permute.xlu0 %974
    %v977 = vmul.f32 %v972, %v975
    %v978 = vmul.f32 %v967, %v912
    %v979 = vadd.f32 %v977, %v978
    %v980 = vpack.c.bf16 %v979, %v979
    %982 = vrot.lane.b32.xlu0 %v980, 64
    %v983 = vpop.permute.xlu0 %982
    %v985 = vsel %vm514, %v983, 0
    %987 = vmatprep.subr.bf16.mxu0 %v499
    %988 = vmatpush1.bf16.msra.mxu0 %v498
    %989 = vmatprep.subr.bf16.mxu0 %v501
    %990 = vmatpush1.bf16.msra.mxu0 %v500
    %991 = vmatprep.subr.bf16.mxu0 %v503
    %992 = vmatpush1.bf16.msra.mxu0 %v502
    %993 = vmatprep.subr.bf16.mxu0 %v505
    %994 = vmatpush1.bf16.msra.mxu0 %v504
    %995 = vmatprep.subr.bf16.mxu0 0
    %996 = vmatpush1.bf16.msra.mxu0 0
    %997 = vmatprep.subr.bf16.mxu0 0
    %998 = vmatpush1.bf16.msra.mxu0 0
    %999 = vmatprep.subr.bf16.mxu0 0
    %1000 = vmatpush1.bf16.msra.mxu0 0
    %1001 = vmatprep.subr.bf16.mxu0 0
    %1002 = vmatpush1.bf16.msra.mxu0 0
    %1003 = vmatprep.subr.bf16.mxu0 0
    %1004 = vmatpush1.bf16.msra.mxu0 0
    %1005 = vmatprep.subr.bf16.mxu0 0
    %1006 = vmatpush1.bf16.msra.mxu0 0
    %1007 = vmatprep.subr.bf16.mxu0 0
    %1008 = vmatpush1.bf16.msra.mxu0 0
    %1009 = vmatprep.subr.bf16.mxu0 0
    %1010 = vmatpush1.bf16.msra.mxu0 0
    %1011 = vmatprep.subr.bf16.mxu0 0
    %1012 = vmatpush1.bf16.msra.mxu0 0
    %1013 = vmatprep.subr.bf16.mxu0 0
    %1014 = vmatpush1.bf16.msra.mxu0 0
    %1015 = vmatprep.subr.bf16.mxu0 0
    %1016 = vmatpush1.bf16.msra.mxu0 0
    %1017 = vmatprep.subr.bf16.mxu0 0
    %1018 = vmatpush1.bf16.msra.mxu0 0
    %1019 = vmatprep.mubr.bf16.mxu0 0
    %1020 = vmatmul.mubr.bf16.gmra.mrb[0].mxu0 %v985
    %v1021 = vpop.f32.mrb[0].mxu0
    %v1022 = vadd.f32 0.0, %v1021
    %v1023 = vpop.f32.mrb[0].mxu0
    %v1024 = vadd.f32 0.0, %v1023
    %v1025 = vpop.f32.mrb[0].mxu0
    %v1026 = vpop.f32.mrb[0].mxu0
    %1027 = vdwg.mxu0
    %v1028 = vadd.f32 %v472, %v1022
    %v1029 = vxor.u32 %v1028, 2147483648
    %v1030 = vmul.f32 %v1029, 1.442695
    %v1031 = vpow.pop %v1030
    %v1032 = vadd.f32 %v1031, 1.0
    %v1033 = vrcp.pop %v1032
    %v1034 = vmul.f32 1.0, %v1033
    %v1035 = vadd.f32 %v1024, %v70
    %v1036 = vmul.f32 %v1034, %v1035
    %v1037 = vadd.f32 %v473, %v1036
    %v1038 = vtanh.pop %v1037
    %v1039 = vsub.f32 1.0, %v1034
    %1041 = vrot.lane.b32.xlu0 %v1038, 64
    %v1042 = vpop.permute.xlu0 %1041
    %v1044 = vmul.f32 %v1039, %v1042
    %v1045 = vmul.f32 %v1034, %v979
    %v1046 = vadd.f32 %v1044, %v1045
    %1048 = vrot.lane.b32.xlu0 %v577, 64
    %v1049 = vpop.permute.xlu0 %1048
    %v1051 = vsel %vm514, %v1049, %v1046
    %1053 = vrot.lane.b32.xlu0 %v644, 64
    %v1054 = vpop.permute.xlu0 %1053
    %v1056 = vsel %vm514, %v1054, %v979
    %1058 = vrot.lane.b32.xlu0 %v711, 64
    %v1059 = vpop.permute.xlu0 %1058
    %v1061 = vsel %vm514, %v1059, %v912
    %1063 = vrot.lane.b32.xlu0 %v778, 64
    %v1064 = vpop.permute.xlu0 %1063
    %v1066 = vsel %vm514, %v1064, %v845
    %1068 = vrot.lane.b32.xlu0 %v845, 64
    %v1069 = vpop.permute.xlu0 %1068
    %v1071 = vsel %vm514, %v1069, %v778
    %1073 = vrot.lane.b32.xlu0 %v912, 64
    %v1074 = vpop.permute.xlu0 %1073
    %v1076 = vsel %vm514, %v1074, %v711
    %1078 = vrot.lane.b32.xlu0 %v979, 64
    %v1079 = vpop.permute.xlu0 %1078
    %v1081 = vsel %vm514, %v1079, %v644
    %1083 = vrot.lane.b32.xlu0 %v1046, 64
    %v1084 = vpop.permute.xlu0 %1083
    %v1086 = vsel %vm514, %v1084, %v577
    %v1088 = vrot.slane %v1056, 6
    %v1091 = vrot.slane %v1061, 4
    %v1094 = vrot.slane %v1066, 2
    %v1097 = vrot.slane %v1076, 6
    %v1100 = vrot.slane %v1081, 4
    %v1103 = vrot.slane %v1086, 2
    %vm1105 = vcmask 1041408
    %v1106 = vsel %vm1105, %v1051, %v1088
    %vm1107 = vcmask 1043456
    %v1108 = vsel %vm1107, %v1106, %v1091
    %vm1109 = vcmask 1045504
    %v1110 = vsel %vm1109, %v1108, %v1094
    %v1111 = vsel %vm1105, %v1071, %v1097
    %v1112 = vsel %vm1107, %v1111, %v1100
    %v1113 = vsel %vm1109, %v1112, %v1103
    %v1114 = vpack.c.bf16 %v1113, %v1110
    %v1116 = vlaneseq
    %v1117 = vshrl.u32 %v1116, 7
    %v1118 = vsub.s32 0, %v1117
    %v1119 = vrot.slane %v69, %v1118
    %v1120 = vlaneseq
    %v1121 = vshrl.u32 %v1120, 7
    %v1122 = vsub.s32 1, %v1121
    %v1123 = vrot.slane %v69, %v1122
    %v1142 = vunpack.c.l.b16 %v45
    %v1143 = vunpack.c.h.b16 %v45
    %v1144 = vunpack.c.l.b16 %v46
    %v1145 = vunpack.c.h.b16 %v46
    %v1146 = vunpack.c.l.b16 %v47
    %v1147 = vunpack.c.h.b16 %v47
    %v1148 = vunpack.c.l.b16 %v48
    %v1149 = vunpack.c.h.b16 %v48
    %v1150 = vunpack.c.l.b16 %v49
    %v1151 = vunpack.c.h.b16 %v49
    %v1152 = vunpack.c.l.b16 %v50
    %v1153 = vunpack.c.h.b16 %v50
    %v1154 = vunpack.c.l.b16 %v51
    %v1155 = vunpack.c.h.b16 %v51
    %v1156 = vunpack.c.l.b16 %v52
    %v1157 = vunpack.c.h.b16 %v52
    %v1158 = vunpack.c.l.b16 %v53
    %v1159 = vunpack.c.h.b16 %v53
    %v1160 = vunpack.c.l.b16 %v54
    %v1161 = vunpack.c.h.b16 %v54
    %v1162 = vunpack.c.l.b16 %v55
    %v1163 = vunpack.c.h.b16 %v55
    %v1164 = vunpack.c.l.b16 %v56
    %v1165 = vunpack.c.h.b16 %v56
    %v1166 = vunpack.c.l.b16 %v57
    %v1167 = vunpack.c.h.b16 %v57
    %v1168 = vunpack.c.l.b16 %v58
    %v1169 = vunpack.c.h.b16 %v58
    %v1170 = vunpack.c.l.b16 %v59
    %v1171 = vunpack.c.h.b16 %v59
    %v1172 = vunpack.c.l.b16 %v60
    %v1173 = vunpack.c.h.b16 %v60
    %v1174 = vpack.c.b16 %v1144, %v1142
    %v1175 = vpack.c.b16 %v1145, %v1143
    %v1176 = vpack.c.b16 %v1148, %v1146
    %v1177 = vpack.c.b16 %v1149, %v1147
    %v1178 = vpack.c.b16 %v1152, %v1150
    %v1179 = vpack.c.b16 %v1153, %v1151
    %v1180 = vpack.c.b16 %v1156, %v1154
    %v1181 = vpack.c.b16 %v1157, %v1155
    %v1182 = vpack.c.b16 %v1160, %v1158
    %v1183 = vpack.c.b16 %v1161, %v1159
    %v1184 = vpack.c.b16 %v1164, %v1162
    %v1185 = vpack.c.b16 %v1165, %v1163
    %v1186 = vpack.c.b16 %v1168, %v1166
    %v1187 = vpack.c.b16 %v1169, %v1167
    %v1188 = vpack.c.b16 %v1172, %v1170
    %v1189 = vpack.c.b16 %v1173, %v1171
    %1206 = vmatprep.subr.bf16.mxu0 %v1175
    %1207 = vmatpush1.bf16.msra.mxu0 %v1174
    %1208 = vmatprep.subr.bf16.mxu0 %v1177
    %1209 = vmatpush1.bf16.msra.mxu0 %v1176
    %1210 = vmatprep.subr.bf16.mxu0 %v1179
    %1211 = vmatpush1.bf16.msra.mxu0 %v1178
    %1212 = vmatprep.subr.bf16.mxu0 %v1181
    %1213 = vmatpush1.bf16.msra.mxu0 %v1180
    %1214 = vmatprep.subr.bf16.mxu0 %v1183
    %1215 = vmatpush1.bf16.msra.mxu0 %v1182
    %1216 = vmatprep.subr.bf16.mxu0 %v1185
    %1217 = vmatpush1.bf16.msra.mxu0 %v1184
    %1218 = vmatprep.subr.bf16.mxu0 %v1187
    %1219 = vmatpush1.bf16.msra.mxu0 %v1186
    %1220 = vmatprep.subr.bf16.mxu0 %v1189
    %1221 = vmatpush1.bf16.msra.mxu0 %v1188
    %1222 = vmatprep.subr.bf16.mxu0 0
    %1223 = vmatpush1.bf16.msra.mxu0 0
    %1224 = vmatprep.subr.bf16.mxu0 0
    %1225 = vmatpush1.bf16.msra.mxu0 0
    %1226 = vmatprep.subr.bf16.mxu0 0
    %1227 = vmatpush1.bf16.msra.mxu0 0
    %1228 = vmatprep.subr.bf16.mxu0 0
    %1229 = vmatpush1.bf16.msra.mxu0 0
    %1230 = vmatprep.subr.bf16.mxu0 0
    %1231 = vmatpush1.bf16.msra.mxu0 0
    %1232 = vmatprep.subr.bf16.mxu0 0
    %1233 = vmatpush1.bf16.msra.mxu0 0
    %1234 = vmatprep.subr.bf16.mxu0 0
    %1235 = vmatpush1.bf16.msra.mxu0 0
    %1236 = vmatprep.subr.bf16.mxu0 0
    %1237 = vmatpush1.bf16.msra.mxu0 0
    %1238 = vmatprep.mubr.bf16.mxu0 0
    %1239 = vmatmul.mubr.bf16.gmra.mrb[0].mxu0 %v1114
    %v1240 = vpop.f32.mrb[0].mxu0
    %v1241 = vadd.f32 %v1119, %v1240
    %v1242 = vpop.f32.mrb[0].mxu0
    %v1243 = vadd.f32 %v1123, %v1242
    %v1244 = vpop.f32.mrb[0].mxu0
    %v1245 = vadd.f32 %v1119, %v1244
    %v1246 = vpop.f32.mrb[0].mxu0
    %v1247 = vadd.f32 %v1123, %v1246
    %1248 = vdwg.mxu0
    %v1257 = vunpack.c.l.b16 %v61
    %v1258 = vunpack.c.h.b16 %v61
    %v1259 = vunpack.c.l.b16 %v62
    %v1260 = vunpack.c.h.b16 %v62
    %v1261 = vunpack.c.l.b16 %v63
    %v1262 = vunpack.c.h.b16 %v63
    %v1263 = vunpack.c.l.b16 %v64
    %v1264 = vunpack.c.h.b16 %v64
    %v1265 = vunpack.c.l.b16 %v65
    %v1266 = vunpack.c.h.b16 %v65
    %v1267 = vunpack.c.l.b16 %v66
    %v1268 = vunpack.c.h.b16 %v66
    %v1269 = vunpack.c.l.b16 %v67
    %v1270 = vunpack.c.h.b16 %v67
    %v1271 = vunpack.c.l.b16 %v68
    %v1272 = vunpack.c.h.b16 %v68
    %v1273 = vpack.c.b16 %v1259, %v1257
    %v1274 = vpack.c.b16 %v1260, %v1258
    %v1275 = vpack.c.b16 %v1263, %v1261
    %v1276 = vpack.c.b16 %v1264, %v1262
    %v1277 = vpack.c.b16 %v1267, %v1265
    %v1278 = vpack.c.b16 %v1268, %v1266
    %v1279 = vpack.c.b16 %v1271, %v1269
    %v1280 = vpack.c.b16 %v1272, %v1270
    %1289 = vmatprep.subr.bf16.mxu0 %v1274
    %1290 = vmatpush1.bf16.msra.mxu0 %v1273
    %1291 = vmatprep.subr.bf16.mxu0 %v1276
    %1292 = vmatpush1.bf16.msra.mxu0 %v1275
    %1293 = vmatprep.subr.bf16.mxu0 %v1278
    %1294 = vmatpush1.bf16.msra.mxu0 %v1277
    %1295 = vmatprep.subr.bf16.mxu0 %v1280
    %1296 = vmatpush1.bf16.msra.mxu0 %v1279
    %1297 = vmatprep.subr.bf16.mxu0 0
    %1298 = vmatpush1.bf16.msra.mxu0 0
    %1299 = vmatprep.subr.bf16.mxu0 0
    %1300 = vmatpush1.bf16.msra.mxu0 0
    %1301 = vmatprep.subr.bf16.mxu0 0
    %1302 = vmatpush1.bf16.msra.mxu0 0
    %1303 = vmatprep.subr.bf16.mxu0 0
    %1304 = vmatpush1.bf16.msra.mxu0 0
    %1305 = vmatprep.subr.bf16.mxu0 0
    %1306 = vmatpush1.bf16.msra.mxu0 0
    %1307 = vmatprep.subr.bf16.mxu0 0
    %1308 = vmatpush1.bf16.msra.mxu0 0
    %1309 = vmatprep.subr.bf16.mxu0 0
    %1310 = vmatpush1.bf16.msra.mxu0 0
    %1311 = vmatprep.subr.bf16.mxu0 0
    %1312 = vmatpush1.bf16.msra.mxu0 0
    %1313 = vmatprep.subr.bf16.mxu0 0
    %1314 = vmatpush1.bf16.msra.mxu0 0
    %1315 = vmatprep.subr.bf16.mxu0 0
    %1316 = vmatpush1.bf16.msra.mxu0 0
    %1317 = vmatprep.subr.bf16.mxu0 0
    %1318 = vmatpush1.bf16.msra.mxu0 0
    %1319 = vmatprep.subr.bf16.mxu0 0
    %1320 = vmatpush1.bf16.msra.mxu0 0
    %1321 = vmatprep.mubr.bf16.mxu0 0
    %1322 = vmatmul.mubr.bf16.gmra.mrb[0].mxu0 %v516
    %v1323 = vpop.f32.mrb[0].mxu0
    %v1324 = vadd.f32 0.0, %v1323
    %v1325 = vpop.f32.mrb[0].mxu0
    %v1326 = vadd.f32 0.0, %v1325
    %v1327 = vpop.f32.mrb[0].mxu0
    %v1328 = vpop.f32.mrb[0].mxu0
    %1329 = vdwg.mxu0
    %v1330 = vadd.f32 %v1241, %v1324
    %v1331 = vxor.u32 %v1330, 2147483648
    %v1332 = vmul.f32 %v1331, 1.442695
    %v1333 = vpow.pop %v1332
    %v1334 = vadd.f32 %v1333, 1.0
    %v1335 = vrcp.pop %v1334
    %v1336 = vmul.f32 1.0, %v1335
    %1338 = vrot.lane.b32.xlu0 %v70, 64
    %v1339 = vpop.permute.xlu0 %1338
    %v1341 = vadd.f32 %v1326, %v1339
    %v1342 = vmul.f32 %v1336, %v1341
    %v1343 = vadd.f32 %v1243, %v1342
    %v1344 = vtanh.pop %v1343
    %v1345 = vsub.f32 1.0, %v1336
    %1347 = vrot.lane.b32.xlu0 %v1344, 64
    %v1348 = vpop.permute.xlu0 %1347
    %v1350 = vmul.f32 %v1345, %v1348
    %v1351 = vmul.f32 %v1336, 0.0
    %v1352 = vadd.f32 %v1350, %v1351
    %v1353 = vpack.c.bf16 %v1352, %v1352
    %1355 = vrot.lane.b32.xlu0 %v1353, 64
    %v1356 = vpop.permute.xlu0 %1355
    %v1358 = vsel %vm514, %v1356, 0
    %1360 = vmatprep.subr.bf16.mxu0 %v1274
    %1361 = vmatpush1.bf16.msra.mxu0 %v1273
    %1362 = vmatprep.subr.bf16.mxu0 %v1276
    %1363 = vmatpush1.bf16.msra.mxu0 %v1275
    %1364 = vmatprep.subr.bf16.mxu0 %v1278
    %1365 = vmatpush1.bf16.msra.mxu0 %v1277
    %1366 = vmatprep.subr.bf16.mxu0 %v1280
    %1367 = vmatpush1.bf16.msra.mxu0 %v1279
    %1368 = vmatprep.subr.bf16.mxu0 0
    %1369 = vmatpush1.bf16.msra.mxu0 0
    %1370 = vmatprep.subr.bf16.mxu0 0
    %1371 = vmatpush1.bf16.msra.mxu0 0
    %1372 = vmatprep.subr.bf16.mxu0 0
    %1373 = vmatpush1.bf16.msra.mxu0 0
    %1374 = vmatprep.subr.bf16.mxu0 0
    %1375 = vmatpush1.bf16.msra.mxu0 0
    %1376 = vmatprep.subr.bf16.mxu0 0
    %1377 = vmatpush1.bf16.msra.mxu0 0
    %1378 = vmatprep.subr.bf16.mxu0 0
    %1379 = vmatpush1.bf16.msra.mxu0 0
    %1380 = vmatprep.subr.bf16.mxu0 0
    %1381 = vmatpush1.bf16.msra.mxu0 0
    %1382 = vmatprep.subr.bf16.mxu0 0
    %1383 = vmatpush1.bf16.msra.mxu0 0
    %1384 = vmatprep.subr.bf16.mxu0 0
    %1385 = vmatpush1.bf16.msra.mxu0 0
    %1386 = vmatprep.subr.bf16.mxu0 0
    %1387 = vmatpush1.bf16.msra.mxu0 0
    %1388 = vmatprep.subr.bf16.mxu0 0
    %1389 = vmatpush1.bf16.msra.mxu0 0
    %1390 = vmatprep.subr.bf16.mxu0 0
    %1391 = vmatpush1.bf16.msra.mxu0 0
    %1392 = vmatprep.mubr.bf16.mxu0 0
    %1393 = vmatmul.mubr.bf16.gmra.mrb[0].mxu0 %v1358
    %v1394 = vpop.f32.mrb[0].mxu0
    %v1395 = vadd.f32 0.0, %v1394
    %v1396 = vpop.f32.mrb[0].mxu0
    %v1397 = vadd.f32 0.0, %v1396
    %v1398 = vpop.f32.mrb[0].mxu0
    %v1399 = vpop.f32.mrb[0].mxu0
    %1400 = vdwg.mxu0
    %v1402 = vrot.slane %v1395, 6
    %v1404 = vadd.f32 %v1241, %v1402
    %v1405 = vxor.u32 %v1404, 2147483648
    %v1406 = vmul.f32 %v1405, 1.442695
    %v1407 = vpow.pop %v1406
    %v1408 = vadd.f32 %v1407, 1.0
    %v1409 = vrcp.pop %v1408
    %v1410 = vmul.f32 1.0, %v1409
    %v1411 = vadd.f32 %v1397, %v1339
    %v1413 = vrot.slane %v1411, 6
    %v1415 = vmul.f32 %v1410, %v1413
    %v1416 = vadd.f32 %v1243, %v1415
    %v1417 = vtanh.pop %v1416
    %v1418 = vsub.f32 1.0, %v1410
    %1420 = vrot.lane.b32.xlu0 %v1417, 64
    %v1421 = vpop.permute.xlu0 %1420
    %v1423 = vmul.f32 %v1418, %v1421
    %v1425 = vrot.slane %v1352, 6
    %v1427 = vmul.f32 %v1410, %v1425
    %v1428 = vadd.f32 %v1423, %v1427
    %v1429 = vpack.c.bf16 %v1428, %v1428
    %v1431 = vrot.slane %v1429, 1
    %1432 = vrot.lane.b32.xlu0 %v1431, 64
    %v1433 = vpop.permute.xlu0 %1432
    %v1435 = vsel %vm514, %v1433, 0
    %1437 = vmatprep.subr.bf16.mxu0 %v1274
    %1438 = vmatpush1.bf16.msra.mxu0 %v1273
    %1439 = vmatprep.subr.bf16.mxu0 %v1276
    %1440 = vmatpush1.bf16.msra.mxu0 %v1275
    %1441 = vmatprep.subr.bf16.mxu0 %v1278
    %1442 = vmatpush1.bf16.msra.mxu0 %v1277
    %1443 = vmatprep.subr.bf16.mxu0 %v1280
    %1444 = vmatpush1.bf16.msra.mxu0 %v1279
    %1445 = vmatprep.subr.bf16.mxu0 0
    %1446 = vmatpush1.bf16.msra.mxu0 0
    %1447 = vmatprep.subr.bf16.mxu0 0
    %1448 = vmatpush1.bf16.msra.mxu0 0
    %1449 = vmatprep.subr.bf16.mxu0 0
    %1450 = vmatpush1.bf16.msra.mxu0 0
    %1451 = vmatprep.subr.bf16.mxu0 0
    %1452 = vmatpush1.bf16.msra.mxu0 0
    %1453 = vmatprep.subr.bf16.mxu0 0
    %1454 = vmatpush1.bf16.msra.mxu0 0
    %1455 = vmatprep.subr.bf16.mxu0 0
    %1456 = vmatpush1.bf16.msra.mxu0 0
    %1457 = vmatprep.subr.bf16.mxu0 0
    %1458 = vmatpush1.bf16.msra.mxu0 0
    %1459 = vmatprep.subr.bf16.mxu0 0
    %1460 = vmatpush1.bf16.msra.mxu0 0
    %1461 = vmatprep.subr.bf16.mxu0 0
    %1462 = vmatpush1.bf16.msra.mxu0 0
    %1463 = vmatprep.subr.bf16.mxu0 0
    %1464 = vmatpush1.bf16.msra.mxu0 0
    %1465 = vmatprep.subr.bf16.mxu0 0
    %1466 = vmatpush1.bf16.msra.mxu0 0
    %1467 = vmatprep.subr.bf16.mxu0 0
    %1468 = vmatpush1.bf16.msra.mxu0 0
    %1469 = vmatprep.mubr.bf16.mxu0 0
    %1470 = vmatmul.mubr.bf16.gmra.mrb[0].mxu0 %v1435
    %v1471 = vpop.f32.mrb[0].mxu0
    %v1472 = vadd.f32 0.0, %v1471
    %v1473 = vpop.f32.mrb[0].mxu0
    %v1474 = vadd.f32 0.0, %v1473
    %v1475 = vpop.f32.mrb[0].mxu0
    %v1476 = vpop.f32.mrb[0].mxu0
    %1477 = vdwg.mxu0
    %v1479 = vrot.slane %v1472, 4
    %v1481 = vadd.f32 %v1241, %v1479
    %v1482 = vxor.u32 %v1481, 2147483648
    %v1483 = vmul.f32 %v1482, 1.442695
    %v1484 = vpow.pop %v1483
    %v1485 = vadd.f32 %v1484, 1.0
    %v1486 = vrcp.pop %v1485
    %v1487 = vmul.f32 1.0, %v1486
    %v1488 = vadd.f32 %v1474, %v1339
    %v1490 = vrot.slane %v1488, 4
    %v1492 = vmul.f32 %v1487, %v1490
    %v1493 = vadd.f32 %v1243, %v1492
    %v1494 = vtanh.pop %v1493
    %v1495 = vsub.f32 1.0, %v1487
    %1497 = vrot.lane.b32.xlu0 %v1494, 64
    %v1498 = vpop.permute.xlu0 %1497
    %v1500 = vmul.f32 %v1495, %v1498
    %v1502 = vrot.slane %v1428, 6
    %v1504 = vmul.f32 %v1487, %v1502
    %v1505 = vadd.f32 %v1500, %v1504
    %v1506 = vpack.c.bf16 %v1505, %v1505
    %v1508 = vrot.slane %v1506, 2
    %1509 = vrot.lane.b32.xlu0 %v1508, 64
    %v1510 = vpop.permute.xlu0 %1509
    %v1512 = vsel %vm514, %v1510, 0
    %1514 = vmatprep.subr.bf16.mxu0 %v1274
    %1515 = vmatpush1.bf16.msra.mxu0 %v1273
    %1516 = vmatprep.subr.bf16.mxu0 %v1276
    %1517 = vmatpush1.bf16.msra.mxu0 %v1275
    %1518 = vmatprep.subr.bf16.mxu0 %v1278
    %1519 = vmatpush1.bf16.msra.mxu0 %v1277
    %1520 = vmatprep.subr.bf16.mxu0 %v1280
    %1521 = vmatpush1.bf16.msra.mxu0 %v1279
    %1522 = vmatprep.subr.bf16.mxu0 0
    %1523 = vmatpush1.bf16.msra.mxu0 0
    %1524 = vmatprep.subr.bf16.mxu0 0
    %1525 = vmatpush1.bf16.msra.mxu0 0
    %1526 = vmatprep.subr.bf16.mxu0 0
    %1527 = vmatpush1.bf16.msra.mxu0 0
    %1528 = vmatprep.subr.bf16.mxu0 0
    %1529 = vmatpush1.bf16.msra.mxu0 0
    %1530 = vmatprep.subr.bf16.mxu0 0
    %1531 = vmatpush1.bf16.msra.mxu0 0
    %1532 = vmatprep.subr.bf16.mxu0 0
    %1533 = vmatpush1.bf16.msra.mxu0 0
    %1534 = vmatprep.subr.bf16.mxu0 0
    %1535 = vmatpush1.bf16.msra.mxu0 0
    %1536 = vmatprep.subr.bf16.mxu0 0
    %1537 = vmatpush1.bf16.msra.mxu0 0
    %1538 = vmatprep.subr.bf16.mxu0 0
    %1539 = vmatpush1.bf16.msra.mxu0 0
    %1540 = vmatprep.subr.bf16.mxu0 0
    %1541 = vmatpush1.bf16.msra.mxu0 0
    %1542 = vmatprep.subr.bf16.mxu0 0
    %1543 = vmatpush1.bf16.msra.mxu0 0
    %1544 = vmatprep.subr.bf16.mxu0 0
    %1545 = vmatpush1.bf16.msra.mxu0 0
    %1546 = vmatprep.mubr.bf16.mxu0 0
    %1547 = vmatmul.mubr.bf16.gmra.mrb[0].mxu0 %v1512
    %v1548 = vpop.f32.mrb[0].mxu0
    %v1549 = vadd.f32 0.0, %v1548
    %v1550 = vpop.f32.mrb[0].mxu0
    %v1551 = vadd.f32 0.0, %v1550
    %v1552 = vpop.f32.mrb[0].mxu0
    %v1553 = vpop.f32.mrb[0].mxu0
    %1554 = vdwg.mxu0
    %v1556 = vrot.slane %v1549, 2
    %v1558 = vadd.f32 %v1241, %v1556
    %v1559 = vxor.u32 %v1558, 2147483648
    %v1560 = vmul.f32 %v1559, 1.442695
    %v1561 = vpow.pop %v1560
    %v1562 = vadd.f32 %v1561, 1.0
    %v1563 = vrcp.pop %v1562
    %v1564 = vmul.f32 1.0, %v1563
    %v1565 = vadd.f32 %v1551, %v1339
    %v1567 = vrot.slane %v1565, 2
    %v1569 = vmul.f32 %v1564, %v1567
    %v1570 = vadd.f32 %v1243, %v1569
    %v1571 = vtanh.pop %v1570
    %v1572 = vsub.f32 1.0, %v1564
    %1574 = vrot.lane.b32.xlu0 %v1571, 64
    %v1575 = vpop.permute.xlu0 %1574
    %v1577 = vmul.f32 %v1572, %v1575
    %v1579 = vrot.slane %v1505, 6
    %v1581 = vmul.f32 %v1564, %v1579
    %v1582 = vadd.f32 %v1577, %v1581
    %v1583 = vpack.c.bf16 %v1582, %v1582
    %v1585 = vrot.slane %v1583, 3
    %1586 = vrot.lane.b32.xlu0 %v1585, 64
    %v1587 = vpop.permute.xlu0 %1586
    %v1589 = vsel %vm514, %v1587, 0
    %1591 = vmatprep.subr.bf16.mxu0 %v1274
    %1592 = vmatpush1.bf16.msra.mxu0 %v1273
    %1593 = vmatprep.subr.bf16.mxu0 %v1276
    %1594 = vmatpush1.bf16.msra.mxu0 %v1275
    %1595 = vmatprep.subr.bf16.mxu0 %v1278
    %1596 = vmatpush1.bf16.msra.mxu0 %v1277
    %1597 = vmatprep.subr.bf16.mxu0 %v1280
    %1598 = vmatpush1.bf16.msra.mxu0 %v1279
    %1599 = vmatprep.subr.bf16.mxu0 0
    %1600 = vmatpush1.bf16.msra.mxu0 0
    %1601 = vmatprep.subr.bf16.mxu0 0
    %1602 = vmatpush1.bf16.msra.mxu0 0
    %1603 = vmatprep.subr.bf16.mxu0 0
    %1604 = vmatpush1.bf16.msra.mxu0 0
    %1605 = vmatprep.subr.bf16.mxu0 0
    %1606 = vmatpush1.bf16.msra.mxu0 0
    %1607 = vmatprep.subr.bf16.mxu0 0
    %1608 = vmatpush1.bf16.msra.mxu0 0
    %1609 = vmatprep.subr.bf16.mxu0 0
    %1610 = vmatpush1.bf16.msra.mxu0 0
    %1611 = vmatprep.subr.bf16.mxu0 0
    %1612 = vmatpush1.bf16.msra.mxu0 0
    %1613 = vmatprep.subr.bf16.mxu0 0
    %1614 = vmatpush1.bf16.msra.mxu0 0
    %1615 = vmatprep.subr.bf16.mxu0 0
    %1616 = vmatpush1.bf16.msra.mxu0 0
    %1617 = vmatprep.subr.bf16.mxu0 0
    %1618 = vmatpush1.bf16.msra.mxu0 0
    %1619 = vmatprep.subr.bf16.mxu0 0
    %1620 = vmatpush1.bf16.msra.mxu0 0
    %1621 = vmatprep.subr.bf16.mxu0 0
    %1622 = vmatpush1.bf16.msra.mxu0 0
    %1623 = vmatprep.mubr.bf16.mxu0 0
    %1624 = vmatmul.mubr.bf16.gmra.mrb[0].mxu0 %v1589
    %v1625 = vpop.f32.mrb[0].mxu0
    %v1626 = vadd.f32 0.0, %v1625
    %v1627 = vpop.f32.mrb[0].mxu0
    %v1628 = vadd.f32 0.0, %v1627
    %v1629 = vpop.f32.mrb[0].mxu0
    %v1630 = vpop.f32.mrb[0].mxu0
    %1631 = vdwg.mxu0
    %v1632 = vadd.f32 %v1245, %v1626
    %v1633 = vxor.u32 %v1632, 2147483648
    %v1634 = vmul.f32 %v1633, 1.442695
    %v1635 = vpow.pop %v1634
    %v1636 = vadd.f32 %v1635, 1.0
    %v1637 = vrcp.pop %v1636
    %v1638 = vmul.f32 1.0, %v1637
    %v1639 = vadd.f32 %v1628, %v1339
    %v1640 = vmul.f32 %v1638, %v1639
    %v1641 = vadd.f32 %v1247, %v1640
    %v1642 = vtanh.pop %v1641
    %v1643 = vsub.f32 1.0, %v1638
    %1645 = vrot.lane.b32.xlu0 %v1642, 64
    %v1646 = vpop.permute.xlu0 %1645
    %v1648 = vmul.f32 %v1643, %v1646
    %v1650 = vrot.slane %v1582, 6
    %v1652 = vmul.f32 %v1638, %v1650
    %v1653 = vadd.f32 %v1648, %v1652
    %v1654 = vpack.c.bf16 %v1653, %v1653
    %1656 = vrot.lane.b32.xlu0 %v1654, 64
    %v1657 = vpop.permute.xlu0 %1656
    %v1659 = vsel %vm514, %v1657, 0
    %1661 = vmatprep.subr.bf16.mxu0 %v1274
    %1662 = vmatpush1.bf16.msra.mxu0 %v1273
    %1663 = vmatprep.subr.bf16.mxu0 %v1276
    %1664 = vmatpush1.bf16.msra.mxu0 %v1275
    %1665 = vmatprep.subr.bf16.mxu0 %v1278
    %1666 = vmatpush1.bf16.msra.mxu0 %v1277
    %1667 = vmatprep.subr.bf16.mxu0 %v1280
    %1668 = vmatpush1.bf16.msra.mxu0 %v1279
    %1669 = vmatprep.subr.bf16.mxu0 0
    %1670 = vmatpush1.bf16.msra.mxu0 0
    %1671 = vmatprep.subr.bf16.mxu0 0
    %1672 = vmatpush1.bf16.msra.mxu0 0
    %1673 = vmatprep.subr.bf16.mxu0 0
    %1674 = vmatpush1.bf16.msra.mxu0 0
    %1675 = vmatprep.subr.bf16.mxu0 0
    %1676 = vmatpush1.bf16.msra.mxu0 0
    %1677 = vmatprep.subr.bf16.mxu0 0
    %1678 = vmatpush1.bf16.msra.mxu0 0
    %1679 = vmatprep.subr.bf16.mxu0 0
    %1680 = vmatpush1.bf16.msra.mxu0 0
    %1681 = vmatprep.subr.bf16.mxu0 0
    %1682 = vmatpush1.bf16.msra.mxu0 0
    %1683 = vmatprep.subr.bf16.mxu0 0
    %1684 = vmatpush1.bf16.msra.mxu0 0
    %1685 = vmatprep.subr.bf16.mxu0 0
    %1686 = vmatpush1.bf16.msra.mxu0 0
    %1687 = vmatprep.subr.bf16.mxu0 0
    %1688 = vmatpush1.bf16.msra.mxu0 0
    %1689 = vmatprep.subr.bf16.mxu0 0
    %1690 = vmatpush1.bf16.msra.mxu0 0
    %1691 = vmatprep.subr.bf16.mxu0 0
    %1692 = vmatpush1.bf16.msra.mxu0 0
    %1693 = vmatprep.mubr.bf16.mxu0 0
    %1694 = vmatmul.mubr.bf16.gmra.mrb[0].mxu0 %v1659
    %v1695 = vpop.f32.mrb[0].mxu0
    %v1696 = vadd.f32 0.0, %v1695
    %v1697 = vpop.f32.mrb[0].mxu0
    %v1698 = vadd.f32 0.0, %v1697
    %v1699 = vpop.f32.mrb[0].mxu0
    %v1700 = vpop.f32.mrb[0].mxu0
    %1701 = vdwg.mxu0
    %v1703 = vrot.slane %v1696, 6
    %v1705 = vadd.f32 %v1245, %v1703
    %v1706 = vxor.u32 %v1705, 2147483648
    %v1707 = vmul.f32 %v1706, 1.442695
    %v1708 = vpow.pop %v1707
    %v1709 = vadd.f32 %v1708, 1.0
    %v1710 = vrcp.pop %v1709
    %v1711 = vmul.f32 1.0, %v1710
    %v1712 = vadd.f32 %v1698, %v1339
    %v1714 = vrot.slane %v1712, 6
    %v1716 = vmul.f32 %v1711, %v1714
    %v1717 = vadd.f32 %v1247, %v1716
    %v1718 = vtanh.pop %v1717
    %v1719 = vsub.f32 1.0, %v1711
    %1721 = vrot.lane.b32.xlu0 %v1718, 64
    %v1722 = vpop.permute.xlu0 %1721
    %v1724 = vmul.f32 %v1719, %v1722
    %v1726 = vrot.slane %v1653, 6
    %v1728 = vmul.f32 %v1711, %v1726
    %v1729 = vadd.f32 %v1724, %v1728
    %v1730 = vpack.c.bf16 %v1729, %v1729
    %v1732 = vrot.slane %v1730, 1
    %1733 = vrot.lane.b32.xlu0 %v1732, 64
    %v1734 = vpop.permute.xlu0 %1733
    %v1736 = vsel %vm514, %v1734, 0
    %1738 = vmatprep.subr.bf16.mxu0 %v1274
    %1739 = vmatpush1.bf16.msra.mxu0 %v1273
    %1740 = vmatprep.subr.bf16.mxu0 %v1276
    %1741 = vmatpush1.bf16.msra.mxu0 %v1275
    %1742 = vmatprep.subr.bf16.mxu0 %v1278
    %1743 = vmatpush1.bf16.msra.mxu0 %v1277
    %1744 = vmatprep.subr.bf16.mxu0 %v1280
    %1745 = vmatpush1.bf16.msra.mxu0 %v1279
    %1746 = vmatprep.subr.bf16.mxu0 0
    %1747 = vmatpush1.bf16.msra.mxu0 0
    %1748 = vmatprep.subr.bf16.mxu0 0
    %1749 = vmatpush1.bf16.msra.mxu0 0
    %1750 = vmatprep.subr.bf16.mxu0 0
    %1751 = vmatpush1.bf16.msra.mxu0 0
    %1752 = vmatprep.subr.bf16.mxu0 0
    %1753 = vmatpush1.bf16.msra.mxu0 0
    %1754 = vmatprep.subr.bf16.mxu0 0
    %1755 = vmatpush1.bf16.msra.mxu0 0
    %1756 = vmatprep.subr.bf16.mxu0 0
    %1757 = vmatpush1.bf16.msra.mxu0 0
    %1758 = vmatprep.subr.bf16.mxu0 0
    %1759 = vmatpush1.bf16.msra.mxu0 0
    %1760 = vmatprep.subr.bf16.mxu0 0
    %1761 = vmatpush1.bf16.msra.mxu0 0
    %1762 = vmatprep.subr.bf16.mxu0 0
    %1763 = vmatpush1.bf16.msra.mxu0 0
    %1764 = vmatprep.subr.bf16.mxu0 0
    %1765 = vmatpush1.bf16.msra.mxu0 0
    %1766 = vmatprep.subr.bf16.mxu0 0
    %1767 = vmatpush1.bf16.msra.mxu0 0
    %1768 = vmatprep.subr.bf16.mxu0 0
    %1769 = vmatpush1.bf16.msra.mxu0 0
    %1770 = vmatprep.mubr.bf16.mxu0 0
    %1771 = vmatmul.mubr.bf16.gmra.mrb[0].mxu0 %v1736
    %v1772 = vpop.f32.mrb[0].mxu0
    %v1773 = vadd.f32 0.0, %v1772
    %v1774 = vpop.f32.mrb[0].mxu0
    %v1775 = vadd.f32 0.0, %v1774
    %v1776 = vpop.f32.mrb[0].mxu0
    %v1777 = vpop.f32.mrb[0].mxu0
    %1778 = vdwg.mxu0
    %v1780 = vrot.slane %v1773, 4
    %v1782 = vadd.f32 %v1245, %v1780
    %v1783 = vxor.u32 %v1782, 2147483648
    %v1784 = vmul.f32 %v1783, 1.442695
    %v1785 = vpow.pop %v1784
    %v1786 = vadd.f32 %v1785, 1.0
    %v1787 = vrcp.pop %v1786
    %v1788 = vmul.f32 1.0, %v1787
    %v1789 = vadd.f32 %v1775, %v1339
    %v1791 = vrot.slane %v1789, 4
    %v1793 = vmul.f32 %v1788, %v1791
    %v1794 = vadd.f32 %v1247, %v1793
    %v1795 = vtanh.pop %v1794
    %v1796 = vsub.f32 1.0, %v1788
    %1798 = vrot.lane.b32.xlu0 %v1795, 64
    %v1799 = vpop.permute.xlu0 %1798
    %v1801 = vmul.f32 %v1796, %v1799
    %v1803 = vrot.slane %v1729, 6
    %v1805 = vmul.f32 %v1788, %v1803
    %v1806 = vadd.f32 %v1801, %v1805
    %v1807 = vpack.c.bf16 %v1806, %v1806
    %v1809 = vrot.slane %v1807, 2
    %1810 = vrot.lane.b32.xlu0 %v1809, 64
    %v1811 = vpop.permute.xlu0 %1810
    %v1813 = vsel %vm514, %v1811, 0
    %1815 = vmatprep.subr.bf16.mxu0 %v1274
    %1816 = vmatpush1.bf16.msra.mxu0 %v1273
    %1817 = vmatprep.subr.bf16.mxu0 %v1276
    %1818 = vmatpush1.bf16.msra.mxu0 %v1275
    %1819 = vmatprep.subr.bf16.mxu0 %v1278
    %1820 = vmatpush1.bf16.msra.mxu0 %v1277
    %1821 = vmatprep.subr.bf16.mxu0 %v1280
    %1822 = vmatpush1.bf16.msra.mxu0 %v1279
    %1823 = vmatprep.subr.bf16.mxu0 0
    %1824 = vmatpush1.bf16.msra.mxu0 0
    %1825 = vmatprep.subr.bf16.mxu0 0
    %1826 = vmatpush1.bf16.msra.mxu0 0
    %1827 = vmatprep.subr.bf16.mxu0 0
    %1828 = vmatpush1.bf16.msra.mxu0 0
    %1829 = vmatprep.subr.bf16.mxu0 0
    %1830 = vmatpush1.bf16.msra.mxu0 0
    %1831 = vmatprep.subr.bf16.mxu0 0
    %1832 = vmatpush1.bf16.msra.mxu0 0
    %1833 = vmatprep.subr.bf16.mxu0 0
    %1834 = vmatpush1.bf16.msra.mxu0 0
    %1835 = vmatprep.subr.bf16.mxu0 0
    %1836 = vmatpush1.bf16.msra.mxu0 0
    %1837 = vmatprep.subr.bf16.mxu0 0
    %1838 = vmatpush1.bf16.msra.mxu0 0
    %1839 = vmatprep.subr.bf16.mxu0 0
    %1840 = vmatpush1.bf16.msra.mxu0 0
    %1841 = vmatprep.subr.bf16.mxu0 0
    %1842 = vmatpush1.bf16.msra.mxu0 0
    %1843 = vmatprep.subr.bf16.mxu0 0
    %1844 = vmatpush1.bf16.msra.mxu0 0
    %1845 = vmatprep.subr.bf16.mxu0 0
    %1846 = vmatpush1.bf16.msra.mxu0 0
    %1847 = vmatprep.mubr.bf16.mxu0 0
    %1848 = vmatmul.mubr.bf16.gmra.mrb[0].mxu0 %v1813
    %v1849 = vpop.f32.mrb[0].mxu0
    %v1850 = vadd.f32 0.0, %v1849
    %v1851 = vpop.f32.mrb[0].mxu0
    %v1852 = vadd.f32 0.0, %v1851
    %v1853 = vpop.f32.mrb[0].mxu0
    %v1854 = vpop.f32.mrb[0].mxu0
    %1855 = vdwg.mxu0
    %v1857 = vrot.slane %v1850, 2
    %v1859 = vadd.f32 %v1245, %v1857
    %v1860 = vxor.u32 %v1859, 2147483648
    %v1861 = vmul.f32 %v1860, 1.442695
    %v1862 = vpow.pop %v1861
    %v1863 = vadd.f32 %v1862, 1.0
    %v1864 = vrcp.pop %v1863
    %v1865 = vmul.f32 1.0, %v1864
    %v1866 = vadd.f32 %v1852, %v1339
    %v1868 = vrot.slane %v1866, 2
    %v1870 = vmul.f32 %v1865, %v1868
    %v1871 = vadd.f32 %v1247, %v1870
    %v1872 = vtanh.pop %v1871
    %v1873 = vsub.f32 1.0, %v1865
    %1875 = vrot.lane.b32.xlu0 %v1872, 64
    %v1876 = vpop.permute.xlu0 %1875
    %v1878 = vmul.f32 %v1873, %v1876
    %v1880 = vrot.slane %v1806, 6
    %v1882 = vmul.f32 %v1865, %v1880
    %v1883 = vadd.f32 %v1878, %v1882
    %vm1884 = vcmask 261120
    %v1885 = vsel %vm1884, %v1049, %v1084
    %v1886 = vsel %vm1884, %v1054, %v1079
    %v1887 = vsel %vm1884, %v1059, %v1074
    %v1888 = vsel %vm1884, %v1064, %v1069
    %v1889 = vsel %vm1884, %v1069, %v1064
    %v1890 = vsel %vm1884, %v1074, %v1059
    %v1891 = vsel %vm1884, %v1079, %v1054
    %v1892 = vsel %vm1884, %v1084, %v1049
    %v1895 = vunpack.c.l.s4 1966171168
    %v1896 = vunpack.c.0.s8 %v1895
    %v1897 = vlaneseq
    %v1898 = vshrl.u32 %v1897, 7
    %v1899 = vsub.s32 %v1896, %v1898
    %v1900 = vrot.slane %v1885, %v1899
    %v1901 = vcombine.high %v1900, %v1900
    %v1903 = vunpack.c.l.s4 1966171168
    %v1904 = vunpack.c.0.s8 %v1903
    %v1905 = vlaneseq
    %v1906 = vshrl.u32 %v1905, 7
    %v1907 = vsub.s32 %v1904, %v1906
    %v1908 = vrot.slane %v1900, %v1907
    %v1910 = vunpack.c.l.s4 1966171168
    %v1911 = vunpack.c.0.s8 %v1910
    %v1912 = vlaneseq
    %v1913 = vshrl.u32 %v1912, 7
    %v1914 = vsub.s32 %v1911, %v1913
    %v1915 = vrot.slane %v1901, %v1914
    %v1920 = vunpack.c.l.s4 1966171168
    %v1921 = vunpack.c.0.s8 %v1920
    %v1922 = vlaneseq
    %v1923 = vshrl.u32 %v1922, 7
    %v1924 = vsub.s32 %v1921, %v1923
    %v1925 = vrot.slane %v1886, %v1924
    %v1926 = vcombine.high %v1925, %v1925
    %v1928 = vunpack.c.l.s4 1966171168
    %v1929 = vunpack.c.0.s8 %v1928
    %v1930 = vlaneseq
    %v1931 = vshrl.u32 %v1930, 7
    %v1932 = vsub.s32 %v1929, %v1931
    %v1933 = vrot.slane %v1925, %v1932
    %v1935 = vunpack.c.l.s4 1966171168
    %v1936 = vunpack.c.0.s8 %v1935
    %v1937 = vlaneseq
    %v1938 = vshrl.u32 %v1937, 7
    %v1939 = vsub.s32 %v1936, %v1938
    %v1940 = vrot.slane %v1926, %v1939
    %v1943 = vunpack.c.l.s4 1966171168
    %v1944 = vunpack.c.0.s8 %v1943
    %v1945 = vlaneseq
    %v1946 = vshrl.u32 %v1945, 7
    %v1947 = vsub.s32 %v1944, %v1946
    %v1948 = vrot.slane %v1887, %v1947
    %v1949 = vcombine.high %v1948, %v1948
    %v1951 = vunpack.c.l.s4 1966171168
    %v1952 = vunpack.c.0.s8 %v1951
    %v1953 = vlaneseq
    %v1954 = vshrl.u32 %v1953, 7
    %v1955 = vsub.s32 %v1952, %v1954
    %v1956 = vrot.slane %v1948, %v1955
    %v1958 = vunpack.c.l.s4 1966171168
    %v1959 = vunpack.c.0.s8 %v1958
    %v1960 = vlaneseq
    %v1961 = vshrl.u32 %v1960, 7
    %v1962 = vsub.s32 %v1959, %v1961
    %v1963 = vrot.slane %v1949, %v1962
    %v1966 = vunpack.c.l.s4 1966171168
    %v1967 = vunpack.c.0.s8 %v1966
    %v1968 = vlaneseq
    %v1969 = vshrl.u32 %v1968, 7
    %v1970 = vsub.s32 %v1967, %v1969
    %v1971 = vrot.slane %v1888, %v1970
    %v1972 = vcombine.high %v1971, %v1971
    %v1974 = vunpack.c.l.s4 1966171168
    %v1975 = vunpack.c.0.s8 %v1974
    %v1976 = vlaneseq
    %v1977 = vshrl.u32 %v1976, 7
    %v1978 = vsub.s32 %v1975, %v1977
    %v1979 = vrot.slane %v1971, %v1978
    %v1981 = vunpack.c.l.s4 1966171168
    %v1982 = vunpack.c.0.s8 %v1981
    %v1983 = vlaneseq
    %v1984 = vshrl.u32 %v1983, 7
    %v1985 = vsub.s32 %v1982, %v1984
    %v1986 = vrot.slane %v1972, %v1985
    %v1989 = vunpack.c.l.s4 1966171168
    %v1990 = vunpack.c.0.s8 %v1989
    %v1991 = vlaneseq
    %v1992 = vshrl.u32 %v1991, 7
    %v1993 = vsub.s32 %v1990, %v1992
    %v1994 = vrot.slane %v1889, %v1993
    %v1995 = vcombine.high %v1994, %v1994
    %v1997 = vunpack.c.l.s4 1966171168
    %v1998 = vunpack.c.0.s8 %v1997
    %v1999 = vlaneseq
    %v2000 = vshrl.u32 %v1999, 7
    %v2001 = vsub.s32 %v1998, %v2000
    %v2002 = vrot.slane %v1994, %v2001
    %v2004 = vunpack.c.l.s4 1966171168
    %v2005 = vunpack.c.0.s8 %v2004
    %v2006 = vlaneseq
    %v2007 = vshrl.u32 %v2006, 7
    %v2008 = vsub.s32 %v2005, %v2007
    %v2009 = vrot.slane %v1995, %v2008
    %v2012 = vunpack.c.l.s4 1966171168
    %v2013 = vunpack.c.0.s8 %v2012
    %v2014 = vlaneseq
    %v2015 = vshrl.u32 %v2014, 7
    %v2016 = vsub.s32 %v2013, %v2015
    %v2017 = vrot.slane %v1890, %v2016
    %v2018 = vcombine.high %v2017, %v2017
    %v2020 = vunpack.c.l.s4 1966171168
    %v2021 = vunpack.c.0.s8 %v2020
    %v2022 = vlaneseq
    %v2023 = vshrl.u32 %v2022, 7
    %v2024 = vsub.s32 %v2021, %v2023
    %v2025 = vrot.slane %v2017, %v2024
    %v2027 = vunpack.c.l.s4 1966171168
    %v2028 = vunpack.c.0.s8 %v2027
    %v2029 = vlaneseq
    %v2030 = vshrl.u32 %v2029, 7
    %v2031 = vsub.s32 %v2028, %v2030
    %v2032 = vrot.slane %v2018, %v2031
    %v2035 = vunpack.c.l.s4 1966171168
    %v2036 = vunpack.c.0.s8 %v2035
    %v2037 = vlaneseq
    %v2038 = vshrl.u32 %v2037, 7
    %v2039 = vsub.s32 %v2036, %v2038
    %v2040 = vrot.slane %v1891, %v2039
    %v2041 = vcombine.high %v2040, %v2040
    %v2043 = vunpack.c.l.s4 1966171168
    %v2044 = vunpack.c.0.s8 %v2043
    %v2045 = vlaneseq
    %v2046 = vshrl.u32 %v2045, 7
    %v2047 = vsub.s32 %v2044, %v2046
    %v2048 = vrot.slane %v2040, %v2047
    %v2050 = vunpack.c.l.s4 1966171168
    %v2051 = vunpack.c.0.s8 %v2050
    %v2052 = vlaneseq
    %v2053 = vshrl.u32 %v2052, 7
    %v2054 = vsub.s32 %v2051, %v2053
    %v2055 = vrot.slane %v2041, %v2054
    %v2058 = vunpack.c.l.s4 1966171168
    %v2059 = vunpack.c.0.s8 %v2058
    %v2060 = vlaneseq
    %v2061 = vshrl.u32 %v2060, 7
    %v2062 = vsub.s32 %v2059, %v2061
    %v2063 = vrot.slane %v1892, %v2062
    %v2064 = vcombine.high %v2063, %v2063
    %v2066 = vunpack.c.l.s4 1966171168
    %v2067 = vunpack.c.0.s8 %v2066
    %v2068 = vlaneseq
    %v2069 = vshrl.u32 %v2068, 7
    %v2070 = vsub.s32 %v2067, %v2069
    %v2071 = vrot.slane %v2063, %v2070
    %v2073 = vunpack.c.l.s4 1966171168
    %v2074 = vunpack.c.0.s8 %v2073
    %v2075 = vlaneseq
    %v2076 = vshrl.u32 %v2075, 7
    %v2077 = vsub.s32 %v2074, %v2076
    %v2078 = vrot.slane %v2064, %v2077
    %v2079 = vlaneseq
    %v2080 = vshrl.u32 %v2079, 7
    %v2081 = vsub.s32 0, %v2080
    %v2082 = vrot.slane %v1933, %v2081
    %v2083 = vlaneseq
    %v2084 = vshrl.u32 %v2083, 7
    %v2085 = vsub.s32 0, %v2084
    %v2086 = vrot.slane %v1940, %v2085
    %v2089 = vlaneseq
    %v2090 = vshrl.u32 %v2089, 7
    %v2091 = vsub.s32 0, %v2090
    %v2092 = vrot.slane %v1956, %v2091
    %v2093 = vlaneseq
    %v2094 = vshrl.u32 %v2093, 7
    %v2095 = vsub.s32 0, %v2094
    %v2096 = vrot.slane %v1963, %v2095
    %v2099 = vlaneseq
    %v2100 = vshrl.u32 %v2099, 7
    %v2101 = vsub.s32 0, %v2100
    %v2102 = vrot.slane %v1979, %v2101
    %v2103 = vlaneseq
    %v2104 = vshrl.u32 %v2103, 7
    %v2105 = vsub.s32 0, %v2104
    %v2106 = vrot.slane %v1986, %v2105
    %v2109 = vlaneseq
    %v2110 = vshrl.u32 %v2109, 7
    %v2111 = vsub.s32 0, %v2110
    %v2112 = vrot.slane %v2002, %v2111
    %v2113 = vlaneseq
    %v2114 = vshrl.u32 %v2113, 7
    %v2115 = vsub.s32 0, %v2114
    %v2116 = vrot.slane %v2009, %v2115
    %v2119 = vlaneseq
    %v2120 = vshrl.u32 %v2119, 7
    %v2121 = vsub.s32 0, %v2120
    %v2122 = vrot.slane %v2025, %v2121
    %v2123 = vlaneseq
    %v2124 = vshrl.u32 %v2123, 7
    %v2125 = vsub.s32 0, %v2124
    %v2126 = vrot.slane %v2032, %v2125
    %v2129 = vlaneseq
    %v2130 = vshrl.u32 %v2129, 7
    %v2131 = vsub.s32 0, %v2130
    %v2132 = vrot.slane %v2048, %v2131
    %v2133 = vlaneseq
    %v2134 = vshrl.u32 %v2133, 7
    %v2135 = vsub.s32 0, %v2134
    %v2136 = vrot.slane %v2055, %v2135
    %v2139 = vlaneseq
    %v2140 = vshrl.u32 %v2139, 7
    %v2141 = vsub.s32 0, %v2140
    %v2142 = vrot.slane %v2071, %v2141
    %v2143 = vlaneseq
    %v2144 = vshrl.u32 %v2143, 7
    %v2145 = vsub.s32 0, %v2144
    %v2146 = vrot.slane %v2078, %v2145
    %v2149 = vsel %vm137, %v1908, %v2082
    %v2150 = vsel %vm137, %v1915, %v2086
    %v2151 = vsel %vm1105, %v2149, %v2092
    %v2152 = vsel %vm1105, %v2150, %v2096
    %vm2153 = vcmask 1042432
    %v2154 = vsel %vm2153, %v2151, %v2102
    %v2155 = vsel %vm2153, %v2152, %v2106
    %v2156 = vsel %vm1107, %v2154, %v2112
    %v2157 = vsel %vm1107, %v2155, %v2116
    %vm2158 = vcmask 1044480
    %v2159 = vsel %vm2158, %v2156, %v2122
    %v2160 = vsel %vm2158, %v2157, %v2126
    %v2161 = vsel %vm1109, %v2159, %v2132
    %v2162 = vsel %vm1109, %v2160, %v2136
    %vm2163 = vcmask 1046528
    %v2164 = vsel %vm2163, %v2161, %v2142
    %v2165 = vsel %vm2163, %v2162, %v2146
    %2166 = vrot.lane.b32.xlu0 %v1352, 64
    %v2167 = vpop.permute.xlu0 %2166
    %v2170 = vrot.slane %v1883, 6
    %2171 = vrot.lane.b32.xlu0 %v2170, 64
    %v2172 = vpop.permute.xlu0 %2171
    %v2174 = vsel %vm1884, %v2167, %v2172
    %2175 = vrot.lane.b32.xlu0 %v1428, 64
    %v2176 = vpop.permute.xlu0 %2175
    %v2178 = vrot.slane %v1806, 2
    %2179 = vrot.lane.b32.xlu0 %v2178, 64
    %v2180 = vpop.permute.xlu0 %2179
    %v2182 = vsel %vm1884, %v2176, %v2180
    %2183 = vrot.lane.b32.xlu0 %v1505, 64
    %v2184 = vpop.permute.xlu0 %2183
    %2186 = vrot.lane.b32.xlu0 %v1803, 64
    %v2187 = vpop.permute.xlu0 %2186
    %v2189 = vsel %vm1884, %v2184, %v2187
    %2190 = vrot.lane.b32.xlu0 %v1582, 64
    %v2191 = vpop.permute.xlu0 %2190
    %v2193 = vrot.slane %v1653, 2
    %2194 = vrot.lane.b32.xlu0 %v2193, 64
    %v2195 = vpop.permute.xlu0 %2194
    %v2197 = vsel %vm1884, %v2191, %v2195
    %2198 = vrot.lane.b32.xlu0 %v1653, 64
    %v2199 = vpop.permute.xlu0 %2198
    %2201 = vrot.lane.b32.xlu0 %v1650, 64
    %v2202 = vpop.permute.xlu0 %2201
    %v2204 = vsel %vm1884, %v2199, %v2202
    %2205 = vrot.lane.b32.xlu0 %v1729, 64
    %v2206 = vpop.permute.xlu0 %2205
    %v2208 = vrot.slane %v1505, 2
    %2209 = vrot.lane.b32.xlu0 %v2208, 64
    %v2210 = vpop.permute.xlu0 %2209
    %v2212 = vsel %vm1884, %v2206, %v2210
    %2213 = vrot.lane.b32.xlu0 %v1806, 64
    %v2214 = vpop.permute.xlu0 %2213
    %2216 = vrot.lane.b32.xlu0 %v1502, 64
    %v2217 = vpop.permute.xlu0 %2216
    %v2219 = vsel %vm1884, %v2214, %v2217
    %2220 = vrot.lane.b32.xlu0 %v1883, 64
    %v2221 = vpop.permute.xlu0 %2220
    %v2223 = vrot.slane %v1352, 2
    %2224 = vrot.lane.b32.xlu0 %v2223, 64
    %v2225 = vpop.permute.xlu0 %2224
    %v2227 = vsel %vm1884, %v2221, %v2225
    %v2230 = vunpack.c.l.s4 1966171168
    %v2231 = vunpack.c.0.s8 %v2230
    %v2232 = vlaneseq
    %v2233 = vshrl.u32 %v2232, 7
    %v2234 = vsub.s32 %v2231, %v2233
    %v2235 = vrot.slane %v2174, %v2234
    %v2236 = vcombine.high %v2235, %v2235
    %v2238 = vunpack.c.l.s4 1966171168
    %v2239 = vunpack.c.0.s8 %v2238
    %v2240 = vlaneseq
    %v2241 = vshrl.u32 %v2240, 7
    %v2242 = vsub.s32 %v2239, %v2241
    %v2243 = vrot.slane %v2235, %v2242
    %v2245 = vunpack.c.l.s4 1966171168
    %v2246 = vunpack.c.0.s8 %v2245
    %v2247 = vlaneseq
    %v2248 = vshrl.u32 %v2247, 7
    %v2249 = vsub.s32 %v2246, %v2248
    %v2250 = vrot.slane %v2236, %v2249
    %v2255 = vunpack.c.l.s4 1966171168
    %v2256 = vunpack.c.0.s8 %v2255
    %v2257 = vlaneseq
    %v2258 = vshrl.u32 %v2257, 7
    %v2259 = vsub.s32 %v2256, %v2258
    %v2260 = vrot.slane %v2182, %v2259
    %v2261 = vcombine.high %v2260, %v2260
    %v2263 = vunpack.c.l.s4 1966171168
    %v2264 = vunpack.c.0.s8 %v2263
    %v2265 = vlaneseq
    %v2266 = vshrl.u32 %v2265, 7
    %v2267 = vsub.s32 %v2264, %v2266
    %v2268 = vrot.slane %v2260, %v2267
    %v2270 = vunpack.c.l.s4 1966171168
    %v2271 = vunpack.c.0.s8 %v2270
    %v2272 = vlaneseq
    %v2273 = vshrl.u32 %v2272, 7
    %v2274 = vsub.s32 %v2271, %v2273
    %v2275 = vrot.slane %v2261, %v2274
    %v2276 = vcombine.high %v2268, %v2268
    %v2277 = vcombine.high %v2275, %v2275
    %v2279 = vcombine.high %v2189, %v2189
    %v2281 = vunpack.c.l.s4 1966171168
    %v2282 = vunpack.c.0.s8 %v2281
    %v2283 = vlaneseq
    %v2284 = vshrl.u32 %v2283, 7
    %v2285 = vsub.s32 %v2282, %v2284
    %v2286 = vrot.slane %v2279, %v2285
    %v2287 = vcombine.high %v2286, %v2286
    %v2289 = vunpack.c.l.s4 1966171168
    %v2290 = vunpack.c.0.s8 %v2289
    %v2291 = vlaneseq
    %v2292 = vshrl.u32 %v2291, 7
    %v2293 = vsub.s32 %v2290, %v2292
    %v2294 = vrot.slane %v2286, %v2293
    %v2296 = vunpack.c.l.s4 1966171168
    %v2297 = vunpack.c.0.s8 %v2296
    %v2298 = vlaneseq
    %v2299 = vshrl.u32 %v2298, 7
    %v2300 = vsub.s32 %v2297, %v2299
    %v2301 = vrot.slane %v2287, %v2300
    %v2303 = vcombine.high %v2197, %v2197
    %v2305 = vunpack.c.l.s4 1966171168
    %v2306 = vunpack.c.0.s8 %v2305
    %v2307 = vlaneseq
    %v2308 = vshrl.u32 %v2307, 7
    %v2309 = vsub.s32 %v2306, %v2308
    %v2310 = vrot.slane %v2303, %v2309
    %v2311 = vcombine.high %v2310, %v2310
    %v2313 = vunpack.c.l.s4 1966171168
    %v2314 = vunpack.c.0.s8 %v2313
    %v2315 = vlaneseq
    %v2316 = vshrl.u32 %v2315, 7
    %v2317 = vsub.s32 %v2314, %v2316
    %v2318 = vrot.slane %v2310, %v2317
    %v2320 = vunpack.c.l.s4 1966171168
    %v2321 = vunpack.c.0.s8 %v2320
    %v2322 = vlaneseq
    %v2323 = vshrl.u32 %v2322, 7
    %v2324 = vsub.s32 %v2321, %v2323
    %v2325 = vrot.slane %v2311, %v2324
    %v2326 = vcombine.high %v2318, %v2318
    %v2327 = vcombine.high %v2325, %v2325
    %v2330 = vunpack.c.l.s4 1966171168
    %v2331 = vunpack.c.0.s8 %v2330
    %v2332 = vlaneseq
    %v2333 = vshrl.u32 %v2332, 7
    %v2334 = vsub.s32 %v2331, %v2333
    %v2335 = vrot.slane %v2204, %v2334
    %v2336 = vcombine.high %v2335, %v2335
    %v2338 = vunpack.c.l.s4 1966171168
    %v2339 = vunpack.c.0.s8 %v2338
    %v2340 = vlaneseq
    %v2341 = vshrl.u32 %v2340, 7
    %v2342 = vsub.s32 %v2339, %v2341
    %v2343 = vrot.slane %v2335, %v2342
    %v2345 = vunpack.c.l.s4 1966171168
    %v2346 = vunpack.c.0.s8 %v2345
    %v2347 = vlaneseq
    %v2348 = vshrl.u32 %v2347, 7
    %v2349 = vsub.s32 %v2346, %v2348
    %v2350 = vrot.slane %v2336, %v2349
    %v2353 = vunpack.c.l.s4 1966171168
    %v2354 = vunpack.c.0.s8 %v2353
    %v2355 = vlaneseq
    %v2356 = vshrl.u32 %v2355, 7
    %v2357 = vsub.s32 %v2354, %v2356
    %v2358 = vrot.slane %v2212, %v2357
    %v2359 = vcombine.high %v2358, %v2358
    %v2361 = vunpack.c.l.s4 1966171168
    %v2362 = vunpack.c.0.s8 %v2361
    %v2363 = vlaneseq
    %v2364 = vshrl.u32 %v2363, 7
    %v2365 = vsub.s32 %v2362, %v2364
    %v2366 = vrot.slane %v2358, %v2365
    %v2368 = vunpack.c.l.s4 1966171168
    %v2369 = vunpack.c.0.s8 %v2368
    %v2370 = vlaneseq
    %v2371 = vshrl.u32 %v2370, 7
    %v2372 = vsub.s32 %v2369, %v2371
    %v2373 = vrot.slane %v2359, %v2372
    %v2374 = vcombine.high %v2366, %v2366
    %v2375 = vcombine.high %v2373, %v2373
    %v2377 = vcombine.high %v2219, %v2219
    %v2379 = vunpack.c.l.s4 1966171168
    %v2380 = vunpack.c.0.s8 %v2379
    %v2381 = vlaneseq
    %v2382 = vshrl.u32 %v2381, 7
    %v2383 = vsub.s32 %v2380, %v2382
    %v2384 = vrot.slane %v2377, %v2383
    %v2385 = vcombine.high %v2384, %v2384
    %v2387 = vunpack.c.l.s4 1966171168
    %v2388 = vunpack.c.0.s8 %v2387
    %v2389 = vlaneseq
    %v2390 = vshrl.u32 %v2389, 7
    %v2391 = vsub.s32 %v2388, %v2390
    %v2392 = vrot.slane %v2384, %v2391
    %v2394 = vunpack.c.l.s4 1966171168
    %v2395 = vunpack.c.0.s8 %v2394
    %v2396 = vlaneseq
    %v2397 = vshrl.u32 %v2396, 7
    %v2398 = vsub.s32 %v2395, %v2397
    %v2399 = vrot.slane %v2385, %v2398
    %v2401 = vcombine.high %v2227, %v2227
    %v2403 = vunpack.c.l.s4 1966171168
    %v2404 = vunpack.c.0.s8 %v2403
    %v2405 = vlaneseq
    %v2406 = vshrl.u32 %v2405, 7
    %v2407 = vsub.s32 %v2404, %v2406
    %v2408 = vrot.slane %v2401, %v2407
    %v2409 = vcombine.high %v2408, %v2408
    %v2411 = vunpack.c.l.s4 1966171168
    %v2412 = vunpack.c.0.s8 %v2411
    %v2413 = vlaneseq
    %v2414 = vshrl.u32 %v2413, 7
    %v2415 = vsub.s32 %v2412, %v2414
    %v2416 = vrot.slane %v2408, %v2415
    %v2418 = vunpack.c.l.s4 1966171168
    %v2419 = vunpack.c.0.s8 %v2418
    %v2420 = vlaneseq
    %v2421 = vshrl.u32 %v2420, 7
    %v2422 = vsub.s32 %v2419, %v2421
    %v2423 = vrot.slane %v2409, %v2422
    %v2424 = vcombine.high %v2416, %v2416
    %v2425 = vcombine.high %v2423, %v2423
    %v2426 = vlaneseq
    %v2427 = vshrl.u32 %v2426, 7
    %v2428 = vsub.s32 0, %v2427
    %v2429 = vrot.slane %v2276, %v2428
    %v2430 = vlaneseq
    %v2431 = vshrl.u32 %v2430, 7
    %v2432 = vsub.s32 0, %v2431
    %v2433 = vrot.slane %v2277, %v2432
    %v2436 = vlaneseq
    %v2437 = vshrl.u32 %v2436, 7
    %v2438 = vsub.s32 0, %v2437
    %v2439 = vrot.slane %v2294, %v2438
    %v2440 = vlaneseq
    %v2441 = vshrl.u32 %v2440, 7
    %v2442 = vsub.s32 0, %v2441
    %v2443 = vrot.slane %v2301, %v2442
    %v2446 = vlaneseq
    %v2447 = vshrl.u32 %v2446, 7
    %v2448 = vsub.s32 0, %v2447
    %v2449 = vrot.slane %v2326, %v2448
    %v2450 = vlaneseq
    %v2451 = vshrl.u32 %v2450, 7
    %v2452 = vsub.s32 0, %v2451
    %v2453 = vrot.slane %v2327, %v2452
    %v2456 = vlaneseq
    %v2457 = vshrl.u32 %v2456, 7
    %v2458 = vsub.s32 0, %v2457
    %v2459 = vrot.slane %v2343, %v2458
    %v2460 = vlaneseq
    %v2461 = vshrl.u32 %v2460, 7
    %v2462 = vsub.s32 0, %v2461
    %v2463 = vrot.slane %v2350, %v2462
    %v2466 = vlaneseq
    %v2467 = vshrl.u32 %v2466, 7
    %v2468 = vsub.s32 0, %v2467
    %v2469 = vrot.slane %v2374, %v2468
    %v2470 = vlaneseq
    %v2471 = vshrl.u32 %v2470, 7
    %v2472 = vsub.s32 0, %v2471
    %v2473 = vrot.slane %v2375, %v2472
    %v2476 = vlaneseq
    %v2477 = vshrl.u32 %v2476, 7
    %v2478 = vsub.s32 0, %v2477
    %v2479 = vrot.slane %v2392, %v2478
    %v2480 = vlaneseq
    %v2481 = vshrl.u32 %v2480, 7
    %v2482 = vsub.s32 0, %v2481
    %v2483 = vrot.slane %v2399, %v2482
    %v2486 = vlaneseq
    %v2487 = vshrl.u32 %v2486, 7
    %v2488 = vsub.s32 0, %v2487
    %v2489 = vrot.slane %v2424, %v2488
    %v2490 = vlaneseq
    %v2491 = vshrl.u32 %v2490, 7
    %v2492 = vsub.s32 0, %v2491
    %v2493 = vrot.slane %v2425, %v2492
    %v2496 = vsel %vm137, %v2243, %v2429
    %v2497 = vsel %vm137, %v2250, %v2433
    %v2498 = vsel %vm1105, %v2496, %v2439
    %v2499 = vsel %vm1105, %v2497, %v2443
    %v2500 = vsel %vm2153, %v2498, %v2449
    %v2501 = vsel %vm2153, %v2499, %v2453
    %v2502 = vsel %vm1107, %v2500, %v2459
    %v2503 = vsel %vm1107, %v2501, %v2463
    %v2504 = vsel %vm2158, %v2502, %v2469
    %v2505 = vsel %vm2158, %v2503, %v2473
    %v2506 = vsel %vm1109, %v2504, %v2479
    %v2507 = vsel %vm1109, %v2505, %v2483
    %v2508 = vsel %vm2163, %v2506, %v2489
    %v2509 = vsel %vm2163, %v2507, %v2493
    %v2510 = vmul.f32 %v2164, %v71
    %v2511 = vmul.f32 %v2165, %v71
    %v2512 = vsel %vm514, %v2510, 0.0
    %2513 = vadd.xlane.f32.xlu0 %v2512
    %v2514 = vpop.xlane.xlu0 %2513
    %v2515 = vsel %vm514, %v2511, 0.0
    %2516 = vadd.xlane.f32.xlu0 %v2515
    %v2517 = vpop.xlane.xlu0 %2516
    %v2518 = vtanh.pop %v2514
    %v2519 = vtanh.pop %v2517
    %v2520 = vmul.f32 %v2518, 1.442695
    %v2521 = vpow.pop %v2520
    %v2522 = vmul.f32 %v2519, 1.442695
    %v2523 = vpow.pop %v2522
    %v2524 = vrot.slane %v2521, 4
    %v2525 = vadd.f32 %v2521, %v2524
    %v2526 = vrot.slane %v2525, 2
    %v2527 = vadd.f32 %v2525, %v2526
    %v2528 = vrot.slane %v2527, 1
    %v2529 = vadd.f32 %v2527, %v2528
    %v2530 = vrot.slane %v2523, 4
    %v2531 = vadd.f32 %v2523, %v2530
    %v2532 = vrot.slane %v2531, 2
    %v2533 = vadd.f32 %v2531, %v2532
    %v2534 = vrot.slane %v2533, 1
    %v2535 = vadd.f32 %v2533, %v2534
    %v2536 = vrcp.pop %v2529
    %v2537 = vrcp.pop %v2535
    %v2538 = vmul.f32 %v2521, %v2536
    %v2539 = vmul.f32 %v2523, %v2537
    %v2540 = vmul.f32 %v2538, %v2164
    %v2541 = vmul.f32 %v2539, %v2165
    %v2542 = vsel %vm514, %v2540, 0.0
    %v2543 = vrot.slane %v2542, 4
    %v2544 = vadd.f32 %v2542, %v2543
    %v2545 = vrot.slane %v2544, 2
    %v2546 = vadd.f32 %v2544, %v2545
    %v2547 = vrot.slane %v2546, 1
    %v2548 = vadd.f32 %v2546, %v2547
    %v2549 = vsel %vm514, %v2541, 0.0
    %v2550 = vrot.slane %v2549, 4
    %v2551 = vadd.f32 %v2549, %v2550
    %v2552 = vrot.slane %v2551, 2
    %v2553 = vadd.f32 %v2551, %v2552
    %v2554 = vrot.slane %v2553, 1
    %v2555 = vadd.f32 %v2553, %v2554
    %2557 = vrot.lane.b32.xlu0 %v71, 64
    %v2558 = vpop.permute.xlu0 %2557
    %v2560 = vmul.f32 %v2508, %v2558
    %v2561 = vmul.f32 %v2509, %v2558
    %v2562 = vsel %vm514, %v2560, 0.0
    %2563 = vadd.xlane.f32.xlu0 %v2562
    %v2564 = vpop.xlane.xlu0 %2563
    %v2565 = vsel %vm514, %v2561, 0.0
    %2566 = vadd.xlane.f32.xlu0 %v2565
    %v2567 = vpop.xlane.xlu0 %2566
    %v2568 = vtanh.pop %v2564
    %v2569 = vtanh.pop %v2567
    %v2570 = vmul.f32 %v2568, 1.442695
    %v2571 = vpow.pop %v2570
    %v2572 = vmul.f32 %v2569, 1.442695
    %v2573 = vpow.pop %v2572
    %v2574 = vrot.slane %v2571, 4
    %v2575 = vadd.f32 %v2571, %v2574
    %v2576 = vrot.slane %v2575, 2
    %v2577 = vadd.f32 %v2575, %v2576
    %v2578 = vrot.slane %v2577, 1
    %v2579 = vadd.f32 %v2577, %v2578
    %v2580 = vrot.slane %v2573, 4
    %v2581 = vadd.f32 %v2573, %v2580
    %v2582 = vrot.slane %v2581, 2
    %v2583 = vadd.f32 %v2581, %v2582
    %v2584 = vrot.slane %v2583, 1
    %v2585 = vadd.f32 %v2583, %v2584
    %v2586 = vrcp.pop %v2579
    %v2587 = vrcp.pop %v2585
    %v2588 = vmul.f32 %v2571, %v2586
    %v2589 = vmul.f32 %v2573, %v2587
    %v2590 = vmul.f32 %v2588, %v2508
    %v2591 = vmul.f32 %v2589, %v2509
    %v2592 = vsel %vm514, %v2590, 0.0
    %v2593 = vrot.slane %v2592, 4
    %v2594 = vadd.f32 %v2592, %v2593
    %v2595 = vrot.slane %v2594, 2
    %v2596 = vadd.f32 %v2594, %v2595
    %v2597 = vrot.slane %v2596, 1
    %v2598 = vadd.f32 %v2596, %v2597
    %v2599 = vsel %vm514, %v2591, 0.0
    %v2600 = vrot.slane %v2599, 4
    %v2601 = vadd.f32 %v2599, %v2600
    %v2602 = vrot.slane %v2601, 2
    %v2603 = vadd.f32 %v2601, %v2602
    %v2604 = vrot.slane %v2603, 1
    %v2605 = vadd.f32 %v2603, %v2604
    %v2606 = vsel %vm514, %v2508, 0.0
    %v2607 = vrot.slane %v2606, 4
    %v2608 = vadd.f32 %v2606, %v2607
    %v2609 = vrot.slane %v2608, 2
    %v2610 = vadd.f32 %v2608, %v2609
    %v2611 = vrot.slane %v2610, 1
    %v2612 = vadd.f32 %v2610, %v2611
    %v2613 = vsel %vm514, %v2509, 0.0
    %v2614 = vrot.slane %v2613, 4
    %v2615 = vadd.f32 %v2613, %v2614
    %v2616 = vrot.slane %v2615, 2
    %v2617 = vadd.f32 %v2615, %v2616
    %v2618 = vrot.slane %v2617, 1
    %v2619 = vadd.f32 %v2617, %v2618
    %v2620 = vrcp.pop 8.0
    %v2621 = vmul.f32 %v2612, %v2620
    %v2622 = vmul.f32 %v2619, %v2620
    %v2623 = vsel %vm514, %v2508, -inf
    %v2624 = vrot.slane %v2623, 4
    %v2625 = vmax.f32 %v2623, %v2624
    %v2626 = vrot.slane %v2625, 2
    %v2627 = vmax.f32 %v2625, %v2626
    %v2628 = vrot.slane %v2627, 1
    %v2629 = vmax.f32 %v2627, %v2628
    %v2630 = vsel %vm514, %v2509, -inf
    %v2631 = vrot.slane %v2630, 4
    %v2632 = vmax.f32 %v2630, %v2631
    %v2633 = vrot.slane %v2632, 2
    %v2634 = vmax.f32 %v2632, %v2633
    %v2635 = vrot.slane %v2634, 1
    %v2636 = vmax.f32 %v2634, %v2635
    %v2637 = vpack.c.bf16 %v2548, %v2548
    %v2638 = vpack.c.bf16 %v2555, %v2555
    %v2639 = vld [vmem:[%s4] sm:$0xf]
    %v2640 = vld [vmem:[%s4 + $0x4] sm:$0xf]
    %v2641 = vld [vmem:[%s4 + $0x8] sm:$0xf]
    %v2642 = vld [vmem:[%s4 + $0xc] sm:$0xf]
    %v2643 = vld [vmem:[%s4 + $0x10] sm:$0xf]
    %v2644 = vld [vmem:[%s4 + $0x14] sm:$0xf]
    %v2645 = vld [vmem:[%s4 + $0x18] sm:$0xf]
    %v2646 = vld [vmem:[%s4 + $0x1c] sm:$0xf]
    %v2647 = vpack.c.bf16 %v2598, %v2598
    %v2648 = vpack.c.bf16 %v2605, %v2605
    %v2649 = vld [vmem:[%s4 + $0x20] sm:$0xf]
    %v2650 = vld [vmem:[%s4 + $0x24] sm:$0xf]
    %v2651 = vld [vmem:[%s4 + $0x28] sm:$0xf]
    %v2652 = vld [vmem:[%s4 + $0x2c] sm:$0xf]
    %v2653 = vld [vmem:[%s4 + $0x30] sm:$0xf]
    %v2654 = vld [vmem:[%s4 + $0x34] sm:$0xf]
    %v2655 = vld [vmem:[%s4 + $0x38] sm:$0xf]
    %v2656 = vld [vmem:[%s4 + $0x3c] sm:$0xf]
    %v2659 = vunpack.c.l.b16 %v2647
    %v2660 = vunpack.c.l.b16 %v2648
    %vm2661 = vcmask 1041409
    %v2662 = vsel %vm2661, %v2660, %v2659
    %v2663 = vpack.c.b16 %v2662, %v2662
    %v2672 = vunpack.c.l.b16 %v2649
    %v2673 = vunpack.c.l.b16 %v2650
    %v2674 = vunpack.c.l.b16 %v2651
    %v2675 = vunpack.c.l.b16 %v2652
    %v2676 = vunpack.c.l.b16 %v2653
    %v2677 = vunpack.c.l.b16 %v2654
    %v2678 = vunpack.c.l.b16 %v2655
    %v2679 = vunpack.c.l.b16 %v2656
    %v2680 = vpack.c.b16 %v2673, %v2672
    %v2681 = vpack.c.b16 %v2675, %v2674
    %v2682 = vpack.c.b16 %v2677, %v2676
    %v2683 = vpack.c.b16 %v2679, %v2678
    %v2689 = vsel %vm514, %v2663, 0
    %2691 = vmatprep.subr.bf16.mxu0 0
    %2692 = vmatpush1.bf16.msra.mxu0 %v2680
    %2693 = vmatprep.subr.bf16.mxu0 0
    %2694 = vmatpush1.bf16.msra.mxu0 %v2681
    %2695 = vmatprep.subr.bf16.mxu0 0
    %2696 = vmatpush1.bf16.msra.mxu0 %v2682
    %2697 = vmatprep.subr.bf16.mxu0 0
    %2698 = vmatpush1.bf16.msra.mxu0 %v2683
    %2699 = vmatprep.subr.bf16.mxu0 0
    %2700 = vmatpush1.bf16.msra.mxu0 0
    %2701 = vmatprep.subr.bf16.mxu0 0
    %2702 = vmatpush1.bf16.msra.mxu0 0
    %2703 = vmatprep.subr.bf16.mxu0 0
    %2704 = vmatpush1.bf16.msra.mxu0 0
    %2705 = vmatprep.subr.bf16.mxu0 0
    %2706 = vmatpush1.bf16.msra.mxu0 0
    %2707 = vmatprep.subr.bf16.mxu0 0
    %2708 = vmatpush1.bf16.msra.mxu0 0
    %2709 = vmatprep.subr.bf16.mxu0 0
    %2710 = vmatpush1.bf16.msra.mxu0 0
    %2711 = vmatprep.subr.bf16.mxu0 0
    %2712 = vmatpush1.bf16.msra.mxu0 0
    %2713 = vmatprep.subr.bf16.mxu0 0
    %2714 = vmatpush1.bf16.msra.mxu0 0
    %2715 = vmatprep.subr.bf16.mxu0 0
    %2716 = vmatpush1.bf16.msra.mxu0 0
    %2717 = vmatprep.subr.bf16.mxu0 0
    %2718 = vmatpush1.bf16.msra.mxu0 0
    %2719 = vmatprep.subr.bf16.mxu0 0
    %2720 = vmatpush1.bf16.msra.mxu0 0
    %2721 = vmatprep.subr.bf16.mxu0 0
    %2722 = vmatpush1.bf16.msra.mxu0 0
    %2723 = vmatprep.mubr.bf16.mxu0 0
    %2724 = vmatmul.mubr.bf16.gmra.mrb[0].mxu0 %v2689
    %v2725 = vpop.f32.mrb[0].mxu0
    %v2726 = vadd.f32 0.0, %v2725
    %v2727 = vpop.f32.mrb[0].mxu0
    %v2728 = vpop.f32.mrb[0].mxu0
    %v2729 = vpop.f32.mrb[0].mxu0
    %2730 = vdwg.mxu0
    %v2733 = vunpack.c.l.b16 %v2637
    %v2734 = vunpack.c.l.b16 %v2638
    %v2735 = vsel %vm2661, %v2734, %v2733
    %v2736 = vpack.c.b16 %v2735, %v2735
    %v2745 = vunpack.c.l.b16 %v2639
    %v2746 = vunpack.c.l.b16 %v2640
    %v2747 = vunpack.c.l.b16 %v2641
    %v2748 = vunpack.c.l.b16 %v2642
    %v2749 = vunpack.c.l.b16 %v2643
    %v2750 = vunpack.c.l.b16 %v2644
    %v2751 = vunpack.c.l.b16 %v2645
    %v2752 = vunpack.c.l.b16 %v2646
    %v2753 = vpack.c.b16 %v2746, %v2745
    %v2754 = vpack.c.b16 %v2748, %v2747
    %v2755 = vpack.c.b16 %v2750, %v2749
    %v2756 = vpack.c.b16 %v2752, %v2751
    %v2762 = vsel %vm514, %v2736, 0
    %2764 = vmatprep.subr.bf16.mxu0 0
    %2765 = vmatpush1.bf16.msra.mxu0 %v2753
    %2766 = vmatprep.subr.bf16.mxu0 0
    %2767 = vmatpush1.bf16.msra.mxu0 %v2754
    %2768 = vmatprep.subr.bf16.mxu0 0
    %2769 = vmatpush1.bf16.msra.mxu0 %v2755
    %2770 = vmatprep.subr.bf16.mxu0 0
    %2771 = vmatpush1.bf16.msra.mxu0 %v2756
    %2772 = vmatprep.subr.bf16.mxu0 0
    %2773 = vmatpush1.bf16.msra.mxu0 0
    %2774 = vmatprep.subr.bf16.mxu0 0
    %2775 = vmatpush1.bf16.msra.mxu0 0
    %2776 = vmatprep.subr.bf16.mxu0 0
    %2777 = vmatpush1.bf16.msra.mxu0 0
    %2778 = vmatprep.subr.bf16.mxu0 0
    %2779 = vmatpush1.bf16.msra.mxu0 0
    %2780 = vmatprep.subr.bf16.mxu0 0
    %2781 = vmatpush1.bf16.msra.mxu0 0
    %2782 = vmatprep.subr.bf16.mxu0 0
    %2783 = vmatpush1.bf16.msra.mxu0 0
    %2784 = vmatprep.subr.bf16.mxu0 0
    %2785 = vmatpush1.bf16.msra.mxu0 0
    %2786 = vmatprep.subr.bf16.mxu0 0
    %2787 = vmatpush1.bf16.msra.mxu0 0
    %2788 = vmatprep.subr.bf16.mxu0 0
    %2789 = vmatpush1.bf16.msra.mxu0 0
    %2790 = vmatprep.subr.bf16.mxu0 0
    %2791 = vmatpush1.bf16.msra.mxu0 0
    %2792 = vmatprep.subr.bf16.mxu0 0
    %2793 = vmatpush1.bf16.msra.mxu0 0
    %2794 = vmatprep.subr.bf16.mxu0 0
    %2795 = vmatpush1.bf16.msra.mxu0 0
    %2796 = vmatprep.mubr.bf16.mxu0 0
    %2797 = vmatmul.mubr.bf16.gmra.mrb[0].mxu0 %v2762
    %v2798 = vpop.f32.mrb[0].mxu0
    %v2799 = vadd.f32 %v2726, %v2798
    %v2800 = vpop.f32.mrb[0].mxu0
    %v2801 = vpop.f32.mrb[0].mxu0
    %v2802 = vpop.f32.mrb[0].mxu0
    %2803 = vdwg.mxu0
    %v2804 = vpack.c.bf16 %v2621, %v2621
    %v2805 = vpack.c.bf16 %v2622, %v2622
    %v2806 = vld [vmem:[%s4 + $0x40] sm:$0xf]
    %v2807 = vld [vmem:[%s4 + $0x44] sm:$0xf]
    %v2808 = vld [vmem:[%s4 + $0x48] sm:$0xf]
    %v2809 = vld [vmem:[%s4 + $0x4c] sm:$0xf]
    %v2810 = vld [vmem:[%s4 + $0x50] sm:$0xf]
    %v2811 = vld [vmem:[%s4 + $0x54] sm:$0xf]
    %v2812 = vld [vmem:[%s4 + $0x58] sm:$0xf]
    %v2813 = vld [vmem:[%s4 + $0x5c] sm:$0xf]
    %v2816 = vunpack.c.l.b16 %v2804
    %v2817 = vunpack.c.l.b16 %v2805
    %v2818 = vsel %vm2661, %v2817, %v2816
    %v2819 = vpack.c.b16 %v2818, %v2818
    %v2828 = vunpack.c.l.b16 %v2806
    %v2829 = vunpack.c.l.b16 %v2807
    %v2830 = vunpack.c.l.b16 %v2808
    %v2831 = vunpack.c.l.b16 %v2809
    %v2832 = vunpack.c.l.b16 %v2810
    %v2833 = vunpack.c.l.b16 %v2811
    %v2834 = vunpack.c.l.b16 %v2812
    %v2835 = vunpack.c.l.b16 %v2813
    %v2836 = vpack.c.b16 %v2829, %v2828
    %v2837 = vpack.c.b16 %v2831, %v2830
    %v2838 = vpack.c.b16 %v2833, %v2832
    %v2839 = vpack.c.b16 %v2835, %v2834
    %v2845 = vsel %vm514, %v2819, 0
    %2847 = vmatprep.subr.bf16.mxu0 0
    %2848 = vmatpush1.bf16.msra.mxu0 %v2836
    %2849 = vmatprep.subr.bf16.mxu0 0
    %2850 = vmatpush1.bf16.msra.mxu0 %v2837
    %2851 = vmatprep.subr.bf16.mxu0 0
    %2852 = vmatpush1.bf16.msra.mxu0 %v2838
    %2853 = vmatprep.subr.bf16.mxu0 0
    %2854 = vmatpush1.bf16.msra.mxu0 %v2839
    %2855 = vmatprep.subr.bf16.mxu0 0
    %2856 = vmatpush1.bf16.msra.mxu0 0
    %2857 = vmatprep.subr.bf16.mxu0 0
    %2858 = vmatpush1.bf16.msra.mxu0 0
    %2859 = vmatprep.subr.bf16.mxu0 0
    %2860 = vmatpush1.bf16.msra.mxu0 0
    %2861 = vmatprep.subr.bf16.mxu0 0
    %2862 = vmatpush1.bf16.msra.mxu0 0
    %2863 = vmatprep.subr.bf16.mxu0 0
    %2864 = vmatpush1.bf16.msra.mxu0 0
    %2865 = vmatprep.subr.bf16.mxu0 0
    %2866 = vmatpush1.bf16.msra.mxu0 0
    %2867 = vmatprep.subr.bf16.mxu0 0
    %2868 = vmatpush1.bf16.msra.mxu0 0
    %2869 = vmatprep.subr.bf16.mxu0 0
    %2870 = vmatpush1.bf16.msra.mxu0 0
    %2871 = vmatprep.subr.bf16.mxu0 0
    %2872 = vmatpush1.bf16.msra.mxu0 0
    %2873 = vmatprep.subr.bf16.mxu0 0
    %2874 = vmatpush1.bf16.msra.mxu0 0
    %2875 = vmatprep.subr.bf16.mxu0 0
    %2876 = vmatpush1.bf16.msra.mxu0 0
    %2877 = vmatprep.subr.bf16.mxu0 0
    %2878 = vmatpush1.bf16.msra.mxu0 0
    %2879 = vmatprep.mubr.bf16.mxu0 0
    %2880 = vmatmul.mubr.bf16.gmra.mrb[0].mxu0 %v2845
    %v2881 = vpop.f32.mrb[0].mxu0
    %v2882 = vadd.f32 0.0, %v2881
    %v2883 = vpop.f32.mrb[0].mxu0
    %v2884 = vpop.f32.mrb[0].mxu0
    %v2885 = vpop.f32.mrb[0].mxu0
    %2886 = vdwg.mxu0
    %v2887 = vadd.f32 %v2799, %v2882
    %v2888 = vpack.c.bf16 %v2629, %v2629
    %v2889 = vpack.c.bf16 %v2636, %v2636
    %v2890 = vld [vmem:[%s4 + $0x60] sm:$0xf]
    %v2891 = vld [vmem:[%s4 + $0x64] sm:$0xf]
    %v2892 = vld [vmem:[%s4 + $0x68] sm:$0xf]
    %v2893 = vld [vmem:[%s4 + $0x6c] sm:$0xf]
    %v2894 = vld [vmem:[%s4 + $0x70] sm:$0xf]
    %v2895 = vld [vmem:[%s4 + $0x74] sm:$0xf]
    %v2896 = vld [vmem:[%s4 + $0x78] sm:$0xf]
    %v2897 = vld [vmem:[%s4 + $0x7c] sm:$0xf]
    %v2900 = vunpack.c.l.b16 %v2888
    %v2901 = vunpack.c.l.b16 %v2889
    %v2902 = vsel %vm2661, %v2901, %v2900
    %v2903 = vpack.c.b16 %v2902, %v2902
    %v2912 = vunpack.c.l.b16 %v2890
    %v2913 = vunpack.c.l.b16 %v2891
    %v2914 = vunpack.c.l.b16 %v2892
    %v2915 = vunpack.c.l.b16 %v2893
    %v2916 = vunpack.c.l.b16 %v2894
    %v2917 = vunpack.c.l.b16 %v2895
    %v2918 = vunpack.c.l.b16 %v2896
    %v2919 = vunpack.c.l.b16 %v2897
    %v2920 = vpack.c.b16 %v2913, %v2912
    %v2921 = vpack.c.b16 %v2915, %v2914
    %v2922 = vpack.c.b16 %v2917, %v2916
    %v2923 = vpack.c.b16 %v2919, %v2918
    %v2929 = vsel %vm514, %v2903, 0
    %2931 = vmatprep.subr.bf16.mxu0 0
    %2932 = vmatpush1.bf16.msra.mxu0 %v2920
    %2933 = vmatprep.subr.bf16.mxu0 0
    %2934 = vmatpush1.bf16.msra.mxu0 %v2921
    %2935 = vmatprep.subr.bf16.mxu0 0
    %2936 = vmatpush1.bf16.msra.mxu0 %v2922
    %2937 = vmatprep.subr.bf16.mxu0 0
    %2938 = vmatpush1.bf16.msra.mxu0 %v2923
    %2939 = vmatprep.subr.bf16.mxu0 0
    %2940 = vmatpush1.bf16.msra.mxu0 0
    %2941 = vmatprep.subr.bf16.mxu0 0
    %2942 = vmatpush1.bf16.msra.mxu0 0
    %2943 = vmatprep.subr.bf16.mxu0 0
    %2944 = vmatpush1.bf16.msra.mxu0 0
    %2945 = vmatprep.subr.bf16.mxu0 0
    %2946 = vmatpush1.bf16.msra.mxu0 0
    %2947 = vmatprep.subr.bf16.mxu0 0
    %2948 = vmatpush1.bf16.msra.mxu0 0
    %2949 = vmatprep.subr.bf16.mxu0 0
    %2950 = vmatpush1.bf16.msra.mxu0 0
    %2951 = vmatprep.subr.bf16.mxu0 0
    %2952 = vmatpush1.bf16.msra.mxu0 0
    %2953 = vmatprep.subr.bf16.mxu0 0
    %2954 = vmatpush1.bf16.msra.mxu0 0
    %2955 = vmatprep.subr.bf16.mxu0 0
    %2956 = vmatpush1.bf16.msra.mxu0 0
    %2957 = vmatprep.subr.bf16.mxu0 0
    %2958 = vmatpush1.bf16.msra.mxu0 0
    %2959 = vmatprep.subr.bf16.mxu0 0
    %2960 = vmatpush1.bf16.msra.mxu0 0
    %2961 = vmatprep.subr.bf16.mxu0 0
    %2962 = vmatpush1.bf16.msra.mxu0 0
    %2963 = vmatprep.mubr.bf16.mxu0 0
    %2964 = vmatmul.mubr.bf16.gmra.mrb[0].mxu0 %v2929
    %v2965 = vpop.f32.mrb[0].mxu0
    %v2966 = vadd.f32 0.0, %v2965
    %v2967 = vpop.f32.mrb[0].mxu0
    %v2968 = vpop.f32.mrb[0].mxu0
    %v2969 = vpop.f32.mrb[0].mxu0
    %2970 = vdwg.mxu0
    %v2971 = vadd.f32 %v2887, %v2966
    %v2972 = vadd.f32 %v2971, %v72
    %v2973 = vmax.f32 %v2972, 0.0
    %2975 = vrot.lane.b32.xlu0 %v72, 112
    %v2976 = vpop.permute.xlu0 %2975
    %v2978 = vmul.f32 %v2973, %v2976
    %vm2979 = vcmask 123904
    %v2980 = vsel %vm2979, %v2978, 0.0
    %2981 = vadd.xlane.f32.xlu0 %v2980
    %v2982 = vpop.xlane.xlu0 %2981
    %v2983 = vadd.f32 %v2982, %v72
    %2985 = vrot.lane.b32.xlu0 %v2983, 96
    %v2986 = vpop.permute.xlu0 %2985
    %vm2988 = vcmask 1024
    %2989 = vst.msk [vmem:[%s6] sm:$0x3] %vm2988, %v2986
    // Predicated region
    $region30: #{rnn_attn_forward.1} parent=1 // pred_check
      _
    $region31: #{rnn_attn_forward.1} parent=1 // pred_check_branch
      %2991 = sbr.rel (0) target = $region33
    $region32: #{rnn_attn_forward.1} parent=1 // pred_region
      _
    $region33: #{rnn_attn_forward.1} parent=1 // pred_fallthru
      _
    // Predicated region
    $region34: #{rnn_attn_forward.1} parent=1 // pred_check
      _
    $region35: #{rnn_attn_forward.1} parent=1 // pred_check_branch
      %2993 = sbr.rel (0) target = $region37
    $region36: #{rnn_attn_forward.1} parent=1 // pred_region
      _
    $region37: #{rnn_attn_forward.1} parent=1 // pred_fallthru
      _
    %2994 = vsyncpa [#allocation3], 1

</llo_original>
